<compile_context>
chip_gen: v6e
topology: v6e:2x2x1
jax: 0.10.0
libtpu: 0.0.40
codegen_flags: <defaults>
</compile_context>

<pallas_src>
import functools

import jax
import jax.numpy as jnp
from jax.experimental import pallas as pl
from jax.experimental.pallas import tpu as pltpu


def _round_up(x, m):
    return (x + m - 1) // m * m


# --------------------- fused NGCF propagation layer kernel ---------------------
def _ngcf_layer_kernel(a_ref, ego_k_ref, ego_i_ref, sum_i_ref, w1_ref, w2_ref,
                       ego_out_ref, sum_out_ref, acc_ego, *, out_scale):
    k = pl.program_id(1)

    @pl.when(k == 0)
    def _():
        acc_ego[...] = jnp.zeros_like(acc_ego)

    # agg += A_tile @ ego_tile  (operands in the adjacency dtype, f32 accumulation)
    acc_ego[...] += jnp.dot(
        a_ref[...], ego_k_ref[...].astype(a_ref.dtype),
        preferred_element_type=jnp.float32)

    @pl.when(k == pl.num_programs(1) - 1)
    def _():
        agg = acc_ego[...]
        ego_i = ego_i_ref[...].astype(jnp.float32)
        # A@(ego@W1) + ego@W1 == (A@ego + ego) @ W1  -> one small (tm,D)x(D,D) matmul
        x = (jnp.dot(agg + ego_i, w1_ref[...], preferred_element_type=jnp.float32)
             + jnp.dot(agg * ego_i, w2_ref[...], preferred_element_type=jnp.float32))
        new_ego = jnp.where(x >= 0, x, 0.01 * x)          # leaky_relu, slope 0.01
        ego_out_ref[...] = new_ego.astype(ego_out_ref.dtype)
        new_sum = sum_i_ref[...] + new_ego
        if out_scale != 1.0:                               # fold the layer-mean in
            new_sum = new_sum * out_scale
        sum_out_ref[...] = new_sum.astype(sum_out_ref.dtype)


def ngcf_layer(adj, ego, run_sum, w1, w2, *, tm, tk, out_scale=1.0):
    """One NGCF propagation layer on padded, tile-aligned inputs."""
    N, D = ego.shape
    assert adj.shape == (N, N) and run_sum.shape == (N, D)
    assert N % tm == 0 and N % tk == 0

    kernel = functools.partial(_ngcf_layer_kernel, out_scale=float(out_scale))
    return pl.pallas_call(
        kernel,
        out_shape=(jax.ShapeDtypeStruct((N, D), jnp.float32),
                   jax.ShapeDtypeStruct((N, D), jnp.float32)),
        grid_spec=pltpu.PrefetchScalarGridSpec(
            num_scalar_prefetch=0,
            grid=(N // tm, N // tk),                       # reduction axis last
            in_specs=[
                pl.BlockSpec((tm, tk), lambda i, k: (i, k)),   # A tile (dominant HBM stream)
                pl.BlockSpec((tk, D), lambda i, k: (k, 0)),    # ego rows for the reduction
                pl.BlockSpec((tm, D), lambda i, k: (i, 0)),    # ego rows of this row tile
                pl.BlockSpec((tm, D), lambda i, k: (i, 0)),    # running layer-sum rows
                pl.BlockSpec((D, D), lambda i, k: (0, 0)),     # W1 (fully resident)
                pl.BlockSpec((D, D), lambda i, k: (0, 0)),     # W2 (fully resident)
            ],
            out_specs=(
                pl.BlockSpec((tm, D), lambda i, k: (i, 0)),    # new ego embeddings
                pl.BlockSpec((tm, D), lambda i, k: (i, 0)),    # updated running sum
            ),
            scratch_shapes=[pltpu.VMEM((tm, D), jnp.float32)],
        ),
        compiler_params=pltpu.CompilerParams(
            dimension_semantics=("parallel", "arbitrary"),
            vmem_limit_bytes=32 * 1024 * 1024),
    )(adj, ego, ego, run_sum, w1, w2)


# ------------------------------- full forward ----------------------------------
def ngcf_forward(user_emb, item_emb, norm_adj, w1_list, w2_list,
                 *, tm=512, tk=2048, adj_dtype=jnp.bfloat16):
    """NGCF encoder forward.

    Defaults tm=512, tk=2048 give a 2 MiB bf16 A tile (~5 MiB double-buffered VMEM),
    comfortably inside the 32 MiB scoped-VMEM limit requested above on v5e/v6e/v7x;
    tiles are clamped to the padded problem size.  Keeping the feature dim at D=32
    (no lane padding) keeps the streamed ego operand 4x smaller than a 128-padded
    layout; the masked (tm, 32) stores only happen once per row tile in the finalize
    so they are off the critical path.
    """
    # TODO(synk): production NGCF uses a sparse norm_adj; at large N the dense (N,N)
    # stream should be replaced by a CSR scalar-prefetch / gathered-block kernel.
    ego = jnp.concatenate([user_emb, item_emb], axis=0).astype(jnp.float32)
    N, D = ego.shape
    n_layers = len(w1_list)
    user_num = user_emb.shape[0]

    if n_layers == 0:
        return ego[:user_num], ego[user_num:]

    # Tile selection + zero padding so both tiles divide N_pad and the adjacency
    # tile's lane dim is a multiple of 128 (the (8,128) layout rule).
    r = _round_up(N, 128)
    tm_e = min(tm, r)
    tk_e = max((min(tk, r) // tm_e) * tm_e, tm_e)     # tm_e divides tk_e
    n_pad = _round_up(N, tk_e)

    adj_c = norm_adj.astype(adj_dtype)
    if n_pad == N:
        adj_p, ego_p = adj_c, ego                      # already tile-aligned: no copy
    else:
        adj_p = jnp.zeros((n_pad, n_pad), adj_dtype).at[:N, :N].set(adj_c)
        ego_p = jnp.zeros((n_pad, D), jnp.float32).at[:N].set(ego)

    run_sum = ego_p                                    # mean includes layer-0 embeddings
    for li, (w1, w2) in enumerate(zip(w1_list, w2_list)):
        scale = 1.0 / (n_layers + 1) if li == n_layers - 1 else 1.0
        ego_p, run_sum = ngcf_layer(adj_p, ego_p, run_sum, w1, w2,
                                    tm=tm_e, tk=tk_e, out_scale=scale)

    mean_emb = run_sum[:N]                             # mean already folded in-kernel
    return mean_emb[:user_num], mean_emb[user_num:]


# --------------------------- plain-JAX reference --------------------------------
def ngcf_forward_ref(user_emb, item_emb, norm_adj, w1_list, w2_list):
    ego = jnp.concatenate([user_emb, item_emb], axis=0)
    all_embeddings = [ego]
    for w1, w2 in zip(w1_list, w2_list):
        temp = ego @ w1
        x = norm_adj @ temp + temp + ((norm_adj @ ego) * ego) @ w2
        ego = jnp.where(x >= 0, x, 0.01 * x)
        all_embeddings.append(ego)
    mean_emb = jnp.mean(jnp.stack(all_embeddings, axis=1), axis=1)
    user_num = user_emb.shape[0]
    return mean_emb[:user_num], mean_emb[user_num:]


def xavier_uniform(key, shape, dtype=jnp.float32):
    fan_in, fan_out = shape[0], shape[1]
    bound = (6.0 / (fan_in + fan_out)) ** 0.5
    return jax.random.uniform(key, shape, dtype, minval=-bound, maxval=bound)


if __name__ == "__main__":
    # Small shapes; N = 250 is deliberately NOT a tile multiple to exercise padding.
    user_num, item_num, emb_size, n_layers = 100, 150, 32, 2
    N = user_num + item_num

    key = jax.random.PRNGKey(0)
    k_u, k_i, k_adj, *k_w = jax.random.split(key, 3 + 2 * n_layers)

    user_emb = xavier_uniform(k_u, (user_num, emb_size))
    item_emb = xavier_uniform(k_i, (item_num, emb_size))
    w1_list = [xavier_uniform(k_w[2 * i], (emb_size, emb_size)) for i in range(n_layers)]
    w2_list = [xavier_uniform(k_w[2 * i + 1], (emb_size, emb_size)) for i in range(n_layers)]

    # synthetic symmetric-normalized bipartite adjacency (dense stand-in for norm_adj)
    r = jax.random.uniform(k_adj, (user_num, item_num))
    ui = (r < 0.1).astype(jnp.float32)
    adj = jnp.zeros((N, N), jnp.float32)
    adj = adj.at[:user_num, user_num:].set(ui)
    adj = adj.at[user_num:, :user_num].set(ui.T)
    deg = jnp.maximum(adj.sum(axis=1), 1.0)
    d_inv_sqrt = 1.0 / jnp.sqrt(deg)
    norm_adj = adj * d_inv_sqrt[:, None] * d_inv_sqrt[None, :]

    u_ref, i_ref = ngcf_forward_ref(user_emb, item_emb, norm_adj, w1_list, w2_list)

    # Small tm/tk in the demo so the (row, reduction) grid has multiple steps: this
    # exercises the accumulator pipeline and keeps >=2 row blocks (v7x megacore).
    fwd_f32 = jax.jit(functools.partial(
        ngcf_forward, tm=128, tk=128, adj_dtype=jnp.float32))
    u32, i32 = fwd_f32(user_emb, item_emb, norm_adj, w1_list, w2_list)
    jax.block_until_ready((u32, i32))
    assert u32.shape == (user_num, emb_size) and i32.shape == (item_num, emb_size)
    assert jnp.allclose(u32, u_ref, atol=1e-4, rtol=1e-4)
    assert jnp.allclose(i32, i_ref, atol=1e-4, rtol=1e-4)

    # bf16 adjacency stream (production default) — halves HBM traffic on the dominant
    # A stream; f32 accumulation, so only a looser tolerance vs the f32 reference.
    fwd_bf16 = jax.jit(functools.partial(
        ngcf_forward, tm=128, tk=128, adj_dtype=jnp.bfloat16))
    u_bf, i_bf = fwd_bf16(user_emb, item_emb, norm_adj, w1_list, w2_list)
    jax.block_until_ready((u_bf, i_bf))
    assert jnp.allclose(u_bf, u_ref, atol=2e-2, rtol=2e-2)
    assert jnp.allclose(i_bf, i_ref, atol=2e-2, rtol=2e-2)

    print("KERNEL_OK")
</pallas_src>

<mosaic_0001>
module attributes {stable_mosaic.version = 11 : i64} {
  func.func @_ngcf_layer_kernel(%arg0: i32, %arg1: i32, %arg2: memref<128x128xf32, #tpu.memory_space<vmem>>, %arg3: memref<128x32xf32, #tpu.memory_space<vmem>>, %arg4: memref<128x32xf32, #tpu.memory_space<vmem>>, %arg5: memref<128x32xf32, #tpu.memory_space<vmem>>, %arg6: memref<32x32xf32, #tpu.memory_space<vmem>>, %arg7: memref<32x32xf32, #tpu.memory_space<vmem>>, %arg8: memref<128x32xf32, #tpu.memory_space<vmem>>, %arg9: memref<128x32xf32, #tpu.memory_space<vmem>>, %arg10: memref<128x32xf32, #tpu.memory_space<vmem>>) attributes {dimension_semantics = [#tpu.dimension_semantics<parallel>, #tpu.dimension_semantics<arbitrary>], iteration_bounds = array<i64: 2, 2>, scalar_prefetch = 0 : i64, scratch_operands = 1 : i64, tpu.core_type = #tpu.core_type<tc>, window_params = [{transform_indices = @transform_0, window_bounds = array<i64: 128, 128>}, {transform_indices = @transform_1, window_bounds = array<i64: 128, 32>}, {transform_indices = @transform_2, window_bounds = array<i64: 128, 32>}, {transform_indices = @transform_3, window_bounds = array<i64: 128, 32>}, {pipeline_mode = #tpu.pipeline_mode<synchronous>, transform_indices = @transform_4, window_bounds = array<i64: 32, 32>}, {pipeline_mode = #tpu.pipeline_mode<synchronous>, transform_indices = @transform_5, window_bounds = array<i64: 32, 32>}, {transform_indices = @transform_6, window_bounds = array<i64: 128, 32>}, {transform_indices = @transform_7, window_bounds = array<i64: 128, 32>}]} {
    %c0_i32 = arith.constant 0 : i32
    %0 = arith.cmpi eq, %arg1, %c0_i32 : i32
    %1 = arith.extui %0 : i1 to i32
    %c0_i32_0 = arith.constant 0 : i32
    %2 = arith.cmpi ne, %1, %c0_i32_0 : i32
    scf.if %2 {
      %cst_9 = arith.constant 0.000000e+00 : f32
      %12 = vector.broadcast %cst_9 : f32 to vector<128x32xf32>
      %c0_10 = arith.constant 0 : index
      %c0_11 = arith.constant 0 : index
      %13 = vector.load %arg10[%c0_10, %c0_11] : memref<128x32xf32, #tpu.memory_space<vmem>>, vector<128x32xf32>
      tpu.vector_store %arg10[%c0_10, %c0_11], %12 {strides = array<i32>} : memref<128x32xf32, #tpu.memory_space<vmem>>, vector<128x32xf32>,
    } else {
    }
    %c0 = arith.constant 0 : index
    %c0_1 = arith.constant 0 : index
    %3 = vector.load %arg10[%c0, %c0_1] : memref<128x32xf32, #tpu.memory_space<vmem>>, vector<128x32xf32>
    %c0_2 = arith.constant 0 : index
    %c0_3 = arith.constant 0 : index
    %4 = vector.load %arg2[%c0_2, %c0_3] : memref<128x128xf32, #tpu.memory_space<vmem>>, vector<128x128xf32>
    %c0_4 = arith.constant 0 : index
    %c0_5 = arith.constant 0 : index
    %5 = vector.load %arg3[%c0_4, %c0_5] : memref<128x32xf32, #tpu.memory_space<vmem>>, vector<128x32xf32>
    %cst = arith.constant dense<0.000000e+00> : vector<128x32xf32>
    %6 = tpu.matmul %4, %5, %cst {dimension_numbers = #tpu.dot_dimension_numbers<[1], [0], [0], [1], [0, 0, 1, 1], [], []>} : vector<128x128xf32>, vector<128x32xf32>, vector<128x32xf32> -> vector<128x32xf32>
    %7 = arith.addf %3, %6 : vector<128x32xf32>
    %c0_6 = arith.constant 0 : index
    %c0_7 = arith.constant 0 : index
    %8 = vector.load %arg10[%c0_6, %c0_7] : memref<128x32xf32, #tpu.memory_space<vmem>>, vector<128x32xf32>
    tpu.vector_store %arg10[%c0_6, %c0_7], %7 {strides = array<i32>} : memref<128x32xf32, #tpu.memory_space<vmem>>, vector<128x32xf32>,
    %c1_i32 = arith.constant 1 : i32
    %9 = arith.cmpi eq, %arg1, %c1_i32 : i32
    %10 = arith.extui %9 : i1 to i32
    %c0_i32_8 = arith.constant 0 : i32
    %11 = arith.cmpi ne, %10, %c0_i32_8 : i32
    scf.if %11 {
      %c0_9 = arith.constant 0 : index
      %c0_10 = arith.constant 0 : index
      %12 = vector.load %arg10[%c0_9, %c0_10] : memref<128x32xf32, #tpu.memory_space<vmem>>, vector<128x32xf32>
      %c0_11 = arith.constant 0 : index
      %c0_12 = arith.constant 0 : index
      %13 = vector.load %arg4[%c0_11, %c0_12] : memref<128x32xf32, #tpu.memory_space<vmem>>, vector<128x32xf32>
      %14 = arith.addf %12, %13 : vector<128x32xf32>
      %c0_13 = arith.constant 0 : index
      %c0_14 = arith.constant 0 : index
      %15 = vector.load %arg6[%c0_13, %c0_14] : memref<32x32xf32, #tpu.memory_space<vmem>>, vector<32x32xf32>
      %cst_15 = arith.constant dense<0.000000e+00> : vector<128x32xf32>
      %16 = tpu.matmul %14, %15, %cst_15 {dimension_numbers = #tpu.dot_dimension_numbers<[1], [0], [0], [1], [0, 0, 1, 1], [], []>} : vector<128x32xf32>, vector<32x32xf32>, vector<128x32xf32> -> vector<128x32xf32>
      %17 = arith.mulf %12, %13 : vector<128x32xf32>
      %c0_16 = arith.constant 0 : index
      %c0_17 = arith.constant 0 : index
      %18 = vector.load %arg7[%c0_16, %c0_17] : memref<32x32xf32, #tpu.memory_space<vmem>>, vector<32x32xf32>
      %cst_18 = arith.constant dense<0.000000e+00> : vector<128x32xf32>
      %19 = tpu.matmul %17, %18, %cst_18 {dimension_numbers = #tpu.dot_dimension_numbers<[1], [0], [0], [1], [0, 0, 1, 1], [], []>} : vector<128x32xf32>, vector<32x32xf32>, vector<128x32xf32> -> vector<128x32xf32>
      %20 = arith.addf %16, %19 : vector<128x32xf32>
      %cst_19 = arith.constant 0.000000e+00 : f32
      %21 = vector.broadcast %cst_19 : f32 to vector<128x32xf32>
      %22 = arith.cmpf oge, %20, %21 : vector<128x32xf32>
      %cst_20 = arith.constant 0.00999999977 : f32
      %23 = vector.broadcast %cst_20 : f32 to vector<128x32xf32>
      %24 = arith.mulf %23, %20 : vector<128x32xf32>
      %25 = arith.select %22, %20, %24 : vector<128x32xi1>, vector<128x32xf32>
      %c0_21 = arith.constant 0 : index
      %c0_22 = arith.constant 0 : index
      %26 = vector.load %arg8[%c0_21, %c0_22] : memref<128x32xf32, #tpu.memory_space<vmem>>, vector<128x32xf32>
      tpu.vector_store %arg8[%c0_21, %c0_22], %25 {strides = array<i32>} : memref<128x32xf32, #tpu.memory_space<vmem>>, vector<128x32xf32>,
      %c0_23 = arith.constant 0 : index
      %c0_24 = arith.constant 0 : index
      %27 = vector.load %arg5[%c0_23, %c0_24] : memref<128x32xf32, #tpu.memory_space<vmem>>, vector<128x32xf32>
      %28 = arith.addf %27, %25 : vector<128x32xf32>
      %cst_25 = arith.constant 0.333333343 : f32
      %29 = vector.broadcast %cst_25 : f32 to vector<128x32xf32>
      %30 = arith.mulf %28, %29 : vector<128x32xf32>
      %c0_26 = arith.constant 0 : index
      %c0_27 = arith.constant 0 : index
      %31 = vector.load %arg9[%c0_26, %c0_27] : memref<128x32xf32, #tpu.memory_space<vmem>>, vector<128x32xf32>
      tpu.vector_store %arg9[%c0_26, %c0_27], %30 {strides = array<i32>} : memref<128x32xf32, #tpu.memory_space<vmem>>, vector<128x32xf32>,
    } else {
    }
    return
  }
  func.func @transform_0(%arg0: i32, %arg1: i32) -> (i32, i32) {
    %c0_i32 = arith.constant 0 : i32
    return %arg0, %arg1 : i32, i32
  }
  func.func @transform_1(%arg0: i32, %arg1: i32) -> (i32, i32) {
    %c0_i32 = arith.constant 0 : i32
    %c0_i32_0 = arith.constant 0 : i32
    return %arg1, %c0_i32 : i32, i32
  }
  func.func @transform_2(%arg0: i32, %arg1: i32) -> (i32, i32) {
    %c0_i32 = arith.constant 0 : i32
    %c0_i32_0 = arith.constant 0 : i32
    return %arg0, %c0_i32 : i32, i32
  }
  func.func @transform_3(%arg0: i32, %arg1: i32) -> (i32, i32) {
    %c0_i32 = arith.constant 0 : i32
    %c0_i32_0 = arith.constant 0 : i32
    return %arg0, %c0_i32 : i32, i32
  }
  func.func @transform_4(%arg0: i32, %arg1: i32) -> (i32, i32) {
    %c0_i32 = arith.constant 0 : i32
    %c0_i32_0 = arith.constant 0 : i32
    %c0_i32_1 = arith.constant 0 : i32
    return %c0_i32, %c0_i32_0 : i32, i32
  }
  func.func @transform_5(%arg0: i32, %arg1: i32) -> (i32, i32) {
    %c0_i32 = arith.constant 0 : i32
    %c0_i32_0 = arith.constant 0 : i32
    %c0_i32_1 = arith.constant 0 : i32
    return %c0_i32, %c0_i32_0 : i32, i32
  }
  func.func @transform_6(%arg0: i32, %arg1: i32) -> (i32, i32) {
    %c0_i32 = arith.constant 0 : i32
    %c0_i32_0 = arith.constant 0 : i32
    return %arg0, %c0_i32 : i32, i32
  }
  func.func @transform_7(%arg0: i32, %arg1: i32) -> (i32, i32) {
    %c0_i32 = arith.constant 0 : i32
    %c0_i32_0 = arith.constant 0 : i32
    return %arg0, %c0_i32 : i32, i32
  }
}

module attributes {stable_mosaic.version = 11 : i64} {
  func.func @_ngcf_layer_kernel(%arg0: i32, %arg1: i32, %arg2: memref<128x128xf32, #tpu.memory_space<vmem>>, %arg3: memref<128x32xf32, #tpu.memory_space<vmem>>, %arg4: memref<128x32xf32, #tpu.memory_space<vmem>>, %arg5: memref<128x32xf32, #tpu.memory_space<vmem>>, %arg6: memref<32x32xf32, #tpu.memory_space<vmem>>, %arg7: memref<32x32xf32, #tpu.memory_space<vmem>>, %arg8: memref<128x32xf32, #tpu.memory_space<vmem>>, %arg9: memref<128x32xf32, #tpu.memory_space<vmem>>, %arg10: memref<128x32xf32, #tpu.memory_space<vmem>>) attributes {dimension_semantics = [#tpu.dimension_semantics<parallel>, #tpu.dimension_semantics<arbitrary>], iteration_bounds = array<i64: 2, 2>, scalar_prefetch = 0 : i64, scratch_operands = 1 : i64, tpu.core_type = #tpu.core_type<tc>, window_params = [{transform_indices = @transform_0, window_bounds = array<i64: 128, 128>}, {transform_indices = @transform_1, window_bounds = array<i64: 128, 32>}, {transform_indices = @transform_2, window_bounds = array<i64: 128, 32>}, {transform_indices = @transform_3, window_bounds = array<i64: 128, 32>}, {pipeline_mode = #tpu.pipeline_mode<synchronous>, transform_indices = @transform_4, window_bounds = array<i64: 32, 32>}, {pipeline_mode = #tpu.pipeline_mode<synchronous>, transform_indices = @transform_5, window_bounds = array<i64: 32, 32>}, {transform_indices = @transform_6, window_bounds = array<i64: 128, 32>}, {transform_indices = @transform_7, window_bounds = array<i64: 128, 32>}]} {
    %c0_i32 = arith.constant 0 : i32
    %0 = arith.cmpi eq, %arg1, %c0_i32 : i32
    %1 = arith.extui %0 : i1 to i32
    %c0_i32_0 = arith.constant 0 : i32
    %2 = arith.cmpi ne, %1, %c0_i32_0 : i32
    scf.if %2 {
      %cst_9 = arith.constant 0.000000e+00 : f32
      %12 = vector.broadcast %cst_9 : f32 to vector<128x32xf32>
      %c0_10 = arith.constant 0 : index
      %c0_11 = arith.constant 0 : index
      %13 = vector.load %arg10[%c0_10, %c0_11] : memref<128x32xf32, #tpu.memory_space<vmem>>, vector<128x32xf32>
      tpu.vector_store %arg10[%c0_10, %c0_11], %12 {strides = array<i32>} : memref<128x32xf32, #tpu.memory_space<vmem>>, vector<128x32xf32>,
    } else {
    }
    %c0 = arith.constant 0 : index
    %c0_1 = arith.constant 0 : index
    %3 = vector.load %arg10[%c0, %c0_1] : memref<128x32xf32, #tpu.memory_space<vmem>>, vector<128x32xf32>
    %c0_2 = arith.constant 0 : index
    %c0_3 = arith.constant 0 : index
    %4 = vector.load %arg2[%c0_2, %c0_3] : memref<128x128xf32, #tpu.memory_space<vmem>>, vector<128x128xf32>
    %c0_4 = arith.constant 0 : index
    %c0_5 = arith.constant 0 : index
    %5 = vector.load %arg3[%c0_4, %c0_5] : memref<128x32xf32, #tpu.memory_space<vmem>>, vector<128x32xf32>
    %cst = arith.constant dense<0.000000e+00> : vector<128x32xf32>
    %6 = tpu.matmul %4, %5, %cst {dimension_numbers = #tpu.dot_dimension_numbers<[1], [0], [0], [1], [0, 0, 1, 1], [], []>} : vector<128x128xf32>, vector<128x32xf32>, vector<128x32xf32> -> vector<128x32xf32>
    %7 = arith.addf %3, %6 : vector<128x32xf32>
    %c0_6 = arith.constant 0 : index
    %c0_7 = arith.constant 0 : index
    %8 = vector.load %arg10[%c0_6, %c0_7] : memref<128x32xf32, #tpu.memory_space<vmem>>, vector<128x32xf32>
    tpu.vector_store %arg10[%c0_6, %c0_7], %7 {strides = array<i32>} : memref<128x32xf32, #tpu.memory_space<vmem>>, vector<128x32xf32>,
    %c1_i32 = arith.constant 1 : i32
    %9 = arith.cmpi eq, %arg1, %c1_i32 : i32
    %10 = arith.extui %9 : i1 to i32
    %c0_i32_8 = arith.constant 0 : i32
    %11 = arith.cmpi ne, %10, %c0_i32_8 : i32
    scf.if %11 {
      %c0_9 = arith.constant 0 : index
      %c0_10 = arith.constant 0 : index
      %12 = vector.load %arg10[%c0_9, %c0_10] : memref<128x32xf32, #tpu.memory_space<vmem>>, vector<128x32xf32>
      %c0_11 = arith.constant 0 : index
      %c0_12 = arith.constant 0 : index
      %13 = vector.load %arg4[%c0_11, %c0_12] : memref<128x32xf32, #tpu.memory_space<vmem>>, vector<128x32xf32>
      %14 = arith.addf %12, %13 : vector<128x32xf32>
      %c0_13 = arith.constant 0 : index
      %c0_14 = arith.constant 0 : index
      %15 = vector.load %arg6[%c0_13, %c0_14] : memref<32x32xf32, #tpu.memory_space<vmem>>, vector<32x32xf32>
      %cst_15 = arith.constant dense<0.000000e+00> : vector<128x32xf32>
      %16 = tpu.matmul %14, %15, %cst_15 {dimension_numbers = #tpu.dot_dimension_numbers<[1], [0], [0], [1], [0, 0, 1, 1], [], []>} : vector<128x32xf32>, vector<32x32xf32>, vector<128x32xf32> -> vector<128x32xf32>
      %17 = arith.mulf %12, %13 : vector<128x32xf32>
      %c0_16 = arith.constant 0 : index
      %c0_17 = arith.constant 0 : index
      %18 = vector.load %arg7[%c0_16, %c0_17] : memref<32x32xf32, #tpu.memory_space<vmem>>, vector<32x32xf32>
      %cst_18 = arith.constant dense<0.000000e+00> : vector<128x32xf32>
      %19 = tpu.matmul %17, %18, %cst_18 {dimension_numbers = #tpu.dot_dimension_numbers<[1], [0], [0], [1], [0, 0, 1, 1], [], []>} : vector<128x32xf32>, vector<32x32xf32>, vector<128x32xf32> -> vector<128x32xf32>
      %20 = arith.addf %16, %19 : vector<128x32xf32>
      %cst_19 = arith.constant 0.000000e+00 : f32
      %21 = vector.broadcast %cst_19 : f32 to vector<128x32xf32>
      %22 = arith.cmpf oge, %20, %21 : vector<128x32xf32>
      %cst_20 = arith.constant 0.00999999977 : f32
      %23 = vector.broadcast %cst_20 : f32 to vector<128x32xf32>
      %24 = arith.mulf %23, %20 : vector<128x32xf32>
      %25 = arith.select %22, %20, %24 : vector<128x32xi1>, vector<128x32xf32>
      %c0_21 = arith.constant 0 : index
      %c0_22 = arith.constant 0 : index
      %26 = vector.load %arg8[%c0_21, %c0_22] : memref<128x32xf32, #tpu.memory_space<vmem>>, vector<128x32xf32>
      tpu.vector_store %arg8[%c0_21, %c0_22], %25 {strides = array<i32>} : memref<128x32xf32, #tpu.memory_space<vmem>>, vector<128x32xf32>,
      %c0_23 = arith.constant 0 : index
      %c0_24 = arith.constant 0 : index
      %27 = vector.load %arg5[%c0_23, %c0_24] : memref<128x32xf32, #tpu.memory_space<vmem>>, vector<128x32xf32>
      %28 = arith.addf %27, %25 : vector<128x32xf32>
      %c0_25 = arith.constant 0 : index
      %c0_26 = arith.constant 0 : index
      %29 = vector.load %arg9[%c0_25, %c0_26] : memref<128x32xf32, #tpu.memory_space<vmem>>, vector<128x32xf32>
      tpu.vector_store %arg9[%c0_25, %c0_26], %28 {strides = array<i32>} : memref<128x32xf32, #tpu.memory_space<vmem>>, vector<128x32xf32>,
    } else {
    }
    return
  }
  func.func @transform_0(%arg0: i32, %arg1: i32) -> (i32, i32) {
    %c0_i32 = arith.constant 0 : i32
    return %arg0, %arg1 : i32, i32
  }
  func.func @transform_1(%arg0: i32, %arg1: i32) -> (i32, i32) {
    %c0_i32 = arith.constant 0 : i32
    %c0_i32_0 = arith.constant 0 : i32
    return %arg1, %c0_i32 : i32, i32
  }
  func.func @transform_2(%arg0: i32, %arg1: i32) -> (i32, i32) {
    %c0_i32 = arith.constant 0 : i32
    %c0_i32_0 = arith.constant 0 : i32
    return %arg0, %c0_i32 : i32, i32
  }
  func.func @transform_3(%arg0: i32, %arg1: i32) -> (i32, i32) {
    %c0_i32 = arith.constant 0 : i32
    %c0_i32_0 = arith.constant 0 : i32
    return %arg0, %c0_i32 : i32, i32
  }
  func.func @transform_4(%arg0: i32, %arg1: i32) -> (i32, i32) {
    %c0_i32 = arith.constant 0 : i32
    %c0_i32_0 = arith.constant 0 : i32
    %c0_i32_1 = arith.constant 0 : i32
    return %c0_i32, %c0_i32_0 : i32, i32
  }
  func.func @transform_5(%arg0: i32, %arg1: i32) -> (i32, i32) {
    %c0_i32 = arith.constant 0 : i32
    %c0_i32_0 = arith.constant 0 : i32
    %c0_i32_1 = arith.constant 0 : i32
    return %c0_i32, %c0_i32_0 : i32, i32
  }
  func.func @transform_6(%arg0: i32, %arg1: i32) -> (i32, i32) {
    %c0_i32 = arith.constant 0 : i32
    %c0_i32_0 = arith.constant 0 : i32
    return %arg0, %c0_i32 : i32, i32
  }
  func.func @transform_7(%arg0: i32, %arg1: i32) -> (i32, i32) {
    %c0_i32 = arith.constant 0 : i32
    %c0_i32_0 = arith.constant 0 : i32
    return %arg0, %c0_i32 : i32, i32
  }
}

</mosaic_0001>

<llo_original>
// kernel: ngcf_forward.2
$region0: #{ngcf_forward.2}
  #allocation0 [shape = 'u32[]', space=smem, size = 0x4, offset = 0x4, fixed_abs, tag = 'smem constant byte address 0x4 - core index']
  #allocation1 [shape = 'u32[144,128]{1,0:T(1,128)}', space=vmem, size = 0x12000, scoped, tag = 'internal scratch']
  #allocation2 [shape = 'f32[128,32]{1,0:T(8,128)}', space=vmem, size = 0x10000, scoped, tag = 'scratch operand']
  %s0 = inlined_call_operand.vmem [shape: f32[256,256], index: 0, kind: input, shape index: {}]
  %s1 = inlined_call_operand.vmem [shape: f32[256,32], index: 1, kind: input, shape index: {}, may-alias: {1,2,3}]
  %s2 = inlined_call_operand.vmem [shape: f32[256,32], index: 2, kind: input, shape index: {}, may-alias: {1,2,3}]
  %s3 = inlined_call_operand.vmem [shape: f32[256,32], index: 3, kind: input, shape index: {}, may-alias: {1,2,3}]
  %s4 = inlined_call_operand.vmem [shape: f32[32,32], index: 4, kind: input, shape index: {}]
  %s5 = inlined_call_operand.vmem [shape: f32[32,32], index: 5, kind: input, shape index: {}]
  %s6 = inlined_call_operand.vmem [shape: f32[256,32], index: 6, kind: output, shape index: {0}]
  %s7 = inlined_call_operand.vmem [shape: f32[256,32], index: 7, kind: output, shape index: {1}]
  %8 = xla_tuple %s6, %s7
  %s9 = sld [smem:[#allocation0]]
  $region111: #{ngcf_forward.2} parent=0
    _
  %s11 = ssub.s32 1, %s9
  %s12 = scalar_select 0, %s11, %s9
  $region1: #{ngcf_forward.2} parent=0
    #allocation3 [shape = 'u8[131072]{0}', space=vmem, size = 0x20000, scoped, tag = 'input window, operand 0']
    loop: start=0, step=1, limit=6
    $region2: #{ngcf_forward.2} parent=1 // loop_pre_header
      _
    $region3: #{ngcf_forward.2} parent=1 // loop_header
      %s14 = sphi 0, %s18
      %p15 = scmp.ge.s32.totalorder %s14, 6
      %s21 = sphi 0, %s33
      %s22 = sphi 0, %s29
      %s23 = sphi 0, %s21
      %s24 = sphi 0, %s22
      %s25 = sphi 0, %s23
      %s26 = sphi 0, %s24
      %s38 = sphi 0, %s40
      %s41 = sphi 0, %s38
      %s42 = sphi 0, %s41
      %s58 = sphi 0, %s42
      %s64 = sphi 0, %s66
      %s67 = sphi 0, %s64
      %s68 = sphi 0, %s67
      %s84 = sphi 0, %s68
      %s90 = sphi 0, %s92
      %s93 = sphi 0, %s90
      %s94 = sphi 0, %s93
      %s110 = sphi 0, %s94
      %s116 = sphi 0, %s118
      %s119 = sphi 0, %s116
      %s120 = sphi 0, %s119
      %s136 = sphi 0, %s120
      %s140 = sphi 0, %s140
      %s142 = sphi 0, %s140
      %s143 = sphi 0, %s142
      %s157 = sphi 0, %s143
      %s161 = sphi 0, %s161
      %s163 = sphi 0, %s161
      %s164 = sphi 0, %s163
      %s178 = sphi 0, %s164
      %s184 = sphi 0, %s186
      %s187 = sphi 0, %s184
      %s188 = sphi 0, %s187
      %s204 = sphi 0, %s188
      %s210 = sphi 0, %s212
      %s213 = sphi 0, %s210
      %s214 = sphi 0, %s213
      %s230 = sphi 0, %s214
    $region4: #{ngcf_forward.2} parent=1 // loop_header_branch
      %17 = sbr.rel (%p15) target = $region8
    $region5: #{ngcf_forward.2} parent=1 // loop_body
      %s19 = ssub.s32 %s14, 1
      %s20 = ssub.s32 %s14, 2
      %s27 = sadd.s32 1, %s22
      %p28 = scmp.ge.s32.totalorder %s27, 2
      %s29 = scalar_select %p28, 0, %s27
      %s30 = sadd.s32 1, %s21
      %s31 = scalar_select %p28, %s30, %s21
      %p32 = scmp.ge.s32.totalorder %s31, 2
      %s33 = scalar_select %p32, 0, %s31
      %s34 = ssub.s32 %s21, %s33
      %s35 = ssub.s32 %s22, %s29
      %s36 = sor.u32 %s34, %s35
      %p37 = scmp.eq.s32.totalorder %s36, 0
      %s39 = sadd.s32 %s38, 1
      %s40 = scalar_select %p37, %s38, %s39
      %p43 = pneg %p37
      %p44 = scmp.eq.s32.totalorder %s14, 3
      %p45 = por %p43, %p44
      %p46 = scmp.ne.s32.totalorder %s38, %s41
      %p47 = scmp.eq.s32.totalorder %s14, 0
      %p48 = por %p46, %p47
      %p49 = scmp.ne.s32.totalorder %s38, %s41
      %p50 = scmp.eq.s32.totalorder %s19, 3
      %p51 = por %p49, %p50
      %p52 = scmp.ne.s32.totalorder %s41, %s42
      %p53 = scmp.eq.s32.totalorder %s19, 0
      %p54 = por %p52, %p53
      %p55 = scmp.ne.s32.totalorder %s41, %s42
      %p56 = scmp.eq.s32.totalorder %s20, 3
      %p57 = por %p55, %p56
      %p59 = scmp.ne.s32.totalorder %s42, %s58
      %p60 = scmp.eq.s32.totalorder %s20, 0
      %p61 = por %p59, %p60
      %s62 = ssub.s32 %s22, %s29
      %p63 = scmp.eq.s32.totalorder %s62, 0
      %s65 = sadd.s32 %s64, 1
      %s66 = scalar_select %p63, %s64, %s65
      %p69 = pneg %p63
      %p70 = scmp.eq.s32.totalorder %s14, 3
      %p71 = por %p69, %p70
      %p72 = scmp.ne.s32.totalorder %s64, %s67
      %p73 = scmp.eq.s32.totalorder %s14, 0
      %p74 = por %p72, %p73
      %p75 = scmp.ne.s32.totalorder %s64, %s67
      %p76 = scmp.eq.s32.totalorder %s19, 3
      %p77 = por %p75, %p76
      %p78 = scmp.ne.s32.totalorder %s67, %s68
      %p79 = scmp.eq.s32.totalorder %s19, 0
      %p80 = por %p78, %p79
      %p81 = scmp.ne.s32.totalorder %s67, %s68
      %p82 = scmp.eq.s32.totalorder %s20, 3
      %p83 = por %p81, %p82
      %p85 = scmp.ne.s32.totalorder %s68, %s84
      %p86 = scmp.eq.s32.totalorder %s20, 0
      %p87 = por %p85, %p86
      %s88 = ssub.s32 %s21, %s33
      %p89 = scmp.eq.s32.totalorder %s88, 0
      %s91 = sadd.s32 %s90, 1
      %s92 = scalar_select %p89, %s90, %s91
      %p95 = pneg %p89
      %p96 = scmp.eq.s32.totalorder %s14, 3
      %p97 = por %p95, %p96
      %p98 = scmp.ne.s32.totalorder %s90, %s93
      %p99 = scmp.eq.s32.totalorder %s14, 0
      %p100 = por %p98, %p99
      %p101 = scmp.ne.s32.totalorder %s90, %s93
      %p102 = scmp.eq.s32.totalorder %s19, 3
      %p103 = por %p101, %p102
      %p104 = scmp.ne.s32.totalorder %s93, %s94
      %p105 = scmp.eq.s32.totalorder %s19, 0
      %p106 = por %p104, %p105
      %p107 = scmp.ne.s32.totalorder %s93, %s94
      %p108 = scmp.eq.s32.totalorder %s20, 3
      %p109 = por %p107, %p108
      %p111 = scmp.ne.s32.totalorder %s94, %s110
      %p112 = scmp.eq.s32.totalorder %s20, 0
      %p113 = por %p111, %p112
      %s114 = ssub.s32 %s21, %s33
      %p115 = scmp.eq.s32.totalorder %s114, 0
      %s117 = sadd.s32 %s116, 1
      %s118 = scalar_select %p115, %s116, %s117
      %p121 = pneg %p115
      %p122 = scmp.eq.s32.totalorder %s14, 3
      %p123 = por %p121, %p122
      %p124 = scmp.ne.s32.totalorder %s116, %s119
      %p125 = scmp.eq.s32.totalorder %s14, 0
      %p126 = por %p124, %p125
      %p127 = scmp.ne.s32.totalorder %s116, %s119
      %p128 = scmp.eq.s32.totalorder %s19, 3
      %p129 = por %p127, %p128
      %p130 = scmp.ne.s32.totalorder %s119, %s120
      %p131 = scmp.eq.s32.totalorder %s19, 0
      %p132 = por %p130, %p131
      %p133 = scmp.ne.s32.totalorder %s119, %s120
      %p134 = scmp.eq.s32.totalorder %s20, 3
      %p135 = por %p133, %p134
      %p137 = scmp.ne.s32.totalorder %s120, %s136
      %p138 = scmp.eq.s32.totalorder %s20, 0
      %p139 = por %p137, %p138
      %s141 = sadd.s32 %s140, 1
      %p144 = scmp.eq.s32.totalorder %s14, 3
      %p145 = scmp.ne.s32.totalorder %s140, %s142
      %p146 = scmp.eq.s32.totalorder %s14, 0
      %p147 = por %p145, %p146
      %p148 = scmp.ne.s32.totalorder %s140, %s142
      %p149 = scmp.eq.s32.totalorder %s19, 3
      %p150 = por %p148, %p149
      %p151 = scmp.ne.s32.totalorder %s142, %s143
      %p152 = scmp.eq.s32.totalorder %s19, 0
      %p153 = por %p151, %p152
      %p154 = scmp.ne.s32.totalorder %s142, %s143
      %p155 = scmp.eq.s32.totalorder %s20, 3
      %p156 = por %p154, %p155
      %p158 = scmp.ne.s32.totalorder %s143, %s157
      %p159 = scmp.eq.s32.totalorder %s20, 0
      %p160 = por %p158, %p159
      %s162 = sadd.s32 %s161, 1
      %p165 = scmp.eq.s32.totalorder %s14, 3
      %p166 = scmp.ne.s32.totalorder %s161, %s163
      %p167 = scmp.eq.s32.totalorder %s14, 0
      %p168 = por %p166, %p167
      %p169 = scmp.ne.s32.totalorder %s161, %s163
      %p170 = scmp.eq.s32.totalorder %s19, 3
      %p171 = por %p169, %p170
      %p172 = scmp.ne.s32.totalorder %s163, %s164
      %p173 = scmp.eq.s32.totalorder %s19, 0
      %p174 = por %p172, %p173
      %p175 = scmp.ne.s32.totalorder %s163, %s164
      %p176 = scmp.eq.s32.totalorder %s20, 3
      %p177 = por %p175, %p176
      %p179 = scmp.ne.s32.totalorder %s164, %s178
      %p180 = scmp.eq.s32.totalorder %s20, 0
      %p181 = por %p179, %p180
      %s182 = ssub.s32 %s21, %s33
      %p183 = scmp.eq.s32.totalorder %s182, 0
      %s185 = sadd.s32 %s184, 1
      %s186 = scalar_select %p183, %s184, %s185
      %p189 = pneg %p183
      %p190 = scmp.eq.s32.totalorder %s14, 3
      %p191 = por %p189, %p190
      %p192 = scmp.ne.s32.totalorder %s184, %s187
      %p193 = scmp.eq.s32.totalorder %s14, 0
      %p194 = por %p192, %p193
      %p195 = scmp.ne.s32.totalorder %s184, %s187
      %p196 = scmp.eq.s32.totalorder %s19, 3
      %p197 = por %p195, %p196
      %p198 = scmp.ne.s32.totalorder %s187, %s188
      %p199 = scmp.eq.s32.totalorder %s19, 0
      %p200 = por %p198, %p199
      %p201 = scmp.ne.s32.totalorder %s187, %s188
      %p202 = scmp.eq.s32.totalorder %s20, 3
      %p203 = por %p201, %p202
      %p205 = scmp.ne.s32.totalorder %s188, %s204
      %p206 = scmp.eq.s32.totalorder %s20, 0
      %p207 = por %p205, %p206
      %s208 = ssub.s32 %s21, %s33
      %p209 = scmp.eq.s32.totalorder %s208, 0
      %s211 = sadd.s32 %s210, 1
      %s212 = scalar_select %p209, %s210, %s211
      %p215 = pneg %p209
      %p216 = scmp.eq.s32.totalorder %s14, 3
      %p217 = por %p215, %p216
      %p218 = scmp.ne.s32.totalorder %s210, %s213
      %p219 = scmp.eq.s32.totalorder %s14, 0
      %p220 = por %p218, %p219
      %p221 = scmp.ne.s32.totalorder %s210, %s213
      %p222 = scmp.eq.s32.totalorder %s19, 3
      %p223 = por %p221, %p222
      %p224 = scmp.ne.s32.totalorder %s213, %s214
      %p225 = scmp.eq.s32.totalorder %s19, 0
      %p226 = por %p224, %p225
      %p227 = scmp.ne.s32.totalorder %s213, %s214
      %p228 = scmp.eq.s32.totalorder %s20, 3
      %p229 = por %p227, %p228
      %p231 = scmp.ne.s32.totalorder %s214, %s230
      %p232 = scmp.eq.s32.totalorder %s20, 0
      %p233 = por %p231, %p232
      %p234 = scmp.le.s32.totalorder 1, %s14
      %p235 = scmp.lt.s32.totalorder %s14, 5
      %p236 = pnand %p234, %p235
      %p237 = pneg %p236
      // Predicated region
      $region9: #{ngcf_forward.2} parent=5 // pred_check
        _
      $region10: #{ngcf_forward.2} parent=5 // pred_check_branch
        %239 = sbr.rel (%p236) target = $region12
      $region11: #{ngcf_forward.2} parent=5 // pred_region
        %s240 = ssub.s32 %s14, 1
        // Predicated region
        $region13: #{ngcf_forward.2} parent=11 // pred_check
          %p241 = pneg %p153
        $region14: #{ngcf_forward.2} parent=11 // pred_check_branch
          %243 = sbr.rel (%p241) target = $region16
        $region15: #{ngcf_forward.2} parent=11 // pred_region
          _
        $region16: #{ngcf_forward.2} parent=11 // pred_fallthru
          _
        // Predicated region
        $region17: #{ngcf_forward.2} parent=11 // pred_check
          %p244 = pneg %p174
        $region18: #{ngcf_forward.2} parent=11 // pred_check_branch
          %246 = sbr.rel (%p244) target = $region20
        $region19: #{ngcf_forward.2} parent=11 // pred_region
          _
        $region20: #{ngcf_forward.2} parent=11 // pred_fallthru
          _
      $region12: #{ngcf_forward.2} parent=5 // pred_fallthru
        _
      %p247 = scmp.lt.s32.totalorder %s14, 4
      // Predicated region
      $region21: #{ngcf_forward.2} parent=5 // pred_check
        %p248 = pneg %p247
      $region22: #{ngcf_forward.2} parent=5 // pred_check_branch
        %250 = sbr.rel (%p248) target = $region24
      $region23: #{ngcf_forward.2} parent=5 // pred_region
        // Predicated region
        $region25: #{ngcf_forward.2} parent=23 // pred_check
          %p251 = pneg %p48
        $region26: #{ngcf_forward.2} parent=23 // pred_check_branch
          %253 = sbr.rel (%p251) target = $region28
        $region27: #{ngcf_forward.2} parent=23 // pred_region
          %s254 = sand.u32 %s38, 1
          %s255 = sand.u32 %s38, 1
          %s256 = smul.addr %s255, 128
          %s257 = scalar_lea.vmem [#allocation3], %s256
          %s258 = smul.u32 16, %s21
          %s259 = smul.addr %s258, 2
          %s260 = sadd.s32 %s22, %s259
          %s261 = smul.addr %s260, 8
          %s262 = scalar_lea.vmem %s0, %s261
          // Predicated region
          $region29: #{ngcf_forward.2} parent=27 // pred_check
            _
          $region30: #{ngcf_forward.2} parent=27 // pred_check_branch
            %264 = sbr.rel (0) target = $region32
          $region31: #{ngcf_forward.2} parent=27 // pred_region
            // Predicated region
            $region33: #{ngcf_forward.2} parent=31 // pred_check
              _
            $region34: #{ngcf_forward.2} parent=31 // pred_check_branch
              %266 = sbr.rel (0) target = $region36
            $region35: #{ngcf_forward.2} parent=31 // pred_region
              // Predicated region
              $region48: #{ngcf_forward.2} parent=35 // pred_check
                _
              $region49: #{ngcf_forward.2} parent=35 // pred_check_branch
                %312 = sbr.rel (0) target = $region51
              $region50: #{ngcf_forward.2} parent=35 // pred_region
                loop: start=0, step=1, limit=1
                $region52: #{ngcf_forward.2} parent=50 // loop_pre_header
                  _
                $region53: #{ngcf_forward.2} parent=50 // loop_header
                  %s314 = sphi 0, %s318
                  %p315 = scmp.ge.s32.totalorder %s314, 1
                  %s319 = sphi %s262, %s262
                  %s320 = sphi %s257, %s257
                $region54: #{ngcf_forward.2} parent=50 // loop_header_branch
                  %317 = sbr.rel (%p315) target = $region58
                $region55: #{ngcf_forward.2} parent=50 // loop_body
                  %v321 = vld [vmem:[%s319] sm:$0xff]
                  %322 = vst [vmem:[%s320] sm:$0xff] %v321
                  %v323 = vld [vmem:[%s319 + $0x10] sm:$0xff]
                  %324 = vst [vmem:[%s320 + $0x8] sm:$0xff] %v323
                  %v325 = vld [vmem:[%s319 + $0x20] sm:$0xff]
                  %326 = vst [vmem:[%s320 + $0x10] sm:$0xff] %v325
                  %v327 = vld [vmem:[%s319 + $0x30] sm:$0xff]
                  %328 = vst [vmem:[%s320 + $0x18] sm:$0xff] %v327
                  %v329 = vld [vmem:[%s319 + $0x40] sm:$0xff]
                  %330 = vst [vmem:[%s320 + $0x20] sm:$0xff] %v329
                  %v331 = vld [vmem:[%s319 + $0x50] sm:$0xff]
                  %332 = vst [vmem:[%s320 + $0x28] sm:$0xff] %v331
                  %v333 = vld [vmem:[%s319 + $0x60] sm:$0xff]
                  %334 = vst [vmem:[%s320 + $0x30] sm:$0xff] %v333
                  %v335 = vld [vmem:[%s319 + $0x70] sm:$0xff]
                  %336 = vst [vmem:[%s320 + $0x38] sm:$0xff] %v335
                  %v337 = vld [vmem:[%s319 + $0x80] sm:$0xff]
                  %338 = vst [vmem:[%s320 + $0x40] sm:$0xff] %v337
                  %v339 = vld [vmem:[%s319 + $0x90] sm:$0xff]
                  %340 = vst [vmem:[%s320 + $0x48] sm:$0xff] %v339
                  %v341 = vld [vmem:[%s319 + $0xa0] sm:$0xff]
                  %342 = vst [vmem:[%s320 + $0x50] sm:$0xff] %v341
                  %v343 = vld [vmem:[%s319 + $0xb0] sm:$0xff]
                  %344 = vst [vmem:[%s320 + $0x58] sm:$0xff] %v343
                  %v345 = vld [vmem:[%s319 + $0xc0] sm:$0xff]
                  %346 = vst [vmem:[%s320 + $0x60] sm:$0xff] %v345
                  %v347 = vld [vmem:[%s319 + $0xd0] sm:$0xff]
                  %348 = vst [vmem:[%s320 + $0x68] sm:$0xff] %v347
                  %v349 = vld [vmem:[%s319 + $0xe0] sm:$0xff]
                  %350 = vst [vmem:[%s320 + $0x70] sm:$0xff] %v349
                  %v351 = vld [vmem:[%s319 + $0xf0] sm:$0xff]
                  %352 = vst [vmem:[%s320 + $0x78] sm:$0xff] %v351
                $region56: #{ngcf_forward.2} parent=50 // loop_footer
                  %s318 = sadd.s32 1, %s314
                $region57: #{ngcf_forward.2} parent=50 // loop_footer_branch
                  %313 = sbr.rel target = $region53
                $region58: #{ngcf_forward.2} parent=50 // loop_exit
                  _
              $region51: #{ngcf_forward.2} parent=35 // pred_fallthru
                _
              // Predicated region
              $region59: #{ngcf_forward.2} parent=35 // pred_check
                _
              $region60: #{ngcf_forward.2} parent=35 // pred_check_branch
                %354 = sbr.rel target = $region62
              $region61: #{ngcf_forward.2} parent=35 // pred_region
                _
              $region62: #{ngcf_forward.2} parent=35 // pred_fallthru
                _
            $region36: #{ngcf_forward.2} parent=31 // pred_fallthru
              _
            // Predicated region
            $region37: #{ngcf_forward.2} parent=31 // pred_check
              _
            $region38: #{ngcf_forward.2} parent=31 // pred_check_branch
              %268 = sbr.rel target = $region40
            $region39: #{ngcf_forward.2} parent=31 // pred_region
              %s270 = ssub.s32 256, 1
              loop: start=0, step=1, limit=1
              $region41: #{ngcf_forward.2} parent=39 // loop_pre_header
                _
              $region42: #{ngcf_forward.2} parent=39 // loop_header
                %s272 = sphi 0, %s276
                %p273 = scmp.ge.s32.totalorder %s272, 1
                %s277 = sphi %s262, %s262
                %s278 = sphi %s257, %s257
              $region43: #{ngcf_forward.2} parent=39 // loop_header_branch
                %275 = sbr.rel (%p273) target = $region47
              $region44: #{ngcf_forward.2} parent=39 // loop_body
                %v279 = vld [vmem:[%s277] sm:%s270]
                %280 = vst [vmem:[%s278] sm:%s270] %v279
                %v281 = vld [vmem:[%s277 + $0x10] sm:%s270]
                %282 = vst [vmem:[%s278 + $0x8] sm:%s270] %v281
                %v283 = vld [vmem:[%s277 + $0x20] sm:%s270]
                %284 = vst [vmem:[%s278 + $0x10] sm:%s270] %v283
                %v285 = vld [vmem:[%s277 + $0x30] sm:%s270]
                %286 = vst [vmem:[%s278 + $0x18] sm:%s270] %v285
                %v287 = vld [vmem:[%s277 + $0x40] sm:%s270]
                %288 = vst [vmem:[%s278 + $0x20] sm:%s270] %v287
                %v289 = vld [vmem:[%s277 + $0x50] sm:%s270]
                %290 = vst [vmem:[%s278 + $0x28] sm:%s270] %v289
                %v291 = vld [vmem:[%s277 + $0x60] sm:%s270]
                %292 = vst [vmem:[%s278 + $0x30] sm:%s270] %v291
                %v293 = vld [vmem:[%s277 + $0x70] sm:%s270]
                %294 = vst [vmem:[%s278 + $0x38] sm:%s270] %v293
                %v295 = vld [vmem:[%s277 + $0x80] sm:%s270]
                %296 = vst [vmem:[%s278 + $0x40] sm:%s270] %v295
                %v297 = vld [vmem:[%s277 + $0x90] sm:%s270]
                %298 = vst [vmem:[%s278 + $0x48] sm:%s270] %v297
                %v299 = vld [vmem:[%s277 + $0xa0] sm:%s270]
                %300 = vst [vmem:[%s278 + $0x50] sm:%s270] %v299
                %v301 = vld [vmem:[%s277 + $0xb0] sm:%s270]
                %302 = vst [vmem:[%s278 + $0x58] sm:%s270] %v301
                %v303 = vld [vmem:[%s277 + $0xc0] sm:%s270]
                %304 = vst [vmem:[%s278 + $0x60] sm:%s270] %v303
                %v305 = vld [vmem:[%s277 + $0xd0] sm:%s270]
                %306 = vst [vmem:[%s278 + $0x68] sm:%s270] %v305
                %v307 = vld [vmem:[%s277 + $0xe0] sm:%s270]
                %308 = vst [vmem:[%s278 + $0x70] sm:%s270] %v307
                %v309 = vld [vmem:[%s277 + $0xf0] sm:%s270]
                %310 = vst [vmem:[%s278 + $0x78] sm:%s270] %v309
              $region45: #{ngcf_forward.2} parent=39 // loop_footer
                %s276 = sadd.s32 1, %s272
              $region46: #{ngcf_forward.2} parent=39 // loop_footer_branch
                %271 = sbr.rel target = $region42
              $region47: #{ngcf_forward.2} parent=39 // loop_exit
                _
            $region40: #{ngcf_forward.2} parent=31 // pred_fallthru
              _
          $region32: #{ngcf_forward.2} parent=27 // pred_fallthru
            _
          %355 = vnop
        $region28: #{ngcf_forward.2} parent=23 // pred_fallthru
          _
        // Predicated region
        $region63: #{ngcf_forward.2} parent=23 // pred_check
          %p356 = pneg %p74
        $region64: #{ngcf_forward.2} parent=23 // pred_check_branch
          %358 = sbr.rel (%p356) target = $region66
        $region65: #{ngcf_forward.2} parent=23 // pred_region
          %s359 = smul.u32 16, %s22
          %p360 = scmp.lt.s32.totalorder %s359, 31
          %s361 = scalar_select %p360, %s359, 31
          %s362 = smul.addr %s361, 8
          %s363 = scalar_lea.vmem %s1, %s362
          %s364 = smul.u32 16, %s22
        $region66: #{ngcf_forward.2} parent=23 // pred_fallthru
          _
        // Predicated region
        $region67: #{ngcf_forward.2} parent=23 // pred_check
          %p365 = pneg %p100
        $region68: #{ngcf_forward.2} parent=23 // pred_check_branch
          %367 = sbr.rel (%p365) target = $region70
        $region69: #{ngcf_forward.2} parent=23 // pred_region
          %s368 = smul.u32 16, %s21
          %p369 = scmp.lt.s32.totalorder %s368, 31
          %s370 = scalar_select %p369, %s368, 31
          %s371 = smul.addr %s370, 8
          %s372 = scalar_lea.vmem %s2, %s371
          %s373 = smul.u32 16, %s21
        $region70: #{ngcf_forward.2} parent=23 // pred_fallthru
          _
        // Predicated region
        $region71: #{ngcf_forward.2} parent=23 // pred_check
          %p374 = pneg %p126
        $region72: #{ngcf_forward.2} parent=23 // pred_check_branch
          %376 = sbr.rel (%p374) target = $region74
        $region73: #{ngcf_forward.2} parent=23 // pred_region
          %s377 = smul.u32 16, %s21
          %p378 = scmp.lt.s32.totalorder %s377, 31
          %s379 = scalar_select %p378, %s377, 31
          %s380 = smul.addr %s379, 8
          %s381 = scalar_lea.vmem %s3, %s380
          %s382 = smul.u32 16, %s21
        $region74: #{ngcf_forward.2} parent=23 // pred_fallthru
          _
      $region24: #{ngcf_forward.2} parent=5 // pred_fallthru
        _
      %p383 = scmp.le.s32.totalorder 1, %s14
      %p384 = scmp.lt.s32.totalorder %s14, 5
      %p385 = pnand %p383, %p384
      %p386 = pneg %p385
      // Predicated region
      $region75: #{ngcf_forward.2} parent=5 // pred_check
        _
      $region76: #{ngcf_forward.2} parent=5 // pred_check_branch
        %388 = sbr.rel (%p385) target = $region78
      $region77: #{ngcf_forward.2} parent=5 // pred_region
        %s389 = ssub.s32 %s14, 1
        %s390 = sand.u32 %s41, 1
        %s391 = sand.u32 %s41, 1
        %s392 = smul.addr %s391, 128
        %s393 = scalar_lea.vmem [#allocation3], %s392
        // Predicated region
        $region79: #{ngcf_forward.2} parent=77 // pred_check
          %p394 = pneg %p54
        $region80: #{ngcf_forward.2} parent=77 // pred_check_branch
          %396 = sbr.rel (%p394) target = $region82
        $region81: #{ngcf_forward.2} parent=77 // pred_region
          _
        $region82: #{ngcf_forward.2} parent=77 // pred_fallthru
          _
        %s397 = sand.u32 %s41, 1
        %s398 = sand.u32 %s41, 1
        %s399 = smul.addr %s398, 128
        %s400 = scalar_lea.vmem [#allocation3], %s399
        %p401 = pneg %p54
        %p402 = pneg %p51
        %s403 = smul.u32 16, %s24
        %p404 = scmp.lt.s32.totalorder %s403, 31
        %s405 = scalar_select %p404, %s403, 31
        %s406 = smul.addr %s405, 8
        %s407 = scalar_lea.vmem %s1, %s406
        %p408 = pneg %p80
        %p409 = pneg %p77
        %s410 = smul.u32 16, %s23
        %p411 = scmp.lt.s32.totalorder %s410, 31
        %s412 = scalar_select %p411, %s410, 31
        %s413 = smul.addr %s412, 8
        %s414 = scalar_lea.vmem %s2, %s413
        %p415 = pneg %p106
        %p416 = pneg %p103
        %s417 = smul.u32 16, %s23
        %p418 = scmp.lt.s32.totalorder %s417, 31
        %s419 = scalar_select %p418, %s417, 31
        %s420 = smul.addr %s419, 8
        %s421 = scalar_lea.vmem %s3, %s420
        %p422 = pneg %p132
        %p423 = pneg %p129
        %p424 = pneg %p153
        %p425 = pneg %p150
        %p426 = pneg %p174
        %p427 = pneg %p171
        %p428 = pneg %p200
        %p429 = pneg %p197
        %s430 = smul.u32 16, %s23
        %p431 = scmp.lt.s32.totalorder %s430, 31
        %s432 = scalar_select %p431, %s430, 31
        %s433 = smul.addr %s432, 8
        %s434 = scalar_lea.vmem %s6, %s433
        %p435 = pneg %p226
        %p436 = pneg %p223
        %s437 = smul.u32 16, %s23
        %p438 = scmp.lt.s32.totalorder %s437, 31
        %s439 = scalar_select %p438, %s437, 31
        %s440 = smul.addr %s439, 8
        %s441 = scalar_lea.vmem %s7, %s440
        %s442 = smul.u32 16, %s23
        %s443 = smul.u32 16, %s24
        %p444 = scmp.lt.s32.totalorder %s443, 31
        %s445 = scalar_select %p444, %s443, 31
        %s446 = smul.addr %s445, 8
        %s447 = scalar_lea.vmem %s1, %s446
        %s448 = smul.u32 16, %s24
        %s449 = smul.u32 16, %s23
        %p450 = scmp.lt.s32.totalorder %s449, 31
        %s451 = scalar_select %p450, %s449, 31
        %s452 = smul.addr %s451, 8
        %s453 = scalar_lea.vmem %s2, %s452
        %s454 = smul.u32 16, %s23
        %s455 = smul.u32 16, %s23
        %p456 = scmp.lt.s32.totalorder %s455, 31
        %s457 = scalar_select %p456, %s455, 31
        %s458 = smul.addr %s457, 8
        %s459 = scalar_lea.vmem %s3, %s458
        %s460 = smul.u32 16, %s23
        %s461 = smul.u32 16, %s23
        %p462 = scmp.lt.s32.totalorder %s461, 31
        %s463 = scalar_select %p462, %s461, 31
        %s464 = smul.addr %s463, 8
        %s465 = scalar_lea.vmem %s6, %s464
        %s466 = smul.u32 16, %s23
        %s467 = smul.u32 16, %s23
        %p468 = scmp.lt.s32.totalorder %s467, 31
        %s469 = scalar_select %p468, %s467, 31
        %s470 = smul.addr %s469, 8
        %s471 = scalar_lea.vmem %s7, %s470
        %s472 = smul.u32 16, %s23
        %p473 = scmp.eq.s32.totalorder %s24, 0
        // Predicated region
        $region83: #{ngcf_forward.2} parent=77 // pred_check
          %p474 = pneg %p473
        $region84: #{ngcf_forward.2} parent=77 // pred_check_branch
          %476 = sbr.rel (%p474) target = $region86
        $region85: #{ngcf_forward.2} parent=77 // pred_region
          %vm477 = vcmask 261120
          %478 = vst.msk [vmem:[#allocation2] sm:$0xff] %vm477, 0.0
          %479 = vst.msk [vmem:[#allocation2 + $0x8] sm:$0xff] %vm477, 0.0
          %480 = vst.msk [vmem:[#allocation2 + $0x10] sm:$0xff] %vm477, 0.0
          %481 = vst.msk [vmem:[#allocation2 + $0x18] sm:$0xff] %vm477, 0.0
          %482 = vst.msk [vmem:[#allocation2 + $0x20] sm:$0xff] %vm477, 0.0
          %483 = vst.msk [vmem:[#allocation2 + $0x28] sm:$0xff] %vm477, 0.0
          %484 = vst.msk [vmem:[#allocation2 + $0x30] sm:$0xff] %vm477, 0.0
          %485 = vst.msk [vmem:[#allocation2 + $0x38] sm:$0xff] %vm477, 0.0
          %486 = vst.msk [vmem:[#allocation2 + $0x40] sm:$0xff] %vm477, 0.0
          %487 = vst.msk [vmem:[#allocation2 + $0x48] sm:$0xff] %vm477, 0.0
          %488 = vst.msk [vmem:[#allocation2 + $0x50] sm:$0xff] %vm477, 0.0
          %489 = vst.msk [vmem:[#allocation2 + $0x58] sm:$0xff] %vm477, 0.0
          %490 = vst.msk [vmem:[#allocation2 + $0x60] sm:$0xff] %vm477, 0.0
          %491 = vst.msk [vmem:[#allocation2 + $0x68] sm:$0xff] %vm477, 0.0
          %492 = vst.msk [vmem:[#allocation2 + $0x70] sm:$0xff] %vm477, 0.0
          %493 = vst.msk [vmem:[#allocation2 + $0x78] sm:$0xff] %vm477, 0.0
        $region86: #{ngcf_forward.2} parent=77 // pred_fallthru
          _
        %v494 = vld [vmem:[#allocation2] sm:$0xff]
        %v495 = vld [vmem:[#allocation2 + $0x8] sm:$0xff]
        %v496 = vld [vmem:[#allocation2 + $0x10] sm:$0xff]
        %v497 = vld [vmem:[#allocation2 + $0x18] sm:$0xff]
        %v498 = vld [vmem:[#allocation2 + $0x20] sm:$0xff]
        %v499 = vld [vmem:[#allocation2 + $0x28] sm:$0xff]
        %v500 = vld [vmem:[#allocation2 + $0x30] sm:$0xff]
        %v501 = vld [vmem:[#allocation2 + $0x38] sm:$0xff]
        %v502 = vld [vmem:[#allocation2 + $0x40] sm:$0xff]
        %v503 = vld [vmem:[#allocation2 + $0x48] sm:$0xff]
        %v504 = vld [vmem:[#allocation2 + $0x50] sm:$0xff]
        %v505 = vld [vmem:[#allocation2 + $0x58] sm:$0xff]
        %v506 = vld [vmem:[#allocation2 + $0x60] sm:$0xff]
        %v507 = vld [vmem:[#allocation2 + $0x68] sm:$0xff]
        %v508 = vld [vmem:[#allocation2 + $0x70] sm:$0xff]
        %v509 = vld [vmem:[#allocation2 + $0x78] sm:$0xff]
        %v510 = vld [vmem:[%s393] sm:$0xff]
        %v511 = vld [vmem:[%s393 + $0x8] sm:$0xff]
        %v512 = vld [vmem:[%s393 + $0x10] sm:$0xff]
        %v513 = vld [vmem:[%s393 + $0x18] sm:$0xff]
        %v514 = vld [vmem:[%s393 + $0x20] sm:$0xff]
        %v515 = vld [vmem:[%s393 + $0x28] sm:$0xff]
        %v516 = vld [vmem:[%s393 + $0x30] sm:$0xff]
        %v517 = vld [vmem:[%s393 + $0x38] sm:$0xff]
        %v518 = vld [vmem:[%s393 + $0x40] sm:$0xff]
        %v519 = vld [vmem:[%s393 + $0x48] sm:$0xff]
        %v520 = vld [vmem:[%s393 + $0x50] sm:$0xff]
        %v521 = vld [vmem:[%s393 + $0x58] sm:$0xff]
        %v522 = vld [vmem:[%s393 + $0x60] sm:$0xff]
        %v523 = vld [vmem:[%s393 + $0x68] sm:$0xff]
        %v524 = vld [vmem:[%s393 + $0x70] sm:$0xff]
        %v525 = vld [vmem:[%s393 + $0x78] sm:$0xff]
        %v526 = vld [vmem:[%s447] sm:$0xff]
        %v527 = vld [vmem:[%s447 + $0x8] sm:$0xff]
        %v528 = vld [vmem:[%s447 + $0x10] sm:$0xff]
        %v529 = vld [vmem:[%s447 + $0x18] sm:$0xff]
        %v530 = vld [vmem:[%s447 + $0x20] sm:$0xff]
        %v531 = vld [vmem:[%s447 + $0x28] sm:$0xff]
        %v532 = vld [vmem:[%s447 + $0x30] sm:$0xff]
        %v533 = vld [vmem:[%s447 + $0x38] sm:$0xff]
        %v534 = vld [vmem:[%s447 + $0x40] sm:$0xff]
        %v535 = vld [vmem:[%s447 + $0x48] sm:$0xff]
        %v536 = vld [vmem:[%s447 + $0x50] sm:$0xff]
        %v537 = vld [vmem:[%s447 + $0x58] sm:$0xff]
        %v538 = vld [vmem:[%s447 + $0x60] sm:$0xff]
        %v539 = vld [vmem:[%s447 + $0x68] sm:$0xff]
        %v540 = vld [vmem:[%s447 + $0x70] sm:$0xff]
        %v541 = vld [vmem:[%s447 + $0x78] sm:$0xff]
        %542 = vmatprep.subr.mxu0 0.0
        %543 = vmatpush1.msra.mxu0 %v541
        %544 = vmatprep.subr.mxu0 0.0
        %545 = vmatpush1.msra.mxu0 %v540
        %546 = vmatprep.subr.mxu0 0.0
        %547 = vmatpush1.msra.mxu0 %v539
        %548 = vmatprep.subr.mxu0 0.0
        %549 = vmatpush1.msra.mxu0 %v538
        %550 = vmatprep.subr.mxu0 0.0
        %551 = vmatpush1.msra.mxu0 %v537
        %552 = vmatprep.subr.mxu0 0.0
        %553 = vmatpush1.msra.mxu0 %v536
        %554 = vmatprep.subr.mxu0 0.0
        %555 = vmatpush1.msra.mxu0 %v535
        %556 = vmatprep.subr.mxu0 0.0
        %557 = vmatpush1.msra.mxu0 %v534
        %558 = vmatprep.subr.mxu0 0.0
        %559 = vmatpush1.msra.mxu0 %v533
        %560 = vmatprep.subr.mxu0 0.0
        %561 = vmatpush1.msra.mxu0 %v532
        %562 = vmatprep.subr.mxu0 0.0
        %563 = vmatpush1.msra.mxu0 %v531
        %564 = vmatprep.subr.mxu0 0.0
        %565 = vmatpush1.msra.mxu0 %v530
        %566 = vmatprep.subr.mxu0 0.0
        %567 = vmatpush1.msra.mxu0 %v529
        %568 = vmatprep.subr.mxu0 0.0
        %569 = vmatpush1.msra.mxu0 %v528
        %570 = vmatprep.subr.mxu0 0.0
        %571 = vmatpush1.msra.mxu0 %v527
        %572 = vmatprep.subr.mxu0 0.0
        %573 = vmatpush1.msra.mxu0 %v526
        %574 = vmatprep.subr.mxu0 0.0
        %575 = vmatpush2.msra.mxu0 0.0
        %576 = vmatprep.subr.mxu0 0.0
        %577 = vmatpush2.msra.mxu0 0.0
        %578 = vmatprep.subr.mxu0 0.0
        %579 = vmatpush2.msra.mxu0 0.0
        %580 = vmatprep.subr.mxu0 0.0
        %581 = vmatpush2.msra.mxu0 0.0
        %582 = vmatprep.subr.mxu0 0.0
        %583 = vmatpush2.msra.mxu0 0.0
        %584 = vmatprep.subr.mxu0 0.0
        %585 = vmatpush2.msra.mxu0 0.0
        %586 = vmatprep.subr.mxu0 0.0
        %587 = vmatpush2.msra.mxu0 0.0
        %588 = vmatprep.subr.mxu0 0.0
        %589 = vmatpush2.msra.mxu0 0.0
        %590 = vmatprep.subr.mxu0 0.0
        %591 = vmatpush2.msra.mxu0 0.0
        %592 = vmatprep.subr.mxu0 0.0
        %593 = vmatpush2.msra.mxu0 0.0
        %594 = vmatprep.subr.mxu0 0.0
        %595 = vmatpush2.msra.mxu0 0.0
        %596 = vmatprep.subr.mxu0 0.0
        %597 = vmatpush2.msra.mxu0 0.0
        %598 = vmatprep.subr.mxu0 0.0
        %599 = vmatpush2.msra.mxu0 0.0
        %600 = vmatprep.subr.mxu0 0.0
        %601 = vmatpush2.msra.mxu0 0.0
        %602 = vmatprep.subr.mxu0 0.0
        %603 = vmatpush2.msra.mxu0 0.0
        %604 = vmatprep.subr.mxu0 0.0
        %605 = vmatpush2.msra.mxu0 0.0
        %606 = vmatprep.mubr.f32.mxu0 0.0
        %607 = vmatmul.mubr.f32.gmra.mxu0 %v510
        %v608 = vpop.f32.mrf.mxu0
        %v609 = vadd.f32 0.0, %v608
        %v610 = vpop.f32.mrf.mxu0
        %611 = vmatprep.mubr.f32.mxu0 0.0
        %612 = vmatmul.mubr.f32.gmra.mxu0 %v511
        %v613 = vpop.f32.mrf.mxu0
        %v614 = vadd.f32 0.0, %v613
        %v615 = vpop.f32.mrf.mxu0
        %616 = vmatprep.mubr.f32.mxu0 0.0
        %617 = vmatmul.mubr.f32.gmra.mxu0 %v512
        %v618 = vpop.f32.mrf.mxu0
        %v619 = vadd.f32 0.0, %v618
        %v620 = vpop.f32.mrf.mxu0
        %621 = vmatprep.mubr.f32.mxu0 0.0
        %622 = vmatmul.mubr.f32.gmra.mxu0 %v513
        %v623 = vpop.f32.mrf.mxu0
        %v624 = vadd.f32 0.0, %v623
        %v625 = vpop.f32.mrf.mxu0
        %626 = vmatprep.mubr.f32.mxu0 0.0
        %627 = vmatmul.mubr.f32.gmra.mxu0 %v514
        %v628 = vpop.f32.mrf.mxu0
        %v629 = vadd.f32 0.0, %v628
        %v630 = vpop.f32.mrf.mxu0
        %631 = vmatprep.mubr.f32.mxu0 0.0
        %632 = vmatmul.mubr.f32.gmra.mxu0 %v515
        %v633 = vpop.f32.mrf.mxu0
        %v634 = vadd.f32 0.0, %v633
        %v635 = vpop.f32.mrf.mxu0
        %636 = vmatprep.mubr.f32.mxu0 0.0
        %637 = vmatmul.mubr.f32.gmra.mxu0 %v516
        %v638 = vpop.f32.mrf.mxu0
        %v639 = vadd.f32 0.0, %v638
        %v640 = vpop.f32.mrf.mxu0
        %641 = vmatprep.mubr.f32.mxu0 0.0
        %642 = vmatmul.mubr.f32.gmra.mxu0 %v517
        %v643 = vpop.f32.mrf.mxu0
        %v644 = vadd.f32 0.0, %v643
        %v645 = vpop.f32.mrf.mxu0
        %646 = vmatprep.mubr.f32.mxu0 0.0
        %647 = vmatmul.mubr.f32.gmra.mxu0 %v518
        %v648 = vpop.f32.mrf.mxu0
        %v649 = vadd.f32 0.0, %v648
        %v650 = vpop.f32.mrf.mxu0
        %651 = vmatprep.mubr.f32.mxu0 0.0
        %652 = vmatmul.mubr.f32.gmra.mxu0 %v519
        %v653 = vpop.f32.mrf.mxu0
        %v654 = vadd.f32 0.0, %v653
        %v655 = vpop.f32.mrf.mxu0
        %656 = vmatprep.mubr.f32.mxu0 0.0
        %657 = vmatmul.mubr.f32.gmra.mxu0 %v520
        %v658 = vpop.f32.mrf.mxu0
        %v659 = vadd.f32 0.0, %v658
        %v660 = vpop.f32.mrf.mxu0
        %661 = vmatprep.mubr.f32.mxu0 0.0
        %662 = vmatmul.mubr.f32.gmra.mxu0 %v521
        %v663 = vpop.f32.mrf.mxu0
        %v664 = vadd.f32 0.0, %v663
        %v665 = vpop.f32.mrf.mxu0
        %666 = vmatprep.mubr.f32.mxu0 0.0
        %667 = vmatmul.mubr.f32.gmra.mxu0 %v522
        %v668 = vpop.f32.mrf.mxu0
        %v669 = vadd.f32 0.0, %v668
        %v670 = vpop.f32.mrf.mxu0
        %671 = vmatprep.mubr.f32.mxu0 0.0
        %672 = vmatmul.mubr.f32.gmra.mxu0 %v523
        %v673 = vpop.f32.mrf.mxu0
        %v674 = vadd.f32 0.0, %v673
        %v675 = vpop.f32.mrf.mxu0
        %676 = vmatprep.mubr.f32.mxu0 0.0
        %677 = vmatmul.mubr.f32.gmra.mxu0 %v524
        %v678 = vpop.f32.mrf.mxu0
        %v679 = vadd.f32 0.0, %v678
        %v680 = vpop.f32.mrf.mxu0
        %681 = vmatprep.mubr.f32.mxu0 0.0
        %682 = vmatmul.mubr.f32.gmra.mxu0 %v525
        %v683 = vpop.f32.mrf.mxu0
        %v684 = vadd.f32 0.0, %v683
        %v685 = vpop.f32.mrf.mxu0
        %686 = vdwg.mxu0
        %v687 = vadd.f32 %v494, %v609
        %v688 = vadd.f32 %v495, %v614
        %v689 = vadd.f32 %v496, %v619
        %v690 = vadd.f32 %v497, %v624
        %v691 = vadd.f32 %v498, %v629
        %v692 = vadd.f32 %v499, %v634
        %v693 = vadd.f32 %v500, %v639
        %v694 = vadd.f32 %v501, %v644
        %v695 = vadd.f32 %v502, %v649
        %v696 = vadd.f32 %v503, %v654
        %v697 = vadd.f32 %v504, %v659
        %v698 = vadd.f32 %v505, %v664
        %v699 = vadd.f32 %v506, %v669
        %v700 = vadd.f32 %v507, %v674
        %v701 = vadd.f32 %v508, %v679
        %v702 = vadd.f32 %v509, %v684
        %vm703 = vcmask 261120
        %704 = vst.msk [vmem:[#allocation2] sm:$0xff] %vm703, %v687
        %705 = vst.msk [vmem:[#allocation2 + $0x8] sm:$0xff] %vm703, %v688
        %706 = vst.msk [vmem:[#allocation2 + $0x10] sm:$0xff] %vm703, %v689
        %707 = vst.msk [vmem:[#allocation2 + $0x18] sm:$0xff] %vm703, %v690
        %708 = vst.msk [vmem:[#allocation2 + $0x20] sm:$0xff] %vm703, %v691
        %709 = vst.msk [vmem:[#allocation2 + $0x28] sm:$0xff] %vm703, %v692
        %710 = vst.msk [vmem:[#allocation2 + $0x30] sm:$0xff] %vm703, %v693
        %711 = vst.msk [vmem:[#allocation2 + $0x38] sm:$0xff] %vm703, %v694
        %712 = vst.msk [vmem:[#allocation2 + $0x40] sm:$0xff] %vm703, %v695
        %713 = vst.msk [vmem:[#allocation2 + $0x48] sm:$0xff] %vm703, %v696
        %714 = vst.msk [vmem:[#allocation2 + $0x50] sm:$0xff] %vm703, %v697
        %715 = vst.msk [vmem:[#allocation2 + $0x58] sm:$0xff] %vm703, %v698
        %716 = vst.msk [vmem:[#allocation2 + $0x60] sm:$0xff] %vm703, %v699
        %717 = vst.msk [vmem:[#allocation2 + $0x68] sm:$0xff] %vm703, %v700
        %718 = vst.msk [vmem:[#allocation2 + $0x70] sm:$0xff] %vm703, %v701
        %719 = vst.msk [vmem:[#allocation2 + $0x78] sm:$0xff] %vm703, %v702
        %p720 = scmp.eq.s32.totalorder %s24, 1
        // Predicated region
        $region87: #{ngcf_forward.2} parent=77 // pred_check
          %p721 = pneg %p720
        $region88: #{ngcf_forward.2} parent=77 // pred_check_branch
          %723 = sbr.rel (%p721) target = $region90
        $region89: #{ngcf_forward.2} parent=77 // pred_region
          %v724 = vld [vmem:[#allocation2] sm:$0xff]
          %v725 = vld [vmem:[#allocation2 + $0x8] sm:$0xff]
          %v726 = vld [vmem:[#allocation2 + $0x10] sm:$0xff]
          %v727 = vld [vmem:[#allocation2 + $0x18] sm:$0xff]
          %v728 = vld [vmem:[#allocation2 + $0x20] sm:$0xff]
          %v729 = vld [vmem:[#allocation2 + $0x28] sm:$0xff]
          %v730 = vld [vmem:[#allocation2 + $0x30] sm:$0xff]
          %v731 = vld [vmem:[#allocation2 + $0x38] sm:$0xff]
          %v732 = vld [vmem:[#allocation2 + $0x40] sm:$0xff]
          %v733 = vld [vmem:[#allocation2 + $0x48] sm:$0xff]
          %v734 = vld [vmem:[#allocation2 + $0x50] sm:$0xff]
          %v735 = vld [vmem:[#allocation2 + $0x58] sm:$0xff]
          %v736 = vld [vmem:[#allocation2 + $0x60] sm:$0xff]
          %v737 = vld [vmem:[#allocation2 + $0x68] sm:$0xff]
          %v738 = vld [vmem:[#allocation2 + $0x70] sm:$0xff]
          %v739 = vld [vmem:[#allocation2 + $0x78] sm:$0xff]
          %v740 = vld [vmem:[%s453] sm:$0xff]
          %v741 = vld [vmem:[%s453 + $0x8] sm:$0xff]
          %v742 = vld [vmem:[%s453 + $0x10] sm:$0xff]
          %v743 = vld [vmem:[%s453 + $0x18] sm:$0xff]
          %v744 = vld [vmem:[%s453 + $0x20] sm:$0xff]
          %v745 = vld [vmem:[%s453 + $0x28] sm:$0xff]
          %v746 = vld [vmem:[%s453 + $0x30] sm:$0xff]
          %v747 = vld [vmem:[%s453 + $0x38] sm:$0xff]
          %v748 = vld [vmem:[%s453 + $0x40] sm:$0xff]
          %v749 = vld [vmem:[%s453 + $0x48] sm:$0xff]
          %v750 = vld [vmem:[%s453 + $0x50] sm:$0xff]
          %v751 = vld [vmem:[%s453 + $0x58] sm:$0xff]
          %v752 = vld [vmem:[%s453 + $0x60] sm:$0xff]
          %v753 = vld [vmem:[%s453 + $0x68] sm:$0xff]
          %v754 = vld [vmem:[%s453 + $0x70] sm:$0xff]
          %v755 = vld [vmem:[%s453 + $0x78] sm:$0xff]
          %v756 = vadd.f32 %v724, %v740
          %v757 = vadd.f32 %v725, %v741
          %v758 = vadd.f32 %v726, %v742
          %v759 = vadd.f32 %v727, %v743
          %v760 = vadd.f32 %v728, %v744
          %v761 = vadd.f32 %v729, %v745
          %v762 = vadd.f32 %v730, %v746
          %v763 = vadd.f32 %v731, %v747
          %v764 = vadd.f32 %v732, %v748
          %v765 = vadd.f32 %v733, %v749
          %v766 = vadd.f32 %v734, %v750
          %v767 = vadd.f32 %v735, %v751
          %v768 = vadd.f32 %v736, %v752
          %v769 = vadd.f32 %v737, %v753
          %v770 = vadd.f32 %v738, %v754
          %v771 = vadd.f32 %v739, %v755
          %v772 = vld [vmem:[%s4] sm:$0xff]
          %v773 = vld [vmem:[%s4 + $0x8] sm:$0xff]
          %v774 = vld [vmem:[%s4 + $0x10] sm:$0xff]
          %v775 = vld [vmem:[%s4 + $0x18] sm:$0xff]
          %v776 = vmul.f32 %v724, %v740
          %v777 = vmul.f32 %v725, %v741
          %v778 = vmul.f32 %v726, %v742
          %v779 = vmul.f32 %v727, %v743
          %v780 = vmul.f32 %v728, %v744
          %v781 = vmul.f32 %v729, %v745
          %v782 = vmul.f32 %v730, %v746
          %v783 = vmul.f32 %v731, %v747
          %v784 = vmul.f32 %v732, %v748
          %v785 = vmul.f32 %v733, %v749
          %v786 = vmul.f32 %v734, %v750
          %v787 = vmul.f32 %v735, %v751
          %v788 = vmul.f32 %v736, %v752
          %v789 = vmul.f32 %v737, %v753
          %v790 = vmul.f32 %v738, %v754
          %v791 = vmul.f32 %v739, %v755
          %v792 = vld [vmem:[%s5] sm:$0xff]
          %v793 = vld [vmem:[%s5 + $0x8] sm:$0xff]
          %v794 = vld [vmem:[%s5 + $0x10] sm:$0xff]
          %v795 = vld [vmem:[%s5 + $0x18] sm:$0xff]
          %v797 = vsel %vm703, %v776, 0
          %v800 = vsel %vm703, %v777, 0
          %v803 = vsel %vm703, %v778, 0
          %v806 = vsel %vm703, %v779, 0
          %v809 = vsel %vm703, %v780, 0
          %v812 = vsel %vm703, %v781, 0
          %v815 = vsel %vm703, %v782, 0
          %v818 = vsel %vm703, %v783, 0
          %v821 = vsel %vm703, %v784, 0
          %v824 = vsel %vm703, %v785, 0
          %v827 = vsel %vm703, %v786, 0
          %v830 = vsel %vm703, %v787, 0
          %v833 = vsel %vm703, %v788, 0
          %v836 = vsel %vm703, %v789, 0
          %v839 = vsel %vm703, %v790, 0
          %v842 = vsel %vm703, %v791, 0
          %844 = vmatprep.subr.mxu0 0.0
          %845 = vmatpush1.msra.mxu0 0.0
          %846 = vmatprep.subr.mxu0 0.0
          %847 = vmatpush1.msra.mxu0 0.0
          %848 = vmatprep.subr.mxu0 0.0
          %849 = vmatpush1.msra.mxu0 0.0
          %850 = vmatprep.subr.mxu0 0.0
          %851 = vmatpush1.msra.mxu0 0.0
          %852 = vmatprep.subr.mxu0 0.0
          %853 = vmatpush1.msra.mxu0 0.0
          %854 = vmatprep.subr.mxu0 0.0
          %855 = vmatpush1.msra.mxu0 0.0
          %856 = vmatprep.subr.mxu0 0.0
          %857 = vmatpush1.msra.mxu0 0.0
          %858 = vmatprep.subr.mxu0 0.0
          %859 = vmatpush1.msra.mxu0 0.0
          %860 = vmatprep.subr.mxu0 0.0
          %861 = vmatpush1.msra.mxu0 0.0
          %862 = vmatprep.subr.mxu0 0.0
          %863 = vmatpush1.msra.mxu0 0.0
          %864 = vmatprep.subr.mxu0 0.0
          %865 = vmatpush1.msra.mxu0 0.0
          %866 = vmatprep.subr.mxu0 0.0
          %867 = vmatpush1.msra.mxu0 0.0
          %868 = vmatprep.subr.mxu0 0.0
          %869 = vmatpush1.msra.mxu0 %v795
          %870 = vmatprep.subr.mxu0 0.0
          %871 = vmatpush1.msra.mxu0 %v794
          %872 = vmatprep.subr.mxu0 0.0
          %873 = vmatpush1.msra.mxu0 %v793
          %874 = vmatprep.subr.mxu0 0.0
          %875 = vmatpush1.msra.mxu0 %v792
          %876 = vmatprep.subr.mxu0 0.0
          %877 = vmatpush2.msra.mxu0 0.0
          %878 = vmatprep.subr.mxu0 0.0
          %879 = vmatpush2.msra.mxu0 0.0
          %880 = vmatprep.subr.mxu0 0.0
          %881 = vmatpush2.msra.mxu0 0.0
          %882 = vmatprep.subr.mxu0 0.0
          %883 = vmatpush2.msra.mxu0 0.0
          %884 = vmatprep.subr.mxu0 0.0
          %885 = vmatpush2.msra.mxu0 0.0
          %886 = vmatprep.subr.mxu0 0.0
          %887 = vmatpush2.msra.mxu0 0.0
          %888 = vmatprep.subr.mxu0 0.0
          %889 = vmatpush2.msra.mxu0 0.0
          %890 = vmatprep.subr.mxu0 0.0
          %891 = vmatpush2.msra.mxu0 0.0
          %892 = vmatprep.subr.mxu0 0.0
          %893 = vmatpush2.msra.mxu0 0.0
          %894 = vmatprep.subr.mxu0 0.0
          %895 = vmatpush2.msra.mxu0 0.0
          %896 = vmatprep.subr.mxu0 0.0
          %897 = vmatpush2.msra.mxu0 0.0
          %898 = vmatprep.subr.mxu0 0.0
          %899 = vmatpush2.msra.mxu0 0.0
          %900 = vmatprep.subr.mxu0 0.0
          %901 = vmatpush2.msra.mxu0 0.0
          %902 = vmatprep.subr.mxu0 0.0
          %903 = vmatpush2.msra.mxu0 0.0
          %904 = vmatprep.subr.mxu0 0.0
          %905 = vmatpush2.msra.mxu0 0.0
          %906 = vmatprep.subr.mxu0 0.0
          %907 = vmatpush2.msra.mxu0 0.0
          %908 = vmatprep.mubr.f32.mxu0 0.0
          %909 = vmatmul.mubr.f32.gmra.mxu0 %v797
          %v910 = vpop.f32.mrf.mxu0
          %v911 = vadd.f32 0.0, %v910
          %v912 = vpop.f32.mrf.mxu0
          %913 = vmatprep.mubr.f32.mxu0 0.0
          %914 = vmatmul.mubr.f32.gmra.mxu0 %v800
          %v915 = vpop.f32.mrf.mxu0
          %v916 = vadd.f32 0.0, %v915
          %v917 = vpop.f32.mrf.mxu0
          %918 = vmatprep.mubr.f32.mxu0 0.0
          %919 = vmatmul.mubr.f32.gmra.mxu0 %v803
          %v920 = vpop.f32.mrf.mxu0
          %v921 = vadd.f32 0.0, %v920
          %v922 = vpop.f32.mrf.mxu0
          %923 = vmatprep.mubr.f32.mxu0 0.0
          %924 = vmatmul.mubr.f32.gmra.mxu0 %v806
          %v925 = vpop.f32.mrf.mxu0
          %v926 = vadd.f32 0.0, %v925
          %v927 = vpop.f32.mrf.mxu0
          %928 = vmatprep.mubr.f32.mxu0 0.0
          %929 = vmatmul.mubr.f32.gmra.mxu0 %v809
          %v930 = vpop.f32.mrf.mxu0
          %v931 = vadd.f32 0.0, %v930
          %v932 = vpop.f32.mrf.mxu0
          %933 = vmatprep.mubr.f32.mxu0 0.0
          %934 = vmatmul.mubr.f32.gmra.mxu0 %v812
          %v935 = vpop.f32.mrf.mxu0
          %v936 = vadd.f32 0.0, %v935
          %v937 = vpop.f32.mrf.mxu0
          %938 = vmatprep.mubr.f32.mxu0 0.0
          %939 = vmatmul.mubr.f32.gmra.mxu0 %v815
          %v940 = vpop.f32.mrf.mxu0
          %v941 = vadd.f32 0.0, %v940
          %v942 = vpop.f32.mrf.mxu0
          %943 = vmatprep.mubr.f32.mxu0 0.0
          %944 = vmatmul.mubr.f32.gmra.mxu0 %v818
          %v945 = vpop.f32.mrf.mxu0
          %v946 = vadd.f32 0.0, %v945
          %v947 = vpop.f32.mrf.mxu0
          %948 = vmatprep.mubr.f32.mxu0 0.0
          %949 = vmatmul.mubr.f32.gmra.mxu0 %v821
          %v950 = vpop.f32.mrf.mxu0
          %v951 = vadd.f32 0.0, %v950
          %v952 = vpop.f32.mrf.mxu0
          %953 = vmatprep.mubr.f32.mxu0 0.0
          %954 = vmatmul.mubr.f32.gmra.mxu0 %v824
          %v955 = vpop.f32.mrf.mxu0
          %v956 = vadd.f32 0.0, %v955
          %v957 = vpop.f32.mrf.mxu0
          %958 = vmatprep.mubr.f32.mxu0 0.0
          %959 = vmatmul.mubr.f32.gmra.mxu0 %v827
          %v960 = vpop.f32.mrf.mxu0
          %v961 = vadd.f32 0.0, %v960
          %v962 = vpop.f32.mrf.mxu0
          %963 = vmatprep.mubr.f32.mxu0 0.0
          %964 = vmatmul.mubr.f32.gmra.mxu0 %v830
          %v965 = vpop.f32.mrf.mxu0
          %v966 = vadd.f32 0.0, %v965
          %v967 = vpop.f32.mrf.mxu0
          %968 = vmatprep.mubr.f32.mxu0 0.0
          %969 = vmatmul.mubr.f32.gmra.mxu0 %v833
          %v970 = vpop.f32.mrf.mxu0
          %v971 = vadd.f32 0.0, %v970
          %v972 = vpop.f32.mrf.mxu0
          %973 = vmatprep.mubr.f32.mxu0 0.0
          %974 = vmatmul.mubr.f32.gmra.mxu0 %v836
          %v975 = vpop.f32.mrf.mxu0
          %v976 = vadd.f32 0.0, %v975
          %v977 = vpop.f32.mrf.mxu0
          %978 = vmatprep.mubr.f32.mxu0 0.0
          %979 = vmatmul.mubr.f32.gmra.mxu0 %v839
          %v980 = vpop.f32.mrf.mxu0
          %v981 = vadd.f32 0.0, %v980
          %v982 = vpop.f32.mrf.mxu0
          %983 = vmatprep.mubr.f32.mxu0 0.0
          %984 = vmatmul.mubr.f32.gmra.mxu0 %v842
          %v985 = vpop.f32.mrf.mxu0
          %v986 = vadd.f32 0.0, %v985
          %v987 = vpop.f32.mrf.mxu0
          %988 = vdwg.mxu0
          %v990 = vsel %vm703, %v756, 0
          %v993 = vsel %vm703, %v757, 0
          %v996 = vsel %vm703, %v758, 0
          %v999 = vsel %vm703, %v759, 0
          %v1002 = vsel %vm703, %v760, 0
          %v1005 = vsel %vm703, %v761, 0
          %v1008 = vsel %vm703, %v762, 0
          %v1011 = vsel %vm703, %v763, 0
          %v1014 = vsel %vm703, %v764, 0
          %v1017 = vsel %vm703, %v765, 0
          %v1020 = vsel %vm703, %v766, 0
          %v1023 = vsel %vm703, %v767, 0
          %v1026 = vsel %vm703, %v768, 0
          %v1029 = vsel %vm703, %v769, 0
          %v1032 = vsel %vm703, %v770, 0
          %v1035 = vsel %vm703, %v771, 0
          %1037 = vmatprep.subr.mxu0 0.0
          %1038 = vmatpush1.msra.mxu0 0.0
          %1039 = vmatprep.subr.mxu0 0.0
          %1040 = vmatpush1.msra.mxu0 0.0
          %1041 = vmatprep.subr.mxu0 0.0
          %1042 = vmatpush1.msra.mxu0 0.0
          %1043 = vmatprep.subr.mxu0 0.0
          %1044 = vmatpush1.msra.mxu0 0.0
          %1045 = vmatprep.subr.mxu0 0.0
          %1046 = vmatpush1.msra.mxu0 0.0
          %1047 = vmatprep.subr.mxu0 0.0
          %1048 = vmatpush1.msra.mxu0 0.0
          %1049 = vmatprep.subr.mxu0 0.0
          %1050 = vmatpush1.msra.mxu0 0.0
          %1051 = vmatprep.subr.mxu0 0.0
          %1052 = vmatpush1.msra.mxu0 0.0
          %1053 = vmatprep.subr.mxu0 0.0
          %1054 = vmatpush1.msra.mxu0 0.0
          %1055 = vmatprep.subr.mxu0 0.0
          %1056 = vmatpush1.msra.mxu0 0.0
          %1057 = vmatprep.subr.mxu0 0.0
          %1058 = vmatpush1.msra.mxu0 0.0
          %1059 = vmatprep.subr.mxu0 0.0
          %1060 = vmatpush1.msra.mxu0 0.0
          %1061 = vmatprep.subr.mxu0 0.0
          %1062 = vmatpush1.msra.mxu0 %v775
          %1063 = vmatprep.subr.mxu0 0.0
          %1064 = vmatpush1.msra.mxu0 %v774
          %1065 = vmatprep.subr.mxu0 0.0
          %1066 = vmatpush1.msra.mxu0 %v773
          %1067 = vmatprep.subr.mxu0 0.0
          %1068 = vmatpush1.msra.mxu0 %v772
          %1069 = vmatprep.subr.mxu0 0.0
          %1070 = vmatpush2.msra.mxu0 0.0
          %1071 = vmatprep.subr.mxu0 0.0
          %1072 = vmatpush2.msra.mxu0 0.0
          %1073 = vmatprep.subr.mxu0 0.0
          %1074 = vmatpush2.msra.mxu0 0.0
          %1075 = vmatprep.subr.mxu0 0.0
          %1076 = vmatpush2.msra.mxu0 0.0
          %1077 = vmatprep.subr.mxu0 0.0
          %1078 = vmatpush2.msra.mxu0 0.0
          %1079 = vmatprep.subr.mxu0 0.0
          %1080 = vmatpush2.msra.mxu0 0.0
          %1081 = vmatprep.subr.mxu0 0.0
          %1082 = vmatpush2.msra.mxu0 0.0
          %1083 = vmatprep.subr.mxu0 0.0
          %1084 = vmatpush2.msra.mxu0 0.0
          %1085 = vmatprep.subr.mxu0 0.0
          %1086 = vmatpush2.msra.mxu0 0.0
          %1087 = vmatprep.subr.mxu0 0.0
          %1088 = vmatpush2.msra.mxu0 0.0
          %1089 = vmatprep.subr.mxu0 0.0
          %1090 = vmatpush2.msra.mxu0 0.0
          %1091 = vmatprep.subr.mxu0 0.0
          %1092 = vmatpush2.msra.mxu0 0.0
          %1093 = vmatprep.subr.mxu0 0.0
          %1094 = vmatpush2.msra.mxu0 0.0
          %1095 = vmatprep.subr.mxu0 0.0
          %1096 = vmatpush2.msra.mxu0 0.0
          %1097 = vmatprep.subr.mxu0 0.0
          %1098 = vmatpush2.msra.mxu0 0.0
          %1099 = vmatprep.subr.mxu0 0.0
          %1100 = vmatpush2.msra.mxu0 0.0
          %1101 = vmatprep.mubr.f32.mxu0 0.0
          %1102 = vmatmul.mubr.f32.gmra.mxu0 %v990
          %v1103 = vpop.f32.mrf.mxu0
          %v1104 = vadd.f32 %v911, %v1103
          %v1105 = vpop.f32.mrf.mxu0
          %1106 = vmatprep.mubr.f32.mxu0 0.0
          %1107 = vmatmul.mubr.f32.gmra.mxu0 %v993
          %v1108 = vpop.f32.mrf.mxu0
          %v1109 = vadd.f32 %v916, %v1108
          %v1110 = vpop.f32.mrf.mxu0
          %1111 = vmatprep.mubr.f32.mxu0 0.0
          %1112 = vmatmul.mubr.f32.gmra.mxu0 %v996
          %v1113 = vpop.f32.mrf.mxu0
          %v1114 = vadd.f32 %v921, %v1113
          %v1115 = vpop.f32.mrf.mxu0
          %1116 = vmatprep.mubr.f32.mxu0 0.0
          %1117 = vmatmul.mubr.f32.gmra.mxu0 %v999
          %v1118 = vpop.f32.mrf.mxu0
          %v1119 = vadd.f32 %v926, %v1118
          %v1120 = vpop.f32.mrf.mxu0
          %1121 = vmatprep.mubr.f32.mxu0 0.0
          %1122 = vmatmul.mubr.f32.gmra.mxu0 %v1002
          %v1123 = vpop.f32.mrf.mxu0
          %v1124 = vadd.f32 %v931, %v1123
          %v1125 = vpop.f32.mrf.mxu0
          %1126 = vmatprep.mubr.f32.mxu0 0.0
          %1127 = vmatmul.mubr.f32.gmra.mxu0 %v1005
          %v1128 = vpop.f32.mrf.mxu0
          %v1129 = vadd.f32 %v936, %v1128
          %v1130 = vpop.f32.mrf.mxu0
          %1131 = vmatprep.mubr.f32.mxu0 0.0
          %1132 = vmatmul.mubr.f32.gmra.mxu0 %v1008
          %v1133 = vpop.f32.mrf.mxu0
          %v1134 = vadd.f32 %v941, %v1133
          %v1135 = vpop.f32.mrf.mxu0
          %1136 = vmatprep.mubr.f32.mxu0 0.0
          %1137 = vmatmul.mubr.f32.gmra.mxu0 %v1011
          %v1138 = vpop.f32.mrf.mxu0
          %v1139 = vadd.f32 %v946, %v1138
          %v1140 = vpop.f32.mrf.mxu0
          %1141 = vmatprep.mubr.f32.mxu0 0.0
          %1142 = vmatmul.mubr.f32.gmra.mxu0 %v1014
          %v1143 = vpop.f32.mrf.mxu0
          %v1144 = vadd.f32 %v951, %v1143
          %v1145 = vpop.f32.mrf.mxu0
          %1146 = vmatprep.mubr.f32.mxu0 0.0
          %1147 = vmatmul.mubr.f32.gmra.mxu0 %v1017
          %v1148 = vpop.f32.mrf.mxu0
          %v1149 = vadd.f32 %v956, %v1148
          %v1150 = vpop.f32.mrf.mxu0
          %1151 = vmatprep.mubr.f32.mxu0 0.0
          %1152 = vmatmul.mubr.f32.gmra.mxu0 %v1020
          %v1153 = vpop.f32.mrf.mxu0
          %v1154 = vadd.f32 %v961, %v1153
          %v1155 = vpop.f32.mrf.mxu0
          %1156 = vmatprep.mubr.f32.mxu0 0.0
          %1157 = vmatmul.mubr.f32.gmra.mxu0 %v1023
          %v1158 = vpop.f32.mrf.mxu0
          %v1159 = vadd.f32 %v966, %v1158
          %v1160 = vpop.f32.mrf.mxu0
          %1161 = vmatprep.mubr.f32.mxu0 0.0
          %1162 = vmatmul.mubr.f32.gmra.mxu0 %v1026
          %v1163 = vpop.f32.mrf.mxu0
          %v1164 = vadd.f32 %v971, %v1163
          %v1165 = vpop.f32.mrf.mxu0
          %1166 = vmatprep.mubr.f32.mxu0 0.0
          %1167 = vmatmul.mubr.f32.gmra.mxu0 %v1029
          %v1168 = vpop.f32.mrf.mxu0
          %v1169 = vadd.f32 %v976, %v1168
          %v1170 = vpop.f32.mrf.mxu0
          %1171 = vmatprep.mubr.f32.mxu0 0.0
          %1172 = vmatmul.mubr.f32.gmra.mxu0 %v1032
          %v1173 = vpop.f32.mrf.mxu0
          %v1174 = vadd.f32 %v981, %v1173
          %v1175 = vpop.f32.mrf.mxu0
          %1176 = vmatprep.mubr.f32.mxu0 0.0
          %1177 = vmatmul.mubr.f32.gmra.mxu0 %v1035
          %v1178 = vpop.f32.mrf.mxu0
          %v1179 = vadd.f32 %v986, %v1178
          %v1180 = vpop.f32.mrf.mxu0
          %1181 = vdwg.mxu0
          %vm1182 = vcmp.ge.f32.partialorder %v1104, 0.0
          %vm1183 = vcmp.ge.f32.partialorder %v1109, 0.0
          %vm1184 = vcmp.ge.f32.partialorder %v1114, 0.0
          %vm1185 = vcmp.ge.f32.partialorder %v1119, 0.0
          %vm1186 = vcmp.ge.f32.partialorder %v1124, 0.0
          %vm1187 = vcmp.ge.f32.partialorder %v1129, 0.0
          %vm1188 = vcmp.ge.f32.partialorder %v1134, 0.0
          %vm1189 = vcmp.ge.f32.partialorder %v1139, 0.0
          %vm1190 = vcmp.ge.f32.partialorder %v1144, 0.0
          %vm1191 = vcmp.ge.f32.partialorder %v1149, 0.0
          %vm1192 = vcmp.ge.f32.partialorder %v1154, 0.0
          %vm1193 = vcmp.ge.f32.partialorder %v1159, 0.0
          %vm1194 = vcmp.ge.f32.partialorder %v1164, 0.0
          %vm1195 = vcmp.ge.f32.partialorder %v1169, 0.0
          %vm1196 = vcmp.ge.f32.partialorder %v1174, 0.0
          %vm1197 = vcmp.ge.f32.partialorder %v1179, 0.0
          %v1198 = vmul.f32 %v1104, 0.01
          %v1199 = vmul.f32 %v1109, 0.01
          %v1200 = vmul.f32 %v1114, 0.01
          %v1201 = vmul.f32 %v1119, 0.01
          %v1202 = vmul.f32 %v1124, 0.01
          %v1203 = vmul.f32 %v1129, 0.01
          %v1204 = vmul.f32 %v1134, 0.01
          %v1205 = vmul.f32 %v1139, 0.01
          %v1206 = vmul.f32 %v1144, 0.01
          %v1207 = vmul.f32 %v1149, 0.01
          %v1208 = vmul.f32 %v1154, 0.01
          %v1209 = vmul.f32 %v1159, 0.01
          %v1210 = vmul.f32 %v1164, 0.01
          %v1211 = vmul.f32 %v1169, 0.01
          %v1212 = vmul.f32 %v1174, 0.01
          %v1213 = vmul.f32 %v1179, 0.01
          %v1214 = vsel %vm1182, %v1104, %v1198
          %v1215 = vsel %vm1183, %v1109, %v1199
          %v1216 = vsel %vm1184, %v1114, %v1200
          %v1217 = vsel %vm1185, %v1119, %v1201
          %v1218 = vsel %vm1186, %v1124, %v1202
          %v1219 = vsel %vm1187, %v1129, %v1203
          %v1220 = vsel %vm1188, %v1134, %v1204
          %v1221 = vsel %vm1189, %v1139, %v1205
          %v1222 = vsel %vm1190, %v1144, %v1206
          %v1223 = vsel %vm1191, %v1149, %v1207
          %v1224 = vsel %vm1192, %v1154, %v1208
          %v1225 = vsel %vm1193, %v1159, %v1209
          %v1226 = vsel %vm1194, %v1164, %v1210
          %v1227 = vsel %vm1195, %v1169, %v1211
          %v1228 = vsel %vm1196, %v1174, %v1212
          %v1229 = vsel %vm1197, %v1179, %v1213
          %1230 = vst.msk [vmem:[%s465] sm:$0xff] %vm703, %v1214
          %1231 = vst.msk [vmem:[%s465 + $0x8] sm:$0xff] %vm703, %v1215
          %1232 = vst.msk [vmem:[%s465 + $0x10] sm:$0xff] %vm703, %v1216
          %1233 = vst.msk [vmem:[%s465 + $0x18] sm:$0xff] %vm703, %v1217
          %1234 = vst.msk [vmem:[%s465 + $0x20] sm:$0xff] %vm703, %v1218
          %1235 = vst.msk [vmem:[%s465 + $0x28] sm:$0xff] %vm703, %v1219
          %1236 = vst.msk [vmem:[%s465 + $0x30] sm:$0xff] %vm703, %v1220
          %1237 = vst.msk [vmem:[%s465 + $0x38] sm:$0xff] %vm703, %v1221
          %1238 = vst.msk [vmem:[%s465 + $0x40] sm:$0xff] %vm703, %v1222
          %1239 = vst.msk [vmem:[%s465 + $0x48] sm:$0xff] %vm703, %v1223
          %1240 = vst.msk [vmem:[%s465 + $0x50] sm:$0xff] %vm703, %v1224
          %1241 = vst.msk [vmem:[%s465 + $0x58] sm:$0xff] %vm703, %v1225
          %1242 = vst.msk [vmem:[%s465 + $0x60] sm:$0xff] %vm703, %v1226
          %1243 = vst.msk [vmem:[%s465 + $0x68] sm:$0xff] %vm703, %v1227
          %1244 = vst.msk [vmem:[%s465 + $0x70] sm:$0xff] %vm703, %v1228
          %1245 = vst.msk [vmem:[%s465 + $0x78] sm:$0xff] %vm703, %v1229
          %v1246 = vld [vmem:[%s459] sm:$0xff]
          %v1247 = vld [vmem:[%s459 + $0x8] sm:$0xff]
          %v1248 = vld [vmem:[%s459 + $0x10] sm:$0xff]
          %v1249 = vld [vmem:[%s459 + $0x18] sm:$0xff]
          %v1250 = vld [vmem:[%s459 + $0x20] sm:$0xff]
          %v1251 = vld [vmem:[%s459 + $0x28] sm:$0xff]
          %v1252 = vld [vmem:[%s459 + $0x30] sm:$0xff]
          %v1253 = vld [vmem:[%s459 + $0x38] sm:$0xff]
          %v1254 = vld [vmem:[%s459 + $0x40] sm:$0xff]
          %v1255 = vld [vmem:[%s459 + $0x48] sm:$0xff]
          %v1256 = vld [vmem:[%s459 + $0x50] sm:$0xff]
          %v1257 = vld [vmem:[%s459 + $0x58] sm:$0xff]
          %v1258 = vld [vmem:[%s459 + $0x60] sm:$0xff]
          %v1259 = vld [vmem:[%s459 + $0x68] sm:$0xff]
          %v1260 = vld [vmem:[%s459 + $0x70] sm:$0xff]
          %v1261 = vld [vmem:[%s459 + $0x78] sm:$0xff]
          %v1262 = vadd.f32 %v1246, %v1214
          %v1263 = vadd.f32 %v1247, %v1215
          %v1264 = vadd.f32 %v1248, %v1216
          %v1265 = vadd.f32 %v1249, %v1217
          %v1266 = vadd.f32 %v1250, %v1218
          %v1267 = vadd.f32 %v1251, %v1219
          %v1268 = vadd.f32 %v1252, %v1220
          %v1269 = vadd.f32 %v1253, %v1221
          %v1270 = vadd.f32 %v1254, %v1222
          %v1271 = vadd.f32 %v1255, %v1223
          %v1272 = vadd.f32 %v1256, %v1224
          %v1273 = vadd.f32 %v1257, %v1225
          %v1274 = vadd.f32 %v1258, %v1226
          %v1275 = vadd.f32 %v1259, %v1227
          %v1276 = vadd.f32 %v1260, %v1228
          %v1277 = vadd.f32 %v1261, %v1229
          %1278 = vst.msk [vmem:[%s471] sm:$0xff] %vm703, %v1262
          %1279 = vst.msk [vmem:[%s471 + $0x8] sm:$0xff] %vm703, %v1263
          %1280 = vst.msk [vmem:[%s471 + $0x10] sm:$0xff] %vm703, %v1264
          %1281 = vst.msk [vmem:[%s471 + $0x18] sm:$0xff] %vm703, %v1265
          %1282 = vst.msk [vmem:[%s471 + $0x20] sm:$0xff] %vm703, %v1266
          %1283 = vst.msk [vmem:[%s471 + $0x28] sm:$0xff] %vm703, %v1267
          %1284 = vst.msk [vmem:[%s471 + $0x30] sm:$0xff] %vm703, %v1268
          %1285 = vst.msk [vmem:[%s471 + $0x38] sm:$0xff] %vm703, %v1269
          %1286 = vst.msk [vmem:[%s471 + $0x40] sm:$0xff] %vm703, %v1270
          %1287 = vst.msk [vmem:[%s471 + $0x48] sm:$0xff] %vm703, %v1271
          %1288 = vst.msk [vmem:[%s471 + $0x50] sm:$0xff] %vm703, %v1272
          %1289 = vst.msk [vmem:[%s471 + $0x58] sm:$0xff] %vm703, %v1273
          %1290 = vst.msk [vmem:[%s471 + $0x60] sm:$0xff] %vm703, %v1274
          %1291 = vst.msk [vmem:[%s471 + $0x68] sm:$0xff] %vm703, %v1275
          %1292 = vst.msk [vmem:[%s471 + $0x70] sm:$0xff] %vm703, %v1276
          %1293 = vst.msk [vmem:[%s471 + $0x78] sm:$0xff] %vm703, %v1277
        $region90: #{ngcf_forward.2} parent=77 // pred_fallthru
          _
        %s1294 = smul.u32 16, %s23
        %p1295 = scmp.lt.s32.totalorder %s1294, 31
        %s1296 = scalar_select %p1295, %s1294, 31
        %s1297 = smul.addr %s1296, 8
        %s1298 = scalar_lea.vmem %s6, %s1297
        %s1299 = smul.u32 16, %s23
        %p1300 = scmp.lt.s32.totalorder %s1299, 31
        %s1301 = scalar_select %p1300, %s1299, 31
        %s1302 = smul.addr %s1301, 8
        %s1303 = scalar_lea.vmem %s7, %s1302
        // Predicated region
        $region91: #{ngcf_forward.2} parent=77 // pred_check
          %p1304 = pneg %p197
        $region92: #{ngcf_forward.2} parent=77 // pred_check_branch
          %1306 = sbr.rel (%p1304) target = $region94
        $region93: #{ngcf_forward.2} parent=77 // pred_region
          %s1307 = smul.u32 16, %s23
        $region94: #{ngcf_forward.2} parent=77 // pred_fallthru
          _
        // Predicated region
        $region95: #{ngcf_forward.2} parent=77 // pred_check
          %p1308 = pneg %p223
        $region96: #{ngcf_forward.2} parent=77 // pred_check_branch
          %1310 = sbr.rel (%p1308) target = $region98
        $region97: #{ngcf_forward.2} parent=77 // pred_region
          %s1311 = smul.u32 16, %s23
        $region98: #{ngcf_forward.2} parent=77 // pred_fallthru
          _
      $region78: #{ngcf_forward.2} parent=5 // pred_fallthru
        _
      %p1312 = scmp.le.s32.totalorder 2, %s14
      // Predicated region
      $region99: #{ngcf_forward.2} parent=5 // pred_check
        %p1313 = pneg %p1312
      $region100: #{ngcf_forward.2} parent=5 // pred_check_branch
        %1315 = sbr.rel (%p1313) target = $region102
      $region101: #{ngcf_forward.2} parent=5 // pred_region
        %s1316 = ssub.s32 %s14, 2
        // Predicated region
        $region103: #{ngcf_forward.2} parent=101 // pred_check
          %p1317 = pneg %p203
        $region104: #{ngcf_forward.2} parent=101 // pred_check_branch
          %1319 = sbr.rel (%p1317) target = $region106
        $region105: #{ngcf_forward.2} parent=101 // pred_region
          %s1320 = smul.u32 16, %s25
          %p1321 = scmp.lt.s32.totalorder %s1320, 31
          %s1322 = scalar_select %p1321, %s1320, 31
          %s1323 = smul.addr %s1322, 8
          %s1324 = scalar_lea.vmem %s6, %s1323
        $region106: #{ngcf_forward.2} parent=101 // pred_fallthru
          _
        // Predicated region
        $region107: #{ngcf_forward.2} parent=101 // pred_check
          %p1325 = pneg %p229
        $region108: #{ngcf_forward.2} parent=101 // pred_check_branch
          %1327 = sbr.rel (%p1325) target = $region110
        $region109: #{ngcf_forward.2} parent=101 // pred_region
          %s1328 = smul.u32 16, %s25
          %p1329 = scmp.lt.s32.totalorder %s1328, 31
          %s1330 = scalar_select %p1329, %s1328, 31
          %s1331 = smul.addr %s1330, 8
          %s1332 = scalar_lea.vmem %s7, %s1331
        $region110: #{ngcf_forward.2} parent=101 // pred_fallthru
          _
      $region102: #{ngcf_forward.2} parent=5 // pred_fallthru
        _
    $region6: #{ngcf_forward.2} parent=1 // loop_footer
      %s18 = sadd.s32 1, %s14
    $region7: #{ngcf_forward.2} parent=1 // loop_footer_branch
      %13 = sbr.rel target = $region3
    $region8: #{ngcf_forward.2} parent=1 // loop_exit
      _

// kernel: ngcf_forward.3
$region0: #{ngcf_forward.3}
  #allocation0 [shape = 'u32[]', space=smem, size = 0x4, offset = 0x4, fixed_abs, tag = 'smem constant byte address 0x4 - core index']
  #allocation1 [shape = 'u32[144,128]{1,0:T(1,128)}', space=vmem, size = 0x12000, scoped, tag = 'internal scratch']
  #allocation2 [shape = 'f32[128,32]{1,0:T(8,128)}', space=vmem, size = 0x10000, scoped, tag = 'scratch operand']
  %s0 = inlined_call_operand.vmem [shape: f32[256,256], index: 0, kind: input, shape index: {}]
  %s1 = inlined_call_operand.vmem [shape: f32[256,32], index: 1, kind: input, shape index: {}, may-alias: {1,2}]
  %s2 = inlined_call_operand.vmem [shape: f32[256,32], index: 2, kind: input, shape index: {}, may-alias: {1,2}]
  %s3 = inlined_call_operand.vmem [shape: f32[256,32], index: 3, kind: input, shape index: {}]
  %s4 = inlined_call_operand.vmem [shape: f32[32,32], index: 4, kind: input, shape index: {}]
  %s5 = inlined_call_operand.vmem [shape: f32[32,32], index: 5, kind: input, shape index: {}]
  %s6 = inlined_call_operand.hbm [shape: f32[256,32], index: 6, kind: output, shape index: {0}]
  %s7 = inlined_call_operand.vmem [shape: f32[256,32], index: 7, kind: output, shape index: {1}]
  %8 = xla_tuple %s6, %s7
  %s9 = sld [smem:[#allocation0]]
  $region111: #{ngcf_forward.3} parent=0
    _
  %s11 = ssub.s32 1, %s9
  %s12 = scalar_select 0, %s11, %s9
  $region1: #{ngcf_forward.3} parent=0
    #allocation3 [shape = 'u8[131072]{0}', space=vmem, size = 0x20000, scoped, tag = 'input window, operand 0']
    #allocation4 [shape = 'u8[131072]{0}', space=vmem, size = 0x20000, scoped, tag = 'output window, operand 0']
    #allocation5 [shape = 's32[2]{0}', space=sflag, size = 0x8, scoped, tag = 'scoped memory for ngcf_forward.3']
    %13 = vsyncpa [#allocation5], 0
    %s14 = scalar_lea.sflag [#allocation5], 1
    %15 = vsyncpa %s14, 0
    loop: start=0, step=1, limit=6
    $region2: #{ngcf_forward.3} parent=1 // loop_pre_header
      _
    $region3: #{ngcf_forward.3} parent=1 // loop_header
      %s17 = sphi 0, %s21
      %p18 = scmp.ge.s32.totalorder %s17, 6
      %s24 = sphi 0, %s36
      %s25 = sphi 0, %s32
      %s26 = sphi 0, %s24
      %s27 = sphi 0, %s25
      %s28 = sphi 0, %s26
      %s29 = sphi 0, %s27
      %s41 = sphi 0, %s43
      %s44 = sphi 0, %s41
      %s45 = sphi 0, %s44
      %s61 = sphi 0, %s45
      %s67 = sphi 0, %s69
      %s70 = sphi 0, %s67
      %s71 = sphi 0, %s70
      %s87 = sphi 0, %s71
      %s93 = sphi 0, %s95
      %s96 = sphi 0, %s93
      %s97 = sphi 0, %s96
      %s113 = sphi 0, %s97
      %s119 = sphi 0, %s121
      %s122 = sphi 0, %s119
      %s123 = sphi 0, %s122
      %s139 = sphi 0, %s123
      %s143 = sphi 0, %s143
      %s145 = sphi 0, %s143
      %s146 = sphi 0, %s145
      %s160 = sphi 0, %s146
      %s164 = sphi 0, %s164
      %s166 = sphi 0, %s164
      %s167 = sphi 0, %s166
      %s181 = sphi 0, %s167
      %s187 = sphi 0, %s189
      %s190 = sphi 0, %s187
      %s191 = sphi 0, %s190
      %s207 = sphi 0, %s191
      %s213 = sphi 0, %s215
      %s216 = sphi 0, %s213
      %s217 = sphi 0, %s216
      %s233 = sphi 0, %s217
    $region4: #{ngcf_forward.3} parent=1 // loop_header_branch
      %20 = sbr.rel (%p18) target = $region8
    $region5: #{ngcf_forward.3} parent=1 // loop_body
      %s22 = ssub.s32 %s17, 1
      %s23 = ssub.s32 %s17, 2
      %s30 = sadd.s32 1, %s25
      %p31 = scmp.ge.s32.totalorder %s30, 2
      %s32 = scalar_select %p31, 0, %s30
      %s33 = sadd.s32 1, %s24
      %s34 = scalar_select %p31, %s33, %s24
      %p35 = scmp.ge.s32.totalorder %s34, 2
      %s36 = scalar_select %p35, 0, %s34
      %s37 = ssub.s32 %s24, %s36
      %s38 = ssub.s32 %s25, %s32
      %s39 = sor.u32 %s37, %s38
      %p40 = scmp.eq.s32.totalorder %s39, 0
      %s42 = sadd.s32 %s41, 1
      %s43 = scalar_select %p40, %s41, %s42
      %p46 = pneg %p40
      %p47 = scmp.eq.s32.totalorder %s17, 3
      %p48 = por %p46, %p47
      %p49 = scmp.ne.s32.totalorder %s41, %s44
      %p50 = scmp.eq.s32.totalorder %s17, 0
      %p51 = por %p49, %p50
      %p52 = scmp.ne.s32.totalorder %s41, %s44
      %p53 = scmp.eq.s32.totalorder %s22, 3
      %p54 = por %p52, %p53
      %p55 = scmp.ne.s32.totalorder %s44, %s45
      %p56 = scmp.eq.s32.totalorder %s22, 0
      %p57 = por %p55, %p56
      %p58 = scmp.ne.s32.totalorder %s44, %s45
      %p59 = scmp.eq.s32.totalorder %s23, 3
      %p60 = por %p58, %p59
      %p62 = scmp.ne.s32.totalorder %s45, %s61
      %p63 = scmp.eq.s32.totalorder %s23, 0
      %p64 = por %p62, %p63
      %s65 = ssub.s32 %s25, %s32
      %p66 = scmp.eq.s32.totalorder %s65, 0
      %s68 = sadd.s32 %s67, 1
      %s69 = scalar_select %p66, %s67, %s68
      %p72 = pneg %p66
      %p73 = scmp.eq.s32.totalorder %s17, 3
      %p74 = por %p72, %p73
      %p75 = scmp.ne.s32.totalorder %s67, %s70
      %p76 = scmp.eq.s32.totalorder %s17, 0
      %p77 = por %p75, %p76
      %p78 = scmp.ne.s32.totalorder %s67, %s70
      %p79 = scmp.eq.s32.totalorder %s22, 3
      %p80 = por %p78, %p79
      %p81 = scmp.ne.s32.totalorder %s70, %s71
      %p82 = scmp.eq.s32.totalorder %s22, 0
      %p83 = por %p81, %p82
      %p84 = scmp.ne.s32.totalorder %s70, %s71
      %p85 = scmp.eq.s32.totalorder %s23, 3
      %p86 = por %p84, %p85
      %p88 = scmp.ne.s32.totalorder %s71, %s87
      %p89 = scmp.eq.s32.totalorder %s23, 0
      %p90 = por %p88, %p89
      %s91 = ssub.s32 %s24, %s36
      %p92 = scmp.eq.s32.totalorder %s91, 0
      %s94 = sadd.s32 %s93, 1
      %s95 = scalar_select %p92, %s93, %s94
      %p98 = pneg %p92
      %p99 = scmp.eq.s32.totalorder %s17, 3
      %p100 = por %p98, %p99
      %p101 = scmp.ne.s32.totalorder %s93, %s96
      %p102 = scmp.eq.s32.totalorder %s17, 0
      %p103 = por %p101, %p102
      %p104 = scmp.ne.s32.totalorder %s93, %s96
      %p105 = scmp.eq.s32.totalorder %s22, 3
      %p106 = por %p104, %p105
      %p107 = scmp.ne.s32.totalorder %s96, %s97
      %p108 = scmp.eq.s32.totalorder %s22, 0
      %p109 = por %p107, %p108
      %p110 = scmp.ne.s32.totalorder %s96, %s97
      %p111 = scmp.eq.s32.totalorder %s23, 3
      %p112 = por %p110, %p111
      %p114 = scmp.ne.s32.totalorder %s97, %s113
      %p115 = scmp.eq.s32.totalorder %s23, 0
      %p116 = por %p114, %p115
      %s117 = ssub.s32 %s24, %s36
      %p118 = scmp.eq.s32.totalorder %s117, 0
      %s120 = sadd.s32 %s119, 1
      %s121 = scalar_select %p118, %s119, %s120
      %p124 = pneg %p118
      %p125 = scmp.eq.s32.totalorder %s17, 3
      %p126 = por %p124, %p125
      %p127 = scmp.ne.s32.totalorder %s119, %s122
      %p128 = scmp.eq.s32.totalorder %s17, 0
      %p129 = por %p127, %p128
      %p130 = scmp.ne.s32.totalorder %s119, %s122
      %p131 = scmp.eq.s32.totalorder %s22, 3
      %p132 = por %p130, %p131
      %p133 = scmp.ne.s32.totalorder %s122, %s123
      %p134 = scmp.eq.s32.totalorder %s22, 0
      %p135 = por %p133, %p134
      %p136 = scmp.ne.s32.totalorder %s122, %s123
      %p137 = scmp.eq.s32.totalorder %s23, 3
      %p138 = por %p136, %p137
      %p140 = scmp.ne.s32.totalorder %s123, %s139
      %p141 = scmp.eq.s32.totalorder %s23, 0
      %p142 = por %p140, %p141
      %s144 = sadd.s32 %s143, 1
      %p147 = scmp.eq.s32.totalorder %s17, 3
      %p148 = scmp.ne.s32.totalorder %s143, %s145
      %p149 = scmp.eq.s32.totalorder %s17, 0
      %p150 = por %p148, %p149
      %p151 = scmp.ne.s32.totalorder %s143, %s145
      %p152 = scmp.eq.s32.totalorder %s22, 3
      %p153 = por %p151, %p152
      %p154 = scmp.ne.s32.totalorder %s145, %s146
      %p155 = scmp.eq.s32.totalorder %s22, 0
      %p156 = por %p154, %p155
      %p157 = scmp.ne.s32.totalorder %s145, %s146
      %p158 = scmp.eq.s32.totalorder %s23, 3
      %p159 = por %p157, %p158
      %p161 = scmp.ne.s32.totalorder %s146, %s160
      %p162 = scmp.eq.s32.totalorder %s23, 0
      %p163 = por %p161, %p162
      %s165 = sadd.s32 %s164, 1
      %p168 = scmp.eq.s32.totalorder %s17, 3
      %p169 = scmp.ne.s32.totalorder %s164, %s166
      %p170 = scmp.eq.s32.totalorder %s17, 0
      %p171 = por %p169, %p170
      %p172 = scmp.ne.s32.totalorder %s164, %s166
      %p173 = scmp.eq.s32.totalorder %s22, 3
      %p174 = por %p172, %p173
      %p175 = scmp.ne.s32.totalorder %s166, %s167
      %p176 = scmp.eq.s32.totalorder %s22, 0
      %p177 = por %p175, %p176
      %p178 = scmp.ne.s32.totalorder %s166, %s167
      %p179 = scmp.eq.s32.totalorder %s23, 3
      %p180 = por %p178, %p179
      %p182 = scmp.ne.s32.totalorder %s167, %s181
      %p183 = scmp.eq.s32.totalorder %s23, 0
      %p184 = por %p182, %p183
      %s185 = ssub.s32 %s24, %s36
      %p186 = scmp.eq.s32.totalorder %s185, 0
      %s188 = sadd.s32 %s187, 1
      %s189 = scalar_select %p186, %s187, %s188
      %p192 = pneg %p186
      %p193 = scmp.eq.s32.totalorder %s17, 3
      %p194 = por %p192, %p193
      %p195 = scmp.ne.s32.totalorder %s187, %s190
      %p196 = scmp.eq.s32.totalorder %s17, 0
      %p197 = por %p195, %p196
      %p198 = scmp.ne.s32.totalorder %s187, %s190
      %p199 = scmp.eq.s32.totalorder %s22, 3
      %p200 = por %p198, %p199
      %p201 = scmp.ne.s32.totalorder %s190, %s191
      %p202 = scmp.eq.s32.totalorder %s22, 0
      %p203 = por %p201, %p202
      %p204 = scmp.ne.s32.totalorder %s190, %s191
      %p205 = scmp.eq.s32.totalorder %s23, 3
      %p206 = por %p204, %p205
      %p208 = scmp.ne.s32.totalorder %s191, %s207
      %p209 = scmp.eq.s32.totalorder %s23, 0
      %p210 = por %p208, %p209
      %s211 = ssub.s32 %s24, %s36
      %p212 = scmp.eq.s32.totalorder %s211, 0
      %s214 = sadd.s32 %s213, 1
      %s215 = scalar_select %p212, %s213, %s214
      %p218 = pneg %p212
      %p219 = scmp.eq.s32.totalorder %s17, 3
      %p220 = por %p218, %p219
      %p221 = scmp.ne.s32.totalorder %s213, %s216
      %p222 = scmp.eq.s32.totalorder %s17, 0
      %p223 = por %p221, %p222
      %p224 = scmp.ne.s32.totalorder %s213, %s216
      %p225 = scmp.eq.s32.totalorder %s22, 3
      %p226 = por %p224, %p225
      %p227 = scmp.ne.s32.totalorder %s216, %s217
      %p228 = scmp.eq.s32.totalorder %s22, 0
      %p229 = por %p227, %p228
      %p230 = scmp.ne.s32.totalorder %s216, %s217
      %p231 = scmp.eq.s32.totalorder %s23, 3
      %p232 = por %p230, %p231
      %p234 = scmp.ne.s32.totalorder %s217, %s233
      %p235 = scmp.eq.s32.totalorder %s23, 0
      %p236 = por %p234, %p235
      %p237 = scmp.le.s32.totalorder 1, %s17
      %p238 = scmp.lt.s32.totalorder %s17, 5
      %p239 = pnand %p237, %p238
      %p240 = pneg %p239
      // Predicated region
      $region9: #{ngcf_forward.3} parent=5 // pred_check
        _
      $region10: #{ngcf_forward.3} parent=5 // pred_check_branch
        %242 = sbr.rel (%p239) target = $region12
      $region11: #{ngcf_forward.3} parent=5 // pred_region
        %s243 = ssub.s32 %s17, 1
        // Predicated region
        $region13: #{ngcf_forward.3} parent=11 // pred_check
          %p244 = pneg %p156
        $region14: #{ngcf_forward.3} parent=11 // pred_check_branch
          %246 = sbr.rel (%p244) target = $region16
        $region15: #{ngcf_forward.3} parent=11 // pred_region
          _
        $region16: #{ngcf_forward.3} parent=11 // pred_fallthru
          _
        // Predicated region
        $region17: #{ngcf_forward.3} parent=11 // pred_check
          %p247 = pneg %p177
        $region18: #{ngcf_forward.3} parent=11 // pred_check_branch
          %249 = sbr.rel (%p247) target = $region20
        $region19: #{ngcf_forward.3} parent=11 // pred_region
          _
        $region20: #{ngcf_forward.3} parent=11 // pred_fallthru
          _
      $region12: #{ngcf_forward.3} parent=5 // pred_fallthru
        _
      %p250 = scmp.lt.s32.totalorder %s17, 4
      // Predicated region
      $region21: #{ngcf_forward.3} parent=5 // pred_check
        %p251 = pneg %p250
      $region22: #{ngcf_forward.3} parent=5 // pred_check_branch
        %253 = sbr.rel (%p251) target = $region24
      $region23: #{ngcf_forward.3} parent=5 // pred_region
        // Predicated region
        $region25: #{ngcf_forward.3} parent=23 // pred_check
          %p254 = pneg %p51
        $region26: #{ngcf_forward.3} parent=23 // pred_check_branch
          %256 = sbr.rel (%p254) target = $region28
        $region27: #{ngcf_forward.3} parent=23 // pred_region
          %s257 = sand.u32 %s41, 1
          %s258 = sand.u32 %s41, 1
          %s259 = smul.addr %s258, 128
          %s260 = scalar_lea.vmem [#allocation3], %s259
          %s261 = smul.u32 16, %s24
          %s262 = smul.addr %s261, 2
          %s263 = sadd.s32 %s25, %s262
          %s264 = smul.addr %s263, 8
          %s265 = scalar_lea.vmem %s0, %s264
          // Predicated region
          $region29: #{ngcf_forward.3} parent=27 // pred_check
            _
          $region30: #{ngcf_forward.3} parent=27 // pred_check_branch
            %267 = sbr.rel (0) target = $region32
          $region31: #{ngcf_forward.3} parent=27 // pred_region
            // Predicated region
            $region33: #{ngcf_forward.3} parent=31 // pred_check
              _
            $region34: #{ngcf_forward.3} parent=31 // pred_check_branch
              %269 = sbr.rel (0) target = $region36
            $region35: #{ngcf_forward.3} parent=31 // pred_region
              // Predicated region
              $region48: #{ngcf_forward.3} parent=35 // pred_check
                _
              $region49: #{ngcf_forward.3} parent=35 // pred_check_branch
                %315 = sbr.rel (0) target = $region51
              $region50: #{ngcf_forward.3} parent=35 // pred_region
                loop: start=0, step=1, limit=1
                $region52: #{ngcf_forward.3} parent=50 // loop_pre_header
                  _
                $region53: #{ngcf_forward.3} parent=50 // loop_header
                  %s317 = sphi 0, %s321
                  %p318 = scmp.ge.s32.totalorder %s317, 1
                  %s322 = sphi %s265, %s265
                  %s323 = sphi %s260, %s260
                $region54: #{ngcf_forward.3} parent=50 // loop_header_branch
                  %320 = sbr.rel (%p318) target = $region58
                $region55: #{ngcf_forward.3} parent=50 // loop_body
                  %v324 = vld [vmem:[%s322] sm:$0xff]
                  %325 = vst [vmem:[%s323] sm:$0xff] %v324
                  %v326 = vld [vmem:[%s322 + $0x10] sm:$0xff]
                  %327 = vst [vmem:[%s323 + $0x8] sm:$0xff] %v326
                  %v328 = vld [vmem:[%s322 + $0x20] sm:$0xff]
                  %329 = vst [vmem:[%s323 + $0x10] sm:$0xff] %v328
                  %v330 = vld [vmem:[%s322 + $0x30] sm:$0xff]
                  %331 = vst [vmem:[%s323 + $0x18] sm:$0xff] %v330
                  %v332 = vld [vmem:[%s322 + $0x40] sm:$0xff]
                  %333 = vst [vmem:[%s323 + $0x20] sm:$0xff] %v332
                  %v334 = vld [vmem:[%s322 + $0x50] sm:$0xff]
                  %335 = vst [vmem:[%s323 + $0x28] sm:$0xff] %v334
                  %v336 = vld [vmem:[%s322 + $0x60] sm:$0xff]
                  %337 = vst [vmem:[%s323 + $0x30] sm:$0xff] %v336
                  %v338 = vld [vmem:[%s322 + $0x70] sm:$0xff]
                  %339 = vst [vmem:[%s323 + $0x38] sm:$0xff] %v338
                  %v340 = vld [vmem:[%s322 + $0x80] sm:$0xff]
                  %341 = vst [vmem:[%s323 + $0x40] sm:$0xff] %v340
                  %v342 = vld [vmem:[%s322 + $0x90] sm:$0xff]
                  %343 = vst [vmem:[%s323 + $0x48] sm:$0xff] %v342
                  %v344 = vld [vmem:[%s322 + $0xa0] sm:$0xff]
                  %345 = vst [vmem:[%s323 + $0x50] sm:$0xff] %v344
                  %v346 = vld [vmem:[%s322 + $0xb0] sm:$0xff]
                  %347 = vst [vmem:[%s323 + $0x58] sm:$0xff] %v346
                  %v348 = vld [vmem:[%s322 + $0xc0] sm:$0xff]
                  %349 = vst [vmem:[%s323 + $0x60] sm:$0xff] %v348
                  %v350 = vld [vmem:[%s322 + $0xd0] sm:$0xff]
                  %351 = vst [vmem:[%s323 + $0x68] sm:$0xff] %v350
                  %v352 = vld [vmem:[%s322 + $0xe0] sm:$0xff]
                  %353 = vst [vmem:[%s323 + $0x70] sm:$0xff] %v352
                  %v354 = vld [vmem:[%s322 + $0xf0] sm:$0xff]
                  %355 = vst [vmem:[%s323 + $0x78] sm:$0xff] %v354
                $region56: #{ngcf_forward.3} parent=50 // loop_footer
                  %s321 = sadd.s32 1, %s317
                $region57: #{ngcf_forward.3} parent=50 // loop_footer_branch
                  %316 = sbr.rel target = $region53
                $region58: #{ngcf_forward.3} parent=50 // loop_exit
                  _
              $region51: #{ngcf_forward.3} parent=35 // pred_fallthru
                _
              // Predicated region
              $region59: #{ngcf_forward.3} parent=35 // pred_check
                _
              $region60: #{ngcf_forward.3} parent=35 // pred_check_branch
                %357 = sbr.rel target = $region62
              $region61: #{ngcf_forward.3} parent=35 // pred_region
                _
              $region62: #{ngcf_forward.3} parent=35 // pred_fallthru
                _
            $region36: #{ngcf_forward.3} parent=31 // pred_fallthru
              _
            // Predicated region
            $region37: #{ngcf_forward.3} parent=31 // pred_check
              _
            $region38: #{ngcf_forward.3} parent=31 // pred_check_branch
              %271 = sbr.rel target = $region40
            $region39: #{ngcf_forward.3} parent=31 // pred_region
              %s273 = ssub.s32 256, 1
              loop: start=0, step=1, limit=1
              $region41: #{ngcf_forward.3} parent=39 // loop_pre_header
                _
              $region42: #{ngcf_forward.3} parent=39 // loop_header
                %s275 = sphi 0, %s279
                %p276 = scmp.ge.s32.totalorder %s275, 1
                %s280 = sphi %s265, %s265
                %s281 = sphi %s260, %s260
              $region43: #{ngcf_forward.3} parent=39 // loop_header_branch
                %278 = sbr.rel (%p276) target = $region47
              $region44: #{ngcf_forward.3} parent=39 // loop_body
                %v282 = vld [vmem:[%s280] sm:%s273]
                %283 = vst [vmem:[%s281] sm:%s273] %v282
                %v284 = vld [vmem:[%s280 + $0x10] sm:%s273]
                %285 = vst [vmem:[%s281 + $0x8] sm:%s273] %v284
                %v286 = vld [vmem:[%s280 + $0x20] sm:%s273]
                %287 = vst [vmem:[%s281 + $0x10] sm:%s273] %v286
                %v288 = vld [vmem:[%s280 + $0x30] sm:%s273]
                %289 = vst [vmem:[%s281 + $0x18] sm:%s273] %v288
                %v290 = vld [vmem:[%s280 + $0x40] sm:%s273]
                %291 = vst [vmem:[%s281 + $0x20] sm:%s273] %v290
                %v292 = vld [vmem:[%s280 + $0x50] sm:%s273]
                %293 = vst [vmem:[%s281 + $0x28] sm:%s273] %v292
                %v294 = vld [vmem:[%s280 + $0x60] sm:%s273]
                %295 = vst [vmem:[%s281 + $0x30] sm:%s273] %v294
                %v296 = vld [vmem:[%s280 + $0x70] sm:%s273]
                %297 = vst [vmem:[%s281 + $0x38] sm:%s273] %v296
                %v298 = vld [vmem:[%s280 + $0x80] sm:%s273]
                %299 = vst [vmem:[%s281 + $0x40] sm:%s273] %v298
                %v300 = vld [vmem:[%s280 + $0x90] sm:%s273]
                %301 = vst [vmem:[%s281 + $0x48] sm:%s273] %v300
                %v302 = vld [vmem:[%s280 + $0xa0] sm:%s273]
                %303 = vst [vmem:[%s281 + $0x50] sm:%s273] %v302
                %v304 = vld [vmem:[%s280 + $0xb0] sm:%s273]
                %305 = vst [vmem:[%s281 + $0x58] sm:%s273] %v304
                %v306 = vld [vmem:[%s280 + $0xc0] sm:%s273]
                %307 = vst [vmem:[%s281 + $0x60] sm:%s273] %v306
                %v308 = vld [vmem:[%s280 + $0xd0] sm:%s273]
                %309 = vst [vmem:[%s281 + $0x68] sm:%s273] %v308
                %v310 = vld [vmem:[%s280 + $0xe0] sm:%s273]
                %311 = vst [vmem:[%s281 + $0x70] sm:%s273] %v310
                %v312 = vld [vmem:[%s280 + $0xf0] sm:%s273]
                %313 = vst [vmem:[%s281 + $0x78] sm:%s273] %v312
              $region45: #{ngcf_forward.3} parent=39 // loop_footer
                %s279 = sadd.s32 1, %s275
              $region46: #{ngcf_forward.3} parent=39 // loop_footer_branch
                %274 = sbr.rel target = $region42
              $region47: #{ngcf_forward.3} parent=39 // loop_exit
                _
            $region40: #{ngcf_forward.3} parent=31 // pred_fallthru
              _
          $region32: #{ngcf_forward.3} parent=27 // pred_fallthru
            _
          %358 = vnop
        $region28: #{ngcf_forward.3} parent=23 // pred_fallthru
          _
        // Predicated region
        $region63: #{ngcf_forward.3} parent=23 // pred_check
          %p359 = pneg %p77
        $region64: #{ngcf_forward.3} parent=23 // pred_check_branch
          %361 = sbr.rel (%p359) target = $region66
        $region65: #{ngcf_forward.3} parent=23 // pred_region
          %s362 = smul.u32 16, %s25
          %p363 = scmp.lt.s32.totalorder %s362, 31
          %s364 = scalar_select %p363, %s362, 31
          %s365 = smul.addr %s364, 8
          %s366 = scalar_lea.vmem %s1, %s365
          %s367 = smul.u32 16, %s25
        $region66: #{ngcf_forward.3} parent=23 // pred_fallthru
          _
        // Predicated region
        $region67: #{ngcf_forward.3} parent=23 // pred_check
          %p368 = pneg %p103
        $region68: #{ngcf_forward.3} parent=23 // pred_check_branch
          %370 = sbr.rel (%p368) target = $region70
        $region69: #{ngcf_forward.3} parent=23 // pred_region
          %s371 = smul.u32 16, %s24
          %p372 = scmp.lt.s32.totalorder %s371, 31
          %s373 = scalar_select %p372, %s371, 31
          %s374 = smul.addr %s373, 8
          %s375 = scalar_lea.vmem %s2, %s374
          %s376 = smul.u32 16, %s24
        $region70: #{ngcf_forward.3} parent=23 // pred_fallthru
          _
        // Predicated region
        $region71: #{ngcf_forward.3} parent=23 // pred_check
          %p377 = pneg %p129
        $region72: #{ngcf_forward.3} parent=23 // pred_check_branch
          %379 = sbr.rel (%p377) target = $region74
        $region73: #{ngcf_forward.3} parent=23 // pred_region
          %s380 = smul.u32 16, %s24
          %p381 = scmp.lt.s32.totalorder %s380, 31
          %s382 = scalar_select %p381, %s380, 31
          %s383 = smul.addr %s382, 8
          %s384 = scalar_lea.vmem %s3, %s383
          %s385 = smul.u32 16, %s24
        $region74: #{ngcf_forward.3} parent=23 // pred_fallthru
          _
      $region24: #{ngcf_forward.3} parent=5 // pred_fallthru
        _
      %p386 = scmp.le.s32.totalorder 1, %s17
      %p387 = scmp.lt.s32.totalorder %s17, 5
      %p388 = pnand %p386, %p387
      %p389 = pneg %p388
      // Predicated region
      $region75: #{ngcf_forward.3} parent=5 // pred_check
        _
      $region76: #{ngcf_forward.3} parent=5 // pred_check_branch
        %391 = sbr.rel (%p388) target = $region78
      $region77: #{ngcf_forward.3} parent=5 // pred_region
        %s392 = ssub.s32 %s17, 1
        %s393 = sand.u32 %s44, 1
        %s394 = sand.u32 %s44, 1
        %s395 = smul.addr %s394, 128
        %s396 = scalar_lea.vmem [#allocation3], %s395
        // Predicated region
        $region79: #{ngcf_forward.3} parent=77 // pred_check
          %p397 = pneg %p57
        $region80: #{ngcf_forward.3} parent=77 // pred_check_branch
          %399 = sbr.rel (%p397) target = $region82
        $region81: #{ngcf_forward.3} parent=77 // pred_region
          _
        $region82: #{ngcf_forward.3} parent=77 // pred_fallthru
          _
        %s400 = sand.u32 %s44, 1
        %s401 = sand.u32 %s44, 1
        %s402 = smul.addr %s401, 128
        %s403 = scalar_lea.vmem [#allocation3], %s402
        %p404 = pneg %p57
        %p405 = pneg %p54
        %s406 = smul.u32 16, %s27
        %p407 = scmp.lt.s32.totalorder %s406, 31
        %s408 = scalar_select %p407, %s406, 31
        %s409 = smul.addr %s408, 8
        %s410 = scalar_lea.vmem %s1, %s409
        %p411 = pneg %p83
        %p412 = pneg %p80
        %s413 = smul.u32 16, %s26
        %p414 = scmp.lt.s32.totalorder %s413, 31
        %s415 = scalar_select %p414, %s413, 31
        %s416 = smul.addr %s415, 8
        %s417 = scalar_lea.vmem %s2, %s416
        %p418 = pneg %p109
        %p419 = pneg %p106
        %s420 = smul.u32 16, %s26
        %p421 = scmp.lt.s32.totalorder %s420, 31
        %s422 = scalar_select %p421, %s420, 31
        %s423 = smul.addr %s422, 8
        %s424 = scalar_lea.vmem %s3, %s423
        %p425 = pneg %p135
        %p426 = pneg %p132
        %p427 = pneg %p156
        %p428 = pneg %p153
        %p429 = pneg %p177
        %p430 = pneg %p174
        %p431 = pneg %p203
        %p432 = pneg %p200
        %s433 = sand.u32 %s190, 1
        %s434 = scalar_lea.sflag [#allocation5], %s433
        %s435 = sand.u32 %s190, 1
        %s436 = smul.addr %s435, 128
        %s437 = scalar_lea.vmem [#allocation4], %s436
        %p438 = pneg %p229
        %p439 = pneg %p226
        %s440 = smul.u32 16, %s26
        %p441 = scmp.lt.s32.totalorder %s440, 31
        %s442 = scalar_select %p441, %s440, 31
        %s443 = smul.addr %s442, 8
        %s444 = scalar_lea.vmem %s7, %s443
        %s445 = smul.u32 16, %s26
        %s446 = smul.u32 16, %s27
        %p447 = scmp.lt.s32.totalorder %s446, 31
        %s448 = scalar_select %p447, %s446, 31
        %s449 = smul.addr %s448, 8
        %s450 = scalar_lea.vmem %s1, %s449
        %s451 = smul.u32 16, %s27
        %s452 = smul.u32 16, %s26
        %p453 = scmp.lt.s32.totalorder %s452, 31
        %s454 = scalar_select %p453, %s452, 31
        %s455 = smul.addr %s454, 8
        %s456 = scalar_lea.vmem %s2, %s455
        %s457 = smul.u32 16, %s26
        %s458 = smul.u32 16, %s26
        %p459 = scmp.lt.s32.totalorder %s458, 31
        %s460 = scalar_select %p459, %s458, 31
        %s461 = smul.addr %s460, 8
        %s462 = scalar_lea.vmem %s3, %s461
        %s463 = smul.u32 16, %s26
        %s464 = smul.u32 16, %s26
        %s465 = smul.u32 16, %s26
        %p466 = scmp.lt.s32.totalorder %s465, 31
        %s467 = scalar_select %p466, %s465, 31
        %s468 = smul.addr %s467, 8
        %s469 = scalar_lea.vmem %s7, %s468
        %s470 = smul.u32 16, %s26
        %p471 = scmp.eq.s32.totalorder %s27, 0
        // Predicated region
        $region83: #{ngcf_forward.3} parent=77 // pred_check
          %p472 = pneg %p471
        $region84: #{ngcf_forward.3} parent=77 // pred_check_branch
          %474 = sbr.rel (%p472) target = $region86
        $region85: #{ngcf_forward.3} parent=77 // pred_region
          %vm475 = vcmask 261120
          %476 = vst.msk [vmem:[#allocation2] sm:$0xff] %vm475, 0.0
          %477 = vst.msk [vmem:[#allocation2 + $0x8] sm:$0xff] %vm475, 0.0
          %478 = vst.msk [vmem:[#allocation2 + $0x10] sm:$0xff] %vm475, 0.0
          %479 = vst.msk [vmem:[#allocation2 + $0x18] sm:$0xff] %vm475, 0.0
          %480 = vst.msk [vmem:[#allocation2 + $0x20] sm:$0xff] %vm475, 0.0
          %481 = vst.msk [vmem:[#allocation2 + $0x28] sm:$0xff] %vm475, 0.0
          %482 = vst.msk [vmem:[#allocation2 + $0x30] sm:$0xff] %vm475, 0.0
          %483 = vst.msk [vmem:[#allocation2 + $0x38] sm:$0xff] %vm475, 0.0
          %484 = vst.msk [vmem:[#allocation2 + $0x40] sm:$0xff] %vm475, 0.0
          %485 = vst.msk [vmem:[#allocation2 + $0x48] sm:$0xff] %vm475, 0.0
          %486 = vst.msk [vmem:[#allocation2 + $0x50] sm:$0xff] %vm475, 0.0
          %487 = vst.msk [vmem:[#allocation2 + $0x58] sm:$0xff] %vm475, 0.0
          %488 = vst.msk [vmem:[#allocation2 + $0x60] sm:$0xff] %vm475, 0.0
          %489 = vst.msk [vmem:[#allocation2 + $0x68] sm:$0xff] %vm475, 0.0
          %490 = vst.msk [vmem:[#allocation2 + $0x70] sm:$0xff] %vm475, 0.0
          %491 = vst.msk [vmem:[#allocation2 + $0x78] sm:$0xff] %vm475, 0.0
        $region86: #{ngcf_forward.3} parent=77 // pred_fallthru
          _
        %v492 = vld [vmem:[#allocation2] sm:$0xff]
        %v493 = vld [vmem:[#allocation2 + $0x8] sm:$0xff]
        %v494 = vld [vmem:[#allocation2 + $0x10] sm:$0xff]
        %v495 = vld [vmem:[#allocation2 + $0x18] sm:$0xff]
        %v496 = vld [vmem:[#allocation2 + $0x20] sm:$0xff]
        %v497 = vld [vmem:[#allocation2 + $0x28] sm:$0xff]
        %v498 = vld [vmem:[#allocation2 + $0x30] sm:$0xff]
        %v499 = vld [vmem:[#allocation2 + $0x38] sm:$0xff]
        %v500 = vld [vmem:[#allocation2 + $0x40] sm:$0xff]
        %v501 = vld [vmem:[#allocation2 + $0x48] sm:$0xff]
        %v502 = vld [vmem:[#allocation2 + $0x50] sm:$0xff]
        %v503 = vld [vmem:[#allocation2 + $0x58] sm:$0xff]
        %v504 = vld [vmem:[#allocation2 + $0x60] sm:$0xff]
        %v505 = vld [vmem:[#allocation2 + $0x68] sm:$0xff]
        %v506 = vld [vmem:[#allocation2 + $0x70] sm:$0xff]
        %v507 = vld [vmem:[#allocation2 + $0x78] sm:$0xff]
        %v508 = vld [vmem:[%s396] sm:$0xff]
        %v509 = vld [vmem:[%s396 + $0x8] sm:$0xff]
        %v510 = vld [vmem:[%s396 + $0x10] sm:$0xff]
        %v511 = vld [vmem:[%s396 + $0x18] sm:$0xff]
        %v512 = vld [vmem:[%s396 + $0x20] sm:$0xff]
        %v513 = vld [vmem:[%s396 + $0x28] sm:$0xff]
        %v514 = vld [vmem:[%s396 + $0x30] sm:$0xff]
        %v515 = vld [vmem:[%s396 + $0x38] sm:$0xff]
        %v516 = vld [vmem:[%s396 + $0x40] sm:$0xff]
        %v517 = vld [vmem:[%s396 + $0x48] sm:$0xff]
        %v518 = vld [vmem:[%s396 + $0x50] sm:$0xff]
        %v519 = vld [vmem:[%s396 + $0x58] sm:$0xff]
        %v520 = vld [vmem:[%s396 + $0x60] sm:$0xff]
        %v521 = vld [vmem:[%s396 + $0x68] sm:$0xff]
        %v522 = vld [vmem:[%s396 + $0x70] sm:$0xff]
        %v523 = vld [vmem:[%s396 + $0x78] sm:$0xff]
        %v524 = vld [vmem:[%s450] sm:$0xff]
        %v525 = vld [vmem:[%s450 + $0x8] sm:$0xff]
        %v526 = vld [vmem:[%s450 + $0x10] sm:$0xff]
        %v527 = vld [vmem:[%s450 + $0x18] sm:$0xff]
        %v528 = vld [vmem:[%s450 + $0x20] sm:$0xff]
        %v529 = vld [vmem:[%s450 + $0x28] sm:$0xff]
        %v530 = vld [vmem:[%s450 + $0x30] sm:$0xff]
        %v531 = vld [vmem:[%s450 + $0x38] sm:$0xff]
        %v532 = vld [vmem:[%s450 + $0x40] sm:$0xff]
        %v533 = vld [vmem:[%s450 + $0x48] sm:$0xff]
        %v534 = vld [vmem:[%s450 + $0x50] sm:$0xff]
        %v535 = vld [vmem:[%s450 + $0x58] sm:$0xff]
        %v536 = vld [vmem:[%s450 + $0x60] sm:$0xff]
        %v537 = vld [vmem:[%s450 + $0x68] sm:$0xff]
        %v538 = vld [vmem:[%s450 + $0x70] sm:$0xff]
        %v539 = vld [vmem:[%s450 + $0x78] sm:$0xff]
        %540 = vmatprep.subr.mxu0 0.0
        %541 = vmatpush1.msra.mxu0 %v539
        %542 = vmatprep.subr.mxu0 0.0
        %543 = vmatpush1.msra.mxu0 %v538
        %544 = vmatprep.subr.mxu0 0.0
        %545 = vmatpush1.msra.mxu0 %v537
        %546 = vmatprep.subr.mxu0 0.0
        %547 = vmatpush1.msra.mxu0 %v536
        %548 = vmatprep.subr.mxu0 0.0
        %549 = vmatpush1.msra.mxu0 %v535
        %550 = vmatprep.subr.mxu0 0.0
        %551 = vmatpush1.msra.mxu0 %v534
        %552 = vmatprep.subr.mxu0 0.0
        %553 = vmatpush1.msra.mxu0 %v533
        %554 = vmatprep.subr.mxu0 0.0
        %555 = vmatpush1.msra.mxu0 %v532
        %556 = vmatprep.subr.mxu0 0.0
        %557 = vmatpush1.msra.mxu0 %v531
        %558 = vmatprep.subr.mxu0 0.0
        %559 = vmatpush1.msra.mxu0 %v530
        %560 = vmatprep.subr.mxu0 0.0
        %561 = vmatpush1.msra.mxu0 %v529
        %562 = vmatprep.subr.mxu0 0.0
        %563 = vmatpush1.msra.mxu0 %v528
        %564 = vmatprep.subr.mxu0 0.0
        %565 = vmatpush1.msra.mxu0 %v527
        %566 = vmatprep.subr.mxu0 0.0
        %567 = vmatpush1.msra.mxu0 %v526
        %568 = vmatprep.subr.mxu0 0.0
        %569 = vmatpush1.msra.mxu0 %v525
        %570 = vmatprep.subr.mxu0 0.0
        %571 = vmatpush1.msra.mxu0 %v524
        %572 = vmatprep.subr.mxu0 0.0
        %573 = vmatpush2.msra.mxu0 0.0
        %574 = vmatprep.subr.mxu0 0.0
        %575 = vmatpush2.msra.mxu0 0.0
        %576 = vmatprep.subr.mxu0 0.0
        %577 = vmatpush2.msra.mxu0 0.0
        %578 = vmatprep.subr.mxu0 0.0
        %579 = vmatpush2.msra.mxu0 0.0
        %580 = vmatprep.subr.mxu0 0.0
        %581 = vmatpush2.msra.mxu0 0.0
        %582 = vmatprep.subr.mxu0 0.0
        %583 = vmatpush2.msra.mxu0 0.0
        %584 = vmatprep.subr.mxu0 0.0
        %585 = vmatpush2.msra.mxu0 0.0
        %586 = vmatprep.subr.mxu0 0.0
        %587 = vmatpush2.msra.mxu0 0.0
        %588 = vmatprep.subr.mxu0 0.0
        %589 = vmatpush2.msra.mxu0 0.0
        %590 = vmatprep.subr.mxu0 0.0
        %591 = vmatpush2.msra.mxu0 0.0
        %592 = vmatprep.subr.mxu0 0.0
        %593 = vmatpush2.msra.mxu0 0.0
        %594 = vmatprep.subr.mxu0 0.0
        %595 = vmatpush2.msra.mxu0 0.0
        %596 = vmatprep.subr.mxu0 0.0
        %597 = vmatpush2.msra.mxu0 0.0
        %598 = vmatprep.subr.mxu0 0.0
        %599 = vmatpush2.msra.mxu0 0.0
        %600 = vmatprep.subr.mxu0 0.0
        %601 = vmatpush2.msra.mxu0 0.0
        %602 = vmatprep.subr.mxu0 0.0
        %603 = vmatpush2.msra.mxu0 0.0
        %604 = vmatprep.mubr.f32.mxu0 0.0
        %605 = vmatmul.mubr.f32.gmra.mxu0 %v508
        %v606 = vpop.f32.mrf.mxu0
        %v607 = vadd.f32 0.0, %v606
        %v608 = vpop.f32.mrf.mxu0
        %609 = vmatprep.mubr.f32.mxu0 0.0
        %610 = vmatmul.mubr.f32.gmra.mxu0 %v509
        %v611 = vpop.f32.mrf.mxu0
        %v612 = vadd.f32 0.0, %v611
        %v613 = vpop.f32.mrf.mxu0
        %614 = vmatprep.mubr.f32.mxu0 0.0
        %615 = vmatmul.mubr.f32.gmra.mxu0 %v510
        %v616 = vpop.f32.mrf.mxu0
        %v617 = vadd.f32 0.0, %v616
        %v618 = vpop.f32.mrf.mxu0
        %619 = vmatprep.mubr.f32.mxu0 0.0
        %620 = vmatmul.mubr.f32.gmra.mxu0 %v511
        %v621 = vpop.f32.mrf.mxu0
        %v622 = vadd.f32 0.0, %v621
        %v623 = vpop.f32.mrf.mxu0
        %624 = vmatprep.mubr.f32.mxu0 0.0
        %625 = vmatmul.mubr.f32.gmra.mxu0 %v512
        %v626 = vpop.f32.mrf.mxu0
        %v627 = vadd.f32 0.0, %v626
        %v628 = vpop.f32.mrf.mxu0
        %629 = vmatprep.mubr.f32.mxu0 0.0
        %630 = vmatmul.mubr.f32.gmra.mxu0 %v513
        %v631 = vpop.f32.mrf.mxu0
        %v632 = vadd.f32 0.0, %v631
        %v633 = vpop.f32.mrf.mxu0
        %634 = vmatprep.mubr.f32.mxu0 0.0
        %635 = vmatmul.mubr.f32.gmra.mxu0 %v514
        %v636 = vpop.f32.mrf.mxu0
        %v637 = vadd.f32 0.0, %v636
        %v638 = vpop.f32.mrf.mxu0
        %639 = vmatprep.mubr.f32.mxu0 0.0
        %640 = vmatmul.mubr.f32.gmra.mxu0 %v515
        %v641 = vpop.f32.mrf.mxu0
        %v642 = vadd.f32 0.0, %v641
        %v643 = vpop.f32.mrf.mxu0
        %644 = vmatprep.mubr.f32.mxu0 0.0
        %645 = vmatmul.mubr.f32.gmra.mxu0 %v516
        %v646 = vpop.f32.mrf.mxu0
        %v647 = vadd.f32 0.0, %v646
        %v648 = vpop.f32.mrf.mxu0
        %649 = vmatprep.mubr.f32.mxu0 0.0
        %650 = vmatmul.mubr.f32.gmra.mxu0 %v517
        %v651 = vpop.f32.mrf.mxu0
        %v652 = vadd.f32 0.0, %v651
        %v653 = vpop.f32.mrf.mxu0
        %654 = vmatprep.mubr.f32.mxu0 0.0
        %655 = vmatmul.mubr.f32.gmra.mxu0 %v518
        %v656 = vpop.f32.mrf.mxu0
        %v657 = vadd.f32 0.0, %v656
        %v658 = vpop.f32.mrf.mxu0
        %659 = vmatprep.mubr.f32.mxu0 0.0
        %660 = vmatmul.mubr.f32.gmra.mxu0 %v519
        %v661 = vpop.f32.mrf.mxu0
        %v662 = vadd.f32 0.0, %v661
        %v663 = vpop.f32.mrf.mxu0
        %664 = vmatprep.mubr.f32.mxu0 0.0
        %665 = vmatmul.mubr.f32.gmra.mxu0 %v520
        %v666 = vpop.f32.mrf.mxu0
        %v667 = vadd.f32 0.0, %v666
        %v668 = vpop.f32.mrf.mxu0
        %669 = vmatprep.mubr.f32.mxu0 0.0
        %670 = vmatmul.mubr.f32.gmra.mxu0 %v521
        %v671 = vpop.f32.mrf.mxu0
        %v672 = vadd.f32 0.0, %v671
        %v673 = vpop.f32.mrf.mxu0
        %674 = vmatprep.mubr.f32.mxu0 0.0
        %675 = vmatmul.mubr.f32.gmra.mxu0 %v522
        %v676 = vpop.f32.mrf.mxu0
        %v677 = vadd.f32 0.0, %v676
        %v678 = vpop.f32.mrf.mxu0
        %679 = vmatprep.mubr.f32.mxu0 0.0
        %680 = vmatmul.mubr.f32.gmra.mxu0 %v523
        %v681 = vpop.f32.mrf.mxu0
        %v682 = vadd.f32 0.0, %v681
        %v683 = vpop.f32.mrf.mxu0
        %684 = vdwg.mxu0
        %v685 = vadd.f32 %v492, %v607
        %v686 = vadd.f32 %v493, %v612
        %v687 = vadd.f32 %v494, %v617
        %v688 = vadd.f32 %v495, %v622
        %v689 = vadd.f32 %v496, %v627
        %v690 = vadd.f32 %v497, %v632
        %v691 = vadd.f32 %v498, %v637
        %v692 = vadd.f32 %v499, %v642
        %v693 = vadd.f32 %v500, %v647
        %v694 = vadd.f32 %v501, %v652
        %v695 = vadd.f32 %v502, %v657
        %v696 = vadd.f32 %v503, %v662
        %v697 = vadd.f32 %v504, %v667
        %v698 = vadd.f32 %v505, %v672
        %v699 = vadd.f32 %v506, %v677
        %v700 = vadd.f32 %v507, %v682
        %vm701 = vcmask 261120
        %702 = vst.msk [vmem:[#allocation2] sm:$0xff] %vm701, %v685
        %703 = vst.msk [vmem:[#allocation2 + $0x8] sm:$0xff] %vm701, %v686
        %704 = vst.msk [vmem:[#allocation2 + $0x10] sm:$0xff] %vm701, %v687
        %705 = vst.msk [vmem:[#allocation2 + $0x18] sm:$0xff] %vm701, %v688
        %706 = vst.msk [vmem:[#allocation2 + $0x20] sm:$0xff] %vm701, %v689
        %707 = vst.msk [vmem:[#allocation2 + $0x28] sm:$0xff] %vm701, %v690
        %708 = vst.msk [vmem:[#allocation2 + $0x30] sm:$0xff] %vm701, %v691
        %709 = vst.msk [vmem:[#allocation2 + $0x38] sm:$0xff] %vm701, %v692
        %710 = vst.msk [vmem:[#allocation2 + $0x40] sm:$0xff] %vm701, %v693
        %711 = vst.msk [vmem:[#allocation2 + $0x48] sm:$0xff] %vm701, %v694
        %712 = vst.msk [vmem:[#allocation2 + $0x50] sm:$0xff] %vm701, %v695
        %713 = vst.msk [vmem:[#allocation2 + $0x58] sm:$0xff] %vm701, %v696
        %714 = vst.msk [vmem:[#allocation2 + $0x60] sm:$0xff] %vm701, %v697
        %715 = vst.msk [vmem:[#allocation2 + $0x68] sm:$0xff] %vm701, %v698
        %716 = vst.msk [vmem:[#allocation2 + $0x70] sm:$0xff] %vm701, %v699
        %717 = vst.msk [vmem:[#allocation2 + $0x78] sm:$0xff] %vm701, %v700
        %p718 = scmp.eq.s32.totalorder %s27, 1
        // Predicated region
        $region87: #{ngcf_forward.3} parent=77 // pred_check
          %p719 = pneg %p718
        $region88: #{ngcf_forward.3} parent=77 // pred_check_branch
          %721 = sbr.rel (%p719) target = $region90
        $region89: #{ngcf_forward.3} parent=77 // pred_region
          %v722 = vld [vmem:[#allocation2] sm:$0xff]
          %v723 = vld [vmem:[#allocation2 + $0x8] sm:$0xff]
          %v724 = vld [vmem:[#allocation2 + $0x10] sm:$0xff]
          %v725 = vld [vmem:[#allocation2 + $0x18] sm:$0xff]
          %v726 = vld [vmem:[#allocation2 + $0x20] sm:$0xff]
          %v727 = vld [vmem:[#allocation2 + $0x28] sm:$0xff]
          %v728 = vld [vmem:[#allocation2 + $0x30] sm:$0xff]
          %v729 = vld [vmem:[#allocation2 + $0x38] sm:$0xff]
          %v730 = vld [vmem:[#allocation2 + $0x40] sm:$0xff]
          %v731 = vld [vmem:[#allocation2 + $0x48] sm:$0xff]
          %v732 = vld [vmem:[#allocation2 + $0x50] sm:$0xff]
          %v733 = vld [vmem:[#allocation2 + $0x58] sm:$0xff]
          %v734 = vld [vmem:[#allocation2 + $0x60] sm:$0xff]
          %v735 = vld [vmem:[#allocation2 + $0x68] sm:$0xff]
          %v736 = vld [vmem:[#allocation2 + $0x70] sm:$0xff]
          %v737 = vld [vmem:[#allocation2 + $0x78] sm:$0xff]
          %v738 = vld [vmem:[%s456] sm:$0xff]
          %v739 = vld [vmem:[%s456 + $0x8] sm:$0xff]
          %v740 = vld [vmem:[%s456 + $0x10] sm:$0xff]
          %v741 = vld [vmem:[%s456 + $0x18] sm:$0xff]
          %v742 = vld [vmem:[%s456 + $0x20] sm:$0xff]
          %v743 = vld [vmem:[%s456 + $0x28] sm:$0xff]
          %v744 = vld [vmem:[%s456 + $0x30] sm:$0xff]
          %v745 = vld [vmem:[%s456 + $0x38] sm:$0xff]
          %v746 = vld [vmem:[%s456 + $0x40] sm:$0xff]
          %v747 = vld [vmem:[%s456 + $0x48] sm:$0xff]
          %v748 = vld [vmem:[%s456 + $0x50] sm:$0xff]
          %v749 = vld [vmem:[%s456 + $0x58] sm:$0xff]
          %v750 = vld [vmem:[%s456 + $0x60] sm:$0xff]
          %v751 = vld [vmem:[%s456 + $0x68] sm:$0xff]
          %v752 = vld [vmem:[%s456 + $0x70] sm:$0xff]
          %v753 = vld [vmem:[%s456 + $0x78] sm:$0xff]
          %v754 = vadd.f32 %v722, %v738
          %v755 = vadd.f32 %v723, %v739
          %v756 = vadd.f32 %v724, %v740
          %v757 = vadd.f32 %v725, %v741
          %v758 = vadd.f32 %v726, %v742
          %v759 = vadd.f32 %v727, %v743
          %v760 = vadd.f32 %v728, %v744
          %v761 = vadd.f32 %v729, %v745
          %v762 = vadd.f32 %v730, %v746
          %v763 = vadd.f32 %v731, %v747
          %v764 = vadd.f32 %v732, %v748
          %v765 = vadd.f32 %v733, %v749
          %v766 = vadd.f32 %v734, %v750
          %v767 = vadd.f32 %v735, %v751
          %v768 = vadd.f32 %v736, %v752
          %v769 = vadd.f32 %v737, %v753
          %v770 = vld [vmem:[%s4] sm:$0xff]
          %v771 = vld [vmem:[%s4 + $0x8] sm:$0xff]
          %v772 = vld [vmem:[%s4 + $0x10] sm:$0xff]
          %v773 = vld [vmem:[%s4 + $0x18] sm:$0xff]
          %v774 = vmul.f32 %v722, %v738
          %v775 = vmul.f32 %v723, %v739
          %v776 = vmul.f32 %v724, %v740
          %v777 = vmul.f32 %v725, %v741
          %v778 = vmul.f32 %v726, %v742
          %v779 = vmul.f32 %v727, %v743
          %v780 = vmul.f32 %v728, %v744
          %v781 = vmul.f32 %v729, %v745
          %v782 = vmul.f32 %v730, %v746
          %v783 = vmul.f32 %v731, %v747
          %v784 = vmul.f32 %v732, %v748
          %v785 = vmul.f32 %v733, %v749
          %v786 = vmul.f32 %v734, %v750
          %v787 = vmul.f32 %v735, %v751
          %v788 = vmul.f32 %v736, %v752
          %v789 = vmul.f32 %v737, %v753
          %v790 = vld [vmem:[%s5] sm:$0xff]
          %v791 = vld [vmem:[%s5 + $0x8] sm:$0xff]
          %v792 = vld [vmem:[%s5 + $0x10] sm:$0xff]
          %v793 = vld [vmem:[%s5 + $0x18] sm:$0xff]
          %v795 = vsel %vm701, %v774, 0
          %v798 = vsel %vm701, %v775, 0
          %v801 = vsel %vm701, %v776, 0
          %v804 = vsel %vm701, %v777, 0
          %v807 = vsel %vm701, %v778, 0
          %v810 = vsel %vm701, %v779, 0
          %v813 = vsel %vm701, %v780, 0
          %v816 = vsel %vm701, %v781, 0
          %v819 = vsel %vm701, %v782, 0
          %v822 = vsel %vm701, %v783, 0
          %v825 = vsel %vm701, %v784, 0
          %v828 = vsel %vm701, %v785, 0
          %v831 = vsel %vm701, %v786, 0
          %v834 = vsel %vm701, %v787, 0
          %v837 = vsel %vm701, %v788, 0
          %v840 = vsel %vm701, %v789, 0
          %842 = vmatprep.subr.mxu0 0.0
          %843 = vmatpush1.msra.mxu0 0.0
          %844 = vmatprep.subr.mxu0 0.0
          %845 = vmatpush1.msra.mxu0 0.0
          %846 = vmatprep.subr.mxu0 0.0
          %847 = vmatpush1.msra.mxu0 0.0
          %848 = vmatprep.subr.mxu0 0.0
          %849 = vmatpush1.msra.mxu0 0.0
          %850 = vmatprep.subr.mxu0 0.0
          %851 = vmatpush1.msra.mxu0 0.0
          %852 = vmatprep.subr.mxu0 0.0
          %853 = vmatpush1.msra.mxu0 0.0
          %854 = vmatprep.subr.mxu0 0.0
          %855 = vmatpush1.msra.mxu0 0.0
          %856 = vmatprep.subr.mxu0 0.0
          %857 = vmatpush1.msra.mxu0 0.0
          %858 = vmatprep.subr.mxu0 0.0
          %859 = vmatpush1.msra.mxu0 0.0
          %860 = vmatprep.subr.mxu0 0.0
          %861 = vmatpush1.msra.mxu0 0.0
          %862 = vmatprep.subr.mxu0 0.0
          %863 = vmatpush1.msra.mxu0 0.0
          %864 = vmatprep.subr.mxu0 0.0
          %865 = vmatpush1.msra.mxu0 0.0
          %866 = vmatprep.subr.mxu0 0.0
          %867 = vmatpush1.msra.mxu0 %v793
          %868 = vmatprep.subr.mxu0 0.0
          %869 = vmatpush1.msra.mxu0 %v792
          %870 = vmatprep.subr.mxu0 0.0
          %871 = vmatpush1.msra.mxu0 %v791
          %872 = vmatprep.subr.mxu0 0.0
          %873 = vmatpush1.msra.mxu0 %v790
          %874 = vmatprep.subr.mxu0 0.0
          %875 = vmatpush2.msra.mxu0 0.0
          %876 = vmatprep.subr.mxu0 0.0
          %877 = vmatpush2.msra.mxu0 0.0
          %878 = vmatprep.subr.mxu0 0.0
          %879 = vmatpush2.msra.mxu0 0.0
          %880 = vmatprep.subr.mxu0 0.0
          %881 = vmatpush2.msra.mxu0 0.0
          %882 = vmatprep.subr.mxu0 0.0
          %883 = vmatpush2.msra.mxu0 0.0
          %884 = vmatprep.subr.mxu0 0.0
          %885 = vmatpush2.msra.mxu0 0.0
          %886 = vmatprep.subr.mxu0 0.0
          %887 = vmatpush2.msra.mxu0 0.0
          %888 = vmatprep.subr.mxu0 0.0
          %889 = vmatpush2.msra.mxu0 0.0
          %890 = vmatprep.subr.mxu0 0.0
          %891 = vmatpush2.msra.mxu0 0.0
          %892 = vmatprep.subr.mxu0 0.0
          %893 = vmatpush2.msra.mxu0 0.0
          %894 = vmatprep.subr.mxu0 0.0
          %895 = vmatpush2.msra.mxu0 0.0
          %896 = vmatprep.subr.mxu0 0.0
          %897 = vmatpush2.msra.mxu0 0.0
          %898 = vmatprep.subr.mxu0 0.0
          %899 = vmatpush2.msra.mxu0 0.0
          %900 = vmatprep.subr.mxu0 0.0
          %901 = vmatpush2.msra.mxu0 0.0
          %902 = vmatprep.subr.mxu0 0.0
          %903 = vmatpush2.msra.mxu0 0.0
          %904 = vmatprep.subr.mxu0 0.0
          %905 = vmatpush2.msra.mxu0 0.0
          %906 = vmatprep.mubr.f32.mxu0 0.0
          %907 = vmatmul.mubr.f32.gmra.mxu0 %v795
          %v908 = vpop.f32.mrf.mxu0
          %v909 = vadd.f32 0.0, %v908
          %v910 = vpop.f32.mrf.mxu0
          %911 = vmatprep.mubr.f32.mxu0 0.0
          %912 = vmatmul.mubr.f32.gmra.mxu0 %v798
          %v913 = vpop.f32.mrf.mxu0
          %v914 = vadd.f32 0.0, %v913
          %v915 = vpop.f32.mrf.mxu0
          %916 = vmatprep.mubr.f32.mxu0 0.0
          %917 = vmatmul.mubr.f32.gmra.mxu0 %v801
          %v918 = vpop.f32.mrf.mxu0
          %v919 = vadd.f32 0.0, %v918
          %v920 = vpop.f32.mrf.mxu0
          %921 = vmatprep.mubr.f32.mxu0 0.0
          %922 = vmatmul.mubr.f32.gmra.mxu0 %v804
          %v923 = vpop.f32.mrf.mxu0
          %v924 = vadd.f32 0.0, %v923
          %v925 = vpop.f32.mrf.mxu0
          %926 = vmatprep.mubr.f32.mxu0 0.0
          %927 = vmatmul.mubr.f32.gmra.mxu0 %v807
          %v928 = vpop.f32.mrf.mxu0
          %v929 = vadd.f32 0.0, %v928
          %v930 = vpop.f32.mrf.mxu0
          %931 = vmatprep.mubr.f32.mxu0 0.0
          %932 = vmatmul.mubr.f32.gmra.mxu0 %v810
          %v933 = vpop.f32.mrf.mxu0
          %v934 = vadd.f32 0.0, %v933
          %v935 = vpop.f32.mrf.mxu0
          %936 = vmatprep.mubr.f32.mxu0 0.0
          %937 = vmatmul.mubr.f32.gmra.mxu0 %v813
          %v938 = vpop.f32.mrf.mxu0
          %v939 = vadd.f32 0.0, %v938
          %v940 = vpop.f32.mrf.mxu0
          %941 = vmatprep.mubr.f32.mxu0 0.0
          %942 = vmatmul.mubr.f32.gmra.mxu0 %v816
          %v943 = vpop.f32.mrf.mxu0
          %v944 = vadd.f32 0.0, %v943
          %v945 = vpop.f32.mrf.mxu0
          %946 = vmatprep.mubr.f32.mxu0 0.0
          %947 = vmatmul.mubr.f32.gmra.mxu0 %v819
          %v948 = vpop.f32.mrf.mxu0
          %v949 = vadd.f32 0.0, %v948
          %v950 = vpop.f32.mrf.mxu0
          %951 = vmatprep.mubr.f32.mxu0 0.0
          %952 = vmatmul.mubr.f32.gmra.mxu0 %v822
          %v953 = vpop.f32.mrf.mxu0
          %v954 = vadd.f32 0.0, %v953
          %v955 = vpop.f32.mrf.mxu0
          %956 = vmatprep.mubr.f32.mxu0 0.0
          %957 = vmatmul.mubr.f32.gmra.mxu0 %v825
          %v958 = vpop.f32.mrf.mxu0
          %v959 = vadd.f32 0.0, %v958
          %v960 = vpop.f32.mrf.mxu0
          %961 = vmatprep.mubr.f32.mxu0 0.0
          %962 = vmatmul.mubr.f32.gmra.mxu0 %v828
          %v963 = vpop.f32.mrf.mxu0
          %v964 = vadd.f32 0.0, %v963
          %v965 = vpop.f32.mrf.mxu0
          %966 = vmatprep.mubr.f32.mxu0 0.0
          %967 = vmatmul.mubr.f32.gmra.mxu0 %v831
          %v968 = vpop.f32.mrf.mxu0
          %v969 = vadd.f32 0.0, %v968
          %v970 = vpop.f32.mrf.mxu0
          %971 = vmatprep.mubr.f32.mxu0 0.0
          %972 = vmatmul.mubr.f32.gmra.mxu0 %v834
          %v973 = vpop.f32.mrf.mxu0
          %v974 = vadd.f32 0.0, %v973
          %v975 = vpop.f32.mrf.mxu0
          %976 = vmatprep.mubr.f32.mxu0 0.0
          %977 = vmatmul.mubr.f32.gmra.mxu0 %v837
          %v978 = vpop.f32.mrf.mxu0
          %v979 = vadd.f32 0.0, %v978
          %v980 = vpop.f32.mrf.mxu0
          %981 = vmatprep.mubr.f32.mxu0 0.0
          %982 = vmatmul.mubr.f32.gmra.mxu0 %v840
          %v983 = vpop.f32.mrf.mxu0
          %v984 = vadd.f32 0.0, %v983
          %v985 = vpop.f32.mrf.mxu0
          %986 = vdwg.mxu0
          %v988 = vsel %vm701, %v754, 0
          %v991 = vsel %vm701, %v755, 0
          %v994 = vsel %vm701, %v756, 0
          %v997 = vsel %vm701, %v757, 0
          %v1000 = vsel %vm701, %v758, 0
          %v1003 = vsel %vm701, %v759, 0
          %v1006 = vsel %vm701, %v760, 0
          %v1009 = vsel %vm701, %v761, 0
          %v1012 = vsel %vm701, %v762, 0
          %v1015 = vsel %vm701, %v763, 0
          %v1018 = vsel %vm701, %v764, 0
          %v1021 = vsel %vm701, %v765, 0
          %v1024 = vsel %vm701, %v766, 0
          %v1027 = vsel %vm701, %v767, 0
          %v1030 = vsel %vm701, %v768, 0
          %v1033 = vsel %vm701, %v769, 0
          %1035 = vmatprep.subr.mxu0 0.0
          %1036 = vmatpush1.msra.mxu0 0.0
          %1037 = vmatprep.subr.mxu0 0.0
          %1038 = vmatpush1.msra.mxu0 0.0
          %1039 = vmatprep.subr.mxu0 0.0
          %1040 = vmatpush1.msra.mxu0 0.0
          %1041 = vmatprep.subr.mxu0 0.0
          %1042 = vmatpush1.msra.mxu0 0.0
          %1043 = vmatprep.subr.mxu0 0.0
          %1044 = vmatpush1.msra.mxu0 0.0
          %1045 = vmatprep.subr.mxu0 0.0
          %1046 = vmatpush1.msra.mxu0 0.0
          %1047 = vmatprep.subr.mxu0 0.0
          %1048 = vmatpush1.msra.mxu0 0.0
          %1049 = vmatprep.subr.mxu0 0.0
          %1050 = vmatpush1.msra.mxu0 0.0
          %1051 = vmatprep.subr.mxu0 0.0
          %1052 = vmatpush1.msra.mxu0 0.0
          %1053 = vmatprep.subr.mxu0 0.0
          %1054 = vmatpush1.msra.mxu0 0.0
          %1055 = vmatprep.subr.mxu0 0.0
          %1056 = vmatpush1.msra.mxu0 0.0
          %1057 = vmatprep.subr.mxu0 0.0
          %1058 = vmatpush1.msra.mxu0 0.0
          %1059 = vmatprep.subr.mxu0 0.0
          %1060 = vmatpush1.msra.mxu0 %v773
          %1061 = vmatprep.subr.mxu0 0.0
          %1062 = vmatpush1.msra.mxu0 %v772
          %1063 = vmatprep.subr.mxu0 0.0
          %1064 = vmatpush1.msra.mxu0 %v771
          %1065 = vmatprep.subr.mxu0 0.0
          %1066 = vmatpush1.msra.mxu0 %v770
          %1067 = vmatprep.subr.mxu0 0.0
          %1068 = vmatpush2.msra.mxu0 0.0
          %1069 = vmatprep.subr.mxu0 0.0
          %1070 = vmatpush2.msra.mxu0 0.0
          %1071 = vmatprep.subr.mxu0 0.0
          %1072 = vmatpush2.msra.mxu0 0.0
          %1073 = vmatprep.subr.mxu0 0.0
          %1074 = vmatpush2.msra.mxu0 0.0
          %1075 = vmatprep.subr.mxu0 0.0
          %1076 = vmatpush2.msra.mxu0 0.0
          %1077 = vmatprep.subr.mxu0 0.0
          %1078 = vmatpush2.msra.mxu0 0.0
          %1079 = vmatprep.subr.mxu0 0.0
          %1080 = vmatpush2.msra.mxu0 0.0
          %1081 = vmatprep.subr.mxu0 0.0
          %1082 = vmatpush2.msra.mxu0 0.0
          %1083 = vmatprep.subr.mxu0 0.0
          %1084 = vmatpush2.msra.mxu0 0.0
          %1085 = vmatprep.subr.mxu0 0.0
          %1086 = vmatpush2.msra.mxu0 0.0
          %1087 = vmatprep.subr.mxu0 0.0
          %1088 = vmatpush2.msra.mxu0 0.0
          %1089 = vmatprep.subr.mxu0 0.0
          %1090 = vmatpush2.msra.mxu0 0.0
          %1091 = vmatprep.subr.mxu0 0.0
          %1092 = vmatpush2.msra.mxu0 0.0
          %1093 = vmatprep.subr.mxu0 0.0
          %1094 = vmatpush2.msra.mxu0 0.0
          %1095 = vmatprep.subr.mxu0 0.0
          %1096 = vmatpush2.msra.mxu0 0.0
          %1097 = vmatprep.subr.mxu0 0.0
          %1098 = vmatpush2.msra.mxu0 0.0
          %1099 = vmatprep.mubr.f32.mxu0 0.0
          %1100 = vmatmul.mubr.f32.gmra.mxu0 %v988
          %v1101 = vpop.f32.mrf.mxu0
          %v1102 = vadd.f32 %v909, %v1101
          %v1103 = vpop.f32.mrf.mxu0
          %1104 = vmatprep.mubr.f32.mxu0 0.0
          %1105 = vmatmul.mubr.f32.gmra.mxu0 %v991
          %v1106 = vpop.f32.mrf.mxu0
          %v1107 = vadd.f32 %v914, %v1106
          %v1108 = vpop.f32.mrf.mxu0
          %1109 = vmatprep.mubr.f32.mxu0 0.0
          %1110 = vmatmul.mubr.f32.gmra.mxu0 %v994
          %v1111 = vpop.f32.mrf.mxu0
          %v1112 = vadd.f32 %v919, %v1111
          %v1113 = vpop.f32.mrf.mxu0
          %1114 = vmatprep.mubr.f32.mxu0 0.0
          %1115 = vmatmul.mubr.f32.gmra.mxu0 %v997
          %v1116 = vpop.f32.mrf.mxu0
          %v1117 = vadd.f32 %v924, %v1116
          %v1118 = vpop.f32.mrf.mxu0
          %1119 = vmatprep.mubr.f32.mxu0 0.0
          %1120 = vmatmul.mubr.f32.gmra.mxu0 %v1000
          %v1121 = vpop.f32.mrf.mxu0
          %v1122 = vadd.f32 %v929, %v1121
          %v1123 = vpop.f32.mrf.mxu0
          %1124 = vmatprep.mubr.f32.mxu0 0.0
          %1125 = vmatmul.mubr.f32.gmra.mxu0 %v1003
          %v1126 = vpop.f32.mrf.mxu0
          %v1127 = vadd.f32 %v934, %v1126
          %v1128 = vpop.f32.mrf.mxu0
          %1129 = vmatprep.mubr.f32.mxu0 0.0
          %1130 = vmatmul.mubr.f32.gmra.mxu0 %v1006
          %v1131 = vpop.f32.mrf.mxu0
          %v1132 = vadd.f32 %v939, %v1131
          %v1133 = vpop.f32.mrf.mxu0
          %1134 = vmatprep.mubr.f32.mxu0 0.0
          %1135 = vmatmul.mubr.f32.gmra.mxu0 %v1009
          %v1136 = vpop.f32.mrf.mxu0
          %v1137 = vadd.f32 %v944, %v1136
          %v1138 = vpop.f32.mrf.mxu0
          %1139 = vmatprep.mubr.f32.mxu0 0.0
          %1140 = vmatmul.mubr.f32.gmra.mxu0 %v1012
          %v1141 = vpop.f32.mrf.mxu0
          %v1142 = vadd.f32 %v949, %v1141
          %v1143 = vpop.f32.mrf.mxu0
          %1144 = vmatprep.mubr.f32.mxu0 0.0
          %1145 = vmatmul.mubr.f32.gmra.mxu0 %v1015
          %v1146 = vpop.f32.mrf.mxu0
          %v1147 = vadd.f32 %v954, %v1146
          %v1148 = vpop.f32.mrf.mxu0
          %1149 = vmatprep.mubr.f32.mxu0 0.0
          %1150 = vmatmul.mubr.f32.gmra.mxu0 %v1018
          %v1151 = vpop.f32.mrf.mxu0
          %v1152 = vadd.f32 %v959, %v1151
          %v1153 = vpop.f32.mrf.mxu0
          %1154 = vmatprep.mubr.f32.mxu0 0.0
          %1155 = vmatmul.mubr.f32.gmra.mxu0 %v1021
          %v1156 = vpop.f32.mrf.mxu0
          %v1157 = vadd.f32 %v964, %v1156
          %v1158 = vpop.f32.mrf.mxu0
          %1159 = vmatprep.mubr.f32.mxu0 0.0
          %1160 = vmatmul.mubr.f32.gmra.mxu0 %v1024
          %v1161 = vpop.f32.mrf.mxu0
          %v1162 = vadd.f32 %v969, %v1161
          %v1163 = vpop.f32.mrf.mxu0
          %1164 = vmatprep.mubr.f32.mxu0 0.0
          %1165 = vmatmul.mubr.f32.gmra.mxu0 %v1027
          %v1166 = vpop.f32.mrf.mxu0
          %v1167 = vadd.f32 %v974, %v1166
          %v1168 = vpop.f32.mrf.mxu0
          %1169 = vmatprep.mubr.f32.mxu0 0.0
          %1170 = vmatmul.mubr.f32.gmra.mxu0 %v1030
          %v1171 = vpop.f32.mrf.mxu0
          %v1172 = vadd.f32 %v979, %v1171
          %v1173 = vpop.f32.mrf.mxu0
          %1174 = vmatprep.mubr.f32.mxu0 0.0
          %1175 = vmatmul.mubr.f32.gmra.mxu0 %v1033
          %v1176 = vpop.f32.mrf.mxu0
          %v1177 = vadd.f32 %v984, %v1176
          %v1178 = vpop.f32.mrf.mxu0
          %1179 = vdwg.mxu0
          %vm1180 = vcmp.ge.f32.partialorder %v1102, 0.0
          %vm1181 = vcmp.ge.f32.partialorder %v1107, 0.0
          %vm1182 = vcmp.ge.f32.partialorder %v1112, 0.0
          %vm1183 = vcmp.ge.f32.partialorder %v1117, 0.0
          %vm1184 = vcmp.ge.f32.partialorder %v1122, 0.0
          %vm1185 = vcmp.ge.f32.partialorder %v1127, 0.0
          %vm1186 = vcmp.ge.f32.partialorder %v1132, 0.0
          %vm1187 = vcmp.ge.f32.partialorder %v1137, 0.0
          %vm1188 = vcmp.ge.f32.partialorder %v1142, 0.0
          %vm1189 = vcmp.ge.f32.partialorder %v1147, 0.0
          %vm1190 = vcmp.ge.f32.partialorder %v1152, 0.0
          %vm1191 = vcmp.ge.f32.partialorder %v1157, 0.0
          %vm1192 = vcmp.ge.f32.partialorder %v1162, 0.0
          %vm1193 = vcmp.ge.f32.partialorder %v1167, 0.0
          %vm1194 = vcmp.ge.f32.partialorder %v1172, 0.0
          %vm1195 = vcmp.ge.f32.partialorder %v1177, 0.0
          %v1196 = vmul.f32 %v1102, 0.01
          %v1197 = vmul.f32 %v1107, 0.01
          %v1198 = vmul.f32 %v1112, 0.01
          %v1199 = vmul.f32 %v1117, 0.01
          %v1200 = vmul.f32 %v1122, 0.01
          %v1201 = vmul.f32 %v1127, 0.01
          %v1202 = vmul.f32 %v1132, 0.01
          %v1203 = vmul.f32 %v1137, 0.01
          %v1204 = vmul.f32 %v1142, 0.01
          %v1205 = vmul.f32 %v1147, 0.01
          %v1206 = vmul.f32 %v1152, 0.01
          %v1207 = vmul.f32 %v1157, 0.01
          %v1208 = vmul.f32 %v1162, 0.01
          %v1209 = vmul.f32 %v1167, 0.01
          %v1210 = vmul.f32 %v1172, 0.01
          %v1211 = vmul.f32 %v1177, 0.01
          %v1212 = vsel %vm1180, %v1102, %v1196
          %v1213 = vsel %vm1181, %v1107, %v1197
          %v1214 = vsel %vm1182, %v1112, %v1198
          %v1215 = vsel %vm1183, %v1117, %v1199
          %v1216 = vsel %vm1184, %v1122, %v1200
          %v1217 = vsel %vm1185, %v1127, %v1201
          %v1218 = vsel %vm1186, %v1132, %v1202
          %v1219 = vsel %vm1187, %v1137, %v1203
          %v1220 = vsel %vm1188, %v1142, %v1204
          %v1221 = vsel %vm1189, %v1147, %v1205
          %v1222 = vsel %vm1190, %v1152, %v1206
          %v1223 = vsel %vm1191, %v1157, %v1207
          %v1224 = vsel %vm1192, %v1162, %v1208
          %v1225 = vsel %vm1193, %v1167, %v1209
          %v1226 = vsel %vm1194, %v1172, %v1210
          %v1227 = vsel %vm1195, %v1177, %v1211
          %1228 = vst.msk [vmem:[%s437] sm:$0xff] %vm701, %v1212
          %1229 = vst.msk [vmem:[%s437 + $0x8] sm:$0xff] %vm701, %v1213
          %1230 = vst.msk [vmem:[%s437 + $0x10] sm:$0xff] %vm701, %v1214
          %1231 = vst.msk [vmem:[%s437 + $0x18] sm:$0xff] %vm701, %v1215
          %1232 = vst.msk [vmem:[%s437 + $0x20] sm:$0xff] %vm701, %v1216
          %1233 = vst.msk [vmem:[%s437 + $0x28] sm:$0xff] %vm701, %v1217
          %1234 = vst.msk [vmem:[%s437 + $0x30] sm:$0xff] %vm701, %v1218
          %1235 = vst.msk [vmem:[%s437 + $0x38] sm:$0xff] %vm701, %v1219
          %1236 = vst.msk [vmem:[%s437 + $0x40] sm:$0xff] %vm701, %v1220
          %1237 = vst.msk [vmem:[%s437 + $0x48] sm:$0xff] %vm701, %v1221
          %1238 = vst.msk [vmem:[%s437 + $0x50] sm:$0xff] %vm701, %v1222
          %1239 = vst.msk [vmem:[%s437 + $0x58] sm:$0xff] %vm701, %v1223
          %1240 = vst.msk [vmem:[%s437 + $0x60] sm:$0xff] %vm701, %v1224
          %1241 = vst.msk [vmem:[%s437 + $0x68] sm:$0xff] %vm701, %v1225
          %1242 = vst.msk [vmem:[%s437 + $0x70] sm:$0xff] %vm701, %v1226
          %1243 = vst.msk [vmem:[%s437 + $0x78] sm:$0xff] %vm701, %v1227
          %v1244 = vld [vmem:[%s462] sm:$0xff]
          %v1245 = vld [vmem:[%s462 + $0x8] sm:$0xff]
          %v1246 = vld [vmem:[%s462 + $0x10] sm:$0xff]
          %v1247 = vld [vmem:[%s462 + $0x18] sm:$0xff]
          %v1248 = vld [vmem:[%s462 + $0x20] sm:$0xff]
          %v1249 = vld [vmem:[%s462 + $0x28] sm:$0xff]
          %v1250 = vld [vmem:[%s462 + $0x30] sm:$0xff]
          %v1251 = vld [vmem:[%s462 + $0x38] sm:$0xff]
          %v1252 = vld [vmem:[%s462 + $0x40] sm:$0xff]
          %v1253 = vld [vmem:[%s462 + $0x48] sm:$0xff]
          %v1254 = vld [vmem:[%s462 + $0x50] sm:$0xff]
          %v1255 = vld [vmem:[%s462 + $0x58] sm:$0xff]
          %v1256 = vld [vmem:[%s462 + $0x60] sm:$0xff]
          %v1257 = vld [vmem:[%s462 + $0x68] sm:$0xff]
          %v1258 = vld [vmem:[%s462 + $0x70] sm:$0xff]
          %v1259 = vld [vmem:[%s462 + $0x78] sm:$0xff]
          %v1260 = vadd.f32 %v1244, %v1212
          %v1261 = vadd.f32 %v1245, %v1213
          %v1262 = vadd.f32 %v1246, %v1214
          %v1263 = vadd.f32 %v1247, %v1215
          %v1264 = vadd.f32 %v1248, %v1216
          %v1265 = vadd.f32 %v1249, %v1217
          %v1266 = vadd.f32 %v1250, %v1218
          %v1267 = vadd.f32 %v1251, %v1219
          %v1268 = vadd.f32 %v1252, %v1220
          %v1269 = vadd.f32 %v1253, %v1221
          %v1270 = vadd.f32 %v1254, %v1222
          %v1271 = vadd.f32 %v1255, %v1223
          %v1272 = vadd.f32 %v1256, %v1224
          %v1273 = vadd.f32 %v1257, %v1225
          %v1274 = vadd.f32 %v1258, %v1226
          %v1275 = vadd.f32 %v1259, %v1227
          %v1276 = vmul.f32 %v1260, 0.33333334
          %v1277 = vmul.f32 %v1261, 0.33333334
          %v1278 = vmul.f32 %v1262, 0.33333334
          %v1279 = vmul.f32 %v1263, 0.33333334
          %v1280 = vmul.f32 %v1264, 0.33333334
          %v1281 = vmul.f32 %v1265, 0.33333334
          %v1282 = vmul.f32 %v1266, 0.33333334
          %v1283 = vmul.f32 %v1267, 0.33333334
          %v1284 = vmul.f32 %v1268, 0.33333334
          %v1285 = vmul.f32 %v1269, 0.33333334
          %v1286 = vmul.f32 %v1270, 0.33333334
          %v1287 = vmul.f32 %v1271, 0.33333334
          %v1288 = vmul.f32 %v1272, 0.33333334
          %v1289 = vmul.f32 %v1273, 0.33333334
          %v1290 = vmul.f32 %v1274, 0.33333334
          %v1291 = vmul.f32 %v1275, 0.33333334
          %1292 = vst.msk [vmem:[%s469] sm:$0xff] %vm701, %v1276
          %1293 = vst.msk [vmem:[%s469 + $0x8] sm:$0xff] %vm701, %v1277
          %1294 = vst.msk [vmem:[%s469 + $0x10] sm:$0xff] %vm701, %v1278
          %1295 = vst.msk [vmem:[%s469 + $0x18] sm:$0xff] %vm701, %v1279
          %1296 = vst.msk [vmem:[%s469 + $0x20] sm:$0xff] %vm701, %v1280
          %1297 = vst.msk [vmem:[%s469 + $0x28] sm:$0xff] %vm701, %v1281
          %1298 = vst.msk [vmem:[%s469 + $0x30] sm:$0xff] %vm701, %v1282
          %1299 = vst.msk [vmem:[%s469 + $0x38] sm:$0xff] %vm701, %v1283
          %1300 = vst.msk [vmem:[%s469 + $0x40] sm:$0xff] %vm701, %v1284
          %1301 = vst.msk [vmem:[%s469 + $0x48] sm:$0xff] %vm701, %v1285
          %1302 = vst.msk [vmem:[%s469 + $0x50] sm:$0xff] %vm701, %v1286
          %1303 = vst.msk [vmem:[%s469 + $0x58] sm:$0xff] %vm701, %v1287
          %1304 = vst.msk [vmem:[%s469 + $0x60] sm:$0xff] %vm701, %v1288
          %1305 = vst.msk [vmem:[%s469 + $0x68] sm:$0xff] %vm701, %v1289
          %1306 = vst.msk [vmem:[%s469 + $0x70] sm:$0xff] %vm701, %v1290
          %1307 = vst.msk [vmem:[%s469 + $0x78] sm:$0xff] %vm701, %v1291
        $region90: #{ngcf_forward.3} parent=77 // pred_fallthru
          _
        %s1308 = sand.u32 %s190, 1
        %s1309 = scalar_lea.sflag [#allocation5], %s1308
        %s1310 = sand.u32 %s190, 1
        %s1311 = smul.addr %s1310, 128
        %s1312 = scalar_lea.vmem [#allocation4], %s1311
        %s1313 = smul.u32 16, %s26
        %p1314 = scmp.lt.s32.totalorder %s1313, 31
        %s1315 = scalar_select %p1314, %s1313, 31
        %s1316 = smul.addr %s1315, 8
        %s1317 = scalar_lea.vmem %s7, %s1316
        // Predicated region
        $region91: #{ngcf_forward.3} parent=77 // pred_check
          %p1318 = pneg %p200
        $region92: #{ngcf_forward.3} parent=77 // pred_check_branch
          %1320 = sbr.rel (%p1318) target = $region94
        $region93: #{ngcf_forward.3} parent=77 // pred_region
          %s1321 = smul.u32 16, %s26
          %s1323 = ssub.s32 2048, 2048
          %1324 = vsyncadd %s1309, %s1323
          %s1325 = smul.addr %s1321, 128
          %s1326 = scalar_lea.hbm %s6, %s1325
          %s1327 = sshll.u32 %s1312, 4
          %s1328 = int_to_ptr.vmem [resolvable:$true] %s1327
          %1333 = dma.vmem_to_hbm [thread:$0]  %s1328, 2048, %s1326, %s1309, 128, 128, 8
        $region94: #{ngcf_forward.3} parent=77 // pred_fallthru
          _
        // Predicated region
        $region95: #{ngcf_forward.3} parent=77 // pred_check
          %p1334 = pneg %p226
        $region96: #{ngcf_forward.3} parent=77 // pred_check_branch
          %1336 = sbr.rel (%p1334) target = $region98
        $region97: #{ngcf_forward.3} parent=77 // pred_region
          %s1337 = smul.u32 16, %s26
        $region98: #{ngcf_forward.3} parent=77 // pred_fallthru
          _
      $region78: #{ngcf_forward.3} parent=5 // pred_fallthru
        _
      %p1338 = scmp.le.s32.totalorder 2, %s17
      // Predicated region
      $region99: #{ngcf_forward.3} parent=5 // pred_check
        %p1339 = pneg %p1338
      $region100: #{ngcf_forward.3} parent=5 // pred_check_branch
        %1341 = sbr.rel (%p1339) target = $region102
      $region101: #{ngcf_forward.3} parent=5 // pred_region
        %s1342 = ssub.s32 %s17, 2
        // Predicated region
        $region103: #{ngcf_forward.3} parent=101 // pred_check
          %p1343 = pneg %p206
        $region104: #{ngcf_forward.3} parent=101 // pred_check_branch
          %1345 = sbr.rel (%p1343) target = $region106
        $region105: #{ngcf_forward.3} parent=101 // pred_region
          %s1346 = sand.u32 %s191, 1
          %s1347 = scalar_lea.sflag [#allocation5], %s1346
          %s1348 = sand.u32 %s191, 1
          %s1349 = smul.addr %s1348, 128
          %s1350 = scalar_lea.vmem [#allocation4], %s1349
          %1351 = dma.done %s1347, 2048
        $region106: #{ngcf_forward.3} parent=101 // pred_fallthru
          _
        // Predicated region
        $region107: #{ngcf_forward.3} parent=101 // pred_check
          %p1352 = pneg %p232
        $region108: #{ngcf_forward.3} parent=101 // pred_check_branch
          %1354 = sbr.rel (%p1352) target = $region110
        $region109: #{ngcf_forward.3} parent=101 // pred_region
          %s1355 = smul.u32 16, %s28
          %p1356 = scmp.lt.s32.totalorder %s1355, 31
          %s1357 = scalar_select %p1356, %s1355, 31
          %s1358 = smul.addr %s1357, 8
          %s1359 = scalar_lea.vmem %s7, %s1358
        $region110: #{ngcf_forward.3} parent=101 // pred_fallthru
          _
      $region102: #{ngcf_forward.3} parent=5 // pred_fallthru
        _
    $region6: #{ngcf_forward.3} parent=1 // loop_footer
      %s21 = sadd.s32 1, %s17
    $region7: #{ngcf_forward.3} parent=1 // loop_footer_branch
      %16 = sbr.rel target = $region3
    $region8: #{ngcf_forward.3} parent=1 // loop_exit
      _
    %1360 = vsyncpa [#allocation5], 1
    %s1361 = scalar_lea.sflag [#allocation5], 1
    %1362 = vsyncpa %s1361, 1

</llo_original>
